<compile_context>
chip_gen: v6e
topology: v6e:2x2x1
jax: 0.10.0
libtpu: 0.0.40
codegen_flags: <defaults>
</compile_context>

<pallas_src>
import functools
import math

import jax
import jax.numpy as jnp
from jax.experimental import pallas as pl
from jax.experimental.pallas import tpu as pltpu


# ----------------------------------------------------------------------------
# Fused kernel
# ----------------------------------------------------------------------------

def _fused_block_kernel(x_ref, w1_ref, b1_ref, wg_ref, b2_ref,
                        w3_ref, sc_ref, bo_ref, o_ref, h1p_ref,
                        *, H, W, pad, B_blk, projection_shortcut):
    # x_ref : (B_blk*M, Cin)  bf16   B_blk images, NHWC flattened to (H*W, C) each
    # w1_ref: (Cin, Ci)       bf16   1x1 conv, bn1 scale folded
    # b1_ref: (1, Ci)         f32    folded bn1 bias
    # wg_ref: (9, Ci, Ci)     bf16   block-diagonal grouped 3x3, bn2 scale folded
    # b2_ref: (1, Ci)         f32    folded bn2 bias
    # w3_ref: (Ci, Co)        bf16   1x1 conv, bn3*bn0 scales folded
    # sc_ref: (Cin, Co) bf16 (projection, bn0 folded)  OR  (1, Co) f32 (bn0 scale)
    # bo_ref: (1, Co)         f32    combined bn3/bn0 bias
    # o_ref : (B_blk*M, Co)
    # h1p_ref: (pad + B_blk*(M+pad), Ci) bf16 VMEM scratch (zero-row-padded h1 slots)
    M = H * W
    Mp = M + pad                       # rows per image slot (data + trailing zero band)
    L = (B_blk - 1) * Mp + M           # tap-matmul row count (covers all valid rows)
    Ci = w1_ref.shape[1]

    x = x_ref[...]                                            # (B_blk*M, Cin) bf16

    # ---- conv1_0 (1x1) + folded bn1 + ReLU --------------------------------
    h1 = jnp.dot(x, w1_ref[...], preferred_element_type=jnp.float32)
    h1 = jnp.maximum(h1 + b1_ref[...], 0.0)
    h1b = h1.astype(jnp.bfloat16)                             # (B_blk*M, Ci)

    # ---- write h1 into the bf16 zero-row-padded scratch (3x3 row halo) ----
    # Halo bands are re-zeroed every step (cheap, bf16) so correctness does not
    # depend on grid-step 0 running on every core if the axis gets sharded.
    zpad = jnp.zeros((pad, Ci), jnp.bfloat16)
    h1p_ref[0:pad, :] = zpad
    for b in range(B_blk):
        base = pad + b * Mp
        h1p_ref[base:base + M, :] = h1b[b * M:(b + 1) * M, :]
        h1p_ref[base + M:base + Mp, :] = zpad

    # ---- conv3_0 (grouped 3x3, stride 1, pad 1) + folded bn2 + ReLU -------
    def tap_sum(dw, dhs):
        s = None
        for dh in dhs:
            tap = (dh + 1) * 3 + (dw + 1)
            start = pad + dh * W + dw                         # static offset
            d = jnp.dot(h1p_ref[start:start + L, :], wg_ref[tap],
                        preferred_element_type=jnp.float32)
            s = d if s is None else s + d
        return s

    # Column-halo masks generated in-kernel (lane-dense), applied once per dw group.
    # Requires pad % W == 0 so (padded row) % W == output column.
    col = jax.lax.broadcasted_iota(jnp.int32, (L, Ci), 0) % W
    acc = tap_sum(0, (-1, 1))                                     # dw = 0 (off-center)
    acc = acc + jnp.where(col == 0, 0.0, tap_sum(-1, (-1, 0, 1)))  # dw = -1
    acc = acc + jnp.where(col == W - 1, 0.0, tap_sum(1, (-1, 0, 1)))  # dw = +1

    # Gather valid rows back to the dense layout, then add the center tap computed
    # from the h1 value still live in vregs (no reload, full-row dense matmul).
    if B_blk == 1:
        acc_d = acc
    else:
        acc_d = jnp.concatenate([acc[b * Mp:b * Mp + M] for b in range(B_blk)], axis=0)
    acc_d = acc_d + jnp.dot(h1b, wg_ref[4], preferred_element_type=jnp.float32)

    h2 = jnp.maximum(acc_d + b2_ref[...], 0.0).astype(jnp.bfloat16)

    # ---- conv1_1 (1x1) + bn3 + shortcut + bn0 + ReLU (scales pre-folded) --
    y = jnp.dot(h2, w3_ref[...], preferred_element_type=jnp.float32)
    if projection_shortcut:
        y = y + jnp.dot(x, sc_ref[...], preferred_element_type=jnp.float32)
    else:
        y = y + x.astype(jnp.float32) * sc_ref[...]           # identity * bn0 scale
    o_ref[...] = jnp.maximum(y + bo_ref[...], 0.0).astype(o_ref.dtype)


# ----------------------------------------------------------------------------
# Wrapper
# ----------------------------------------------------------------------------

def basic_block_forward(fp, x_nchw, out_dtype=jnp.float32):
    cfg = fp['cfg']
    assert cfg['stride'] == 1, "stride != 1 not implemented"
    N, Cin, H, W = x_nchw.shape
    Ci, Co = cfg['inner'], cfg['out_planes']
    M = H * W
    assert M % 8 == 0, "H*W must be a multiple of 8 for this kernel"

    # Fused NCHW->NHWC transpose + bf16 cast (single wrapper-side HBM pass).
    x2d = jnp.transpose(x_nchw.astype(jnp.bfloat16), (0, 2, 3, 1)).reshape(N * M, Cin)

    # Pack images per grid step so dense matmuls feed ~256 MXU rows.
    target = max(1, 256 // M)
    B_blk = 1
    for c in range(min(N, target), 0, -1):
        if N % c == 0:
            B_blk = c
            break

    # Row halo: multiple of lcm(8, W) (sublane alignment + column-index periodicity),
    # and >= W + 1 so every dh=+-1 tap read stays inside the zero bands.
    align = (8 * W) // math.gcd(8, W)
    pad = ((W + 1 + align - 1) // align) * align
    Mp = M + pad
    T = pad + B_blk * Mp                                          # scratch rows

    proj = fp['wsc'] is not None
    if not proj:
        assert Cin == Co, "identity shortcut requires in_planes == out_planes"
    sc_arg = fp['wsc'] if proj else fp['s0']

    # Size the VMEM limit from the actual requirement (do NOT hard-code 64 MiB,
    # which is all of a v7x TensorCore's VMEM).
    out_isz = jnp.dtype(out_dtype).itemsize
    w_bytes = ((Cin * Ci + 9 * Ci * Ci + Ci * Co) * 2
               + int(sc_arg.size) * jnp.dtype(sc_arg.dtype).itemsize
               + 4 * (2 * Ci + 2 * Co))
    need = (2 * B_blk * M * (Cin * 2 + Co * out_isz)   # double-buffered x / out blocks
            + 2 * w_bytes                              # (conservatively) 2x weights
            + T * Ci * 2)                              # bf16 halo scratch
    vmem_limit = int(min(32 * 2 ** 20, max(4 * 2 ** 20, 2 * need)))

    kernel = functools.partial(_fused_block_kernel, H=H, W=W, pad=pad,
                               B_blk=B_blk, projection_shortcut=proj)

    out2d = pl.pallas_call(
        kernel,
        out_shape=jax.ShapeDtypeStruct((N * M, Co), out_dtype),
        grid=(N // B_blk,),
        in_specs=[
            pl.BlockSpec((B_blk * M, Cin), lambda n: (n, 0)),     # x (B_blk images)
            pl.BlockSpec((Cin, Ci), lambda n: (0, 0)),            # w1
            pl.BlockSpec((1, Ci), lambda n: (0, 0)),              # b1
            pl.BlockSpec((9, Ci, Ci), lambda n: (0, 0, 0)),       # grouped 3x3 (block diag)
            pl.BlockSpec((1, Ci), lambda n: (0, 0)),              # b2
            pl.BlockSpec((Ci, Co), lambda n: (0, 0)),             # w3
            pl.BlockSpec(sc_arg.shape, lambda n: (0, 0)),         # shortcut weight / bn0 scale
            pl.BlockSpec((1, Co), lambda n: (0, 0)),              # combined bias
        ],
        out_specs=pl.BlockSpec((B_blk * M, Co), lambda n: (n, 0)),
        scratch_shapes=[pltpu.VMEM((T, Ci), jnp.bfloat16)],
        compiler_params=pltpu.CompilerParams(
            dimension_semantics=("parallel",),
            vmem_limit_bytes=vmem_limit),
    )(x2d, fp['w1'], fp['b1'], fp['wg'], fp['b2'],
      fp['w3'], sc_arg, fp['bo'])

    return jnp.transpose(out2d.reshape(N, H, W, Co), (0, 3, 1, 2))   # NHWC -> NCHW


# ----------------------------------------------------------------------------
# Parameters / BN folding
# ----------------------------------------------------------------------------

def _fold_bn(bn, eps=1e-5):
    gamma, beta, mean, var = bn
    s = gamma / jnp.sqrt(var + eps)
    b = beta - mean * s
    return s[None, :], b[None, :]


def fold_params(params):
    """Fold inference-mode BN into conv weights / biases; cast matmul operands to bf16."""
    s1, b1 = _fold_bn(params['bn1'])
    s2, b2 = _fold_bn(params['bn2'])
    s3, b3 = _fold_bn(params['bn3'])
    s0, b0 = _fold_bn(params['bn0'])
    w1 = (params['w1'] * s1).astype(jnp.bfloat16)                   # (Cin, Ci)
    wg = (params['wg_bd'] * s2[0]).astype(jnp.bfloat16)             # (9, Ci, Ci)
    w3 = (params['w3'] * (s3 * s0)).astype(jnp.bfloat16)            # (Ci, Co)
    wsc = None if params['wsc'] is None else (params['wsc'] * s0).astype(jnp.bfloat16)
    bo = b3 * s0 + b0
    return dict(w1=w1, b1=b1, wg=wg, b2=b2, w3=w3, wsc=wsc,
                s0=s0, bo=bo, cfg=params['cfg'])


def init_params(key, in_planes, bottleneck_width=4, cardinality=32,
                stride=1, expansion=2):
    G, Cg = cardinality, bottleneck_width
    inner = G * Cg
    out_planes = inner * expansion
    ks = jax.random.split(key, 8)

    def conv_w(k, fan_in, shape):
        return jax.random.normal(k, shape, jnp.float32) / jnp.sqrt(float(fan_in))

    def bn_raw(k, c):
        k1, k2, k3, k4 = jax.random.split(k, 4)
        gamma = 1.0 + 0.1 * jax.random.normal(k1, (c,), jnp.float32)
        beta = 0.1 * jax.random.normal(k2, (c,), jnp.float32)
        mean = 0.1 * jax.random.normal(k3, (c,), jnp.float32)
        var = jax.random.uniform(k4, (c,), jnp.float32, minval=0.5, maxval=1.5)
        return (gamma, beta, mean, var)

    w1 = conv_w(ks[0], in_planes, (in_planes, inner))               # conv1_0 (1x1)
    wg = conv_w(ks[1], 9 * Cg, (G, 3, 3, Cg, Cg))                   # conv3_0 (grouped 3x3)
    w3 = conv_w(ks[2], inner, (inner, out_planes))                  # conv1_1 (1x1)
    need_sc = (stride != 1) or (in_planes != out_planes)
    wsc = conv_w(ks[3], in_planes, (in_planes, out_planes)) if need_sc else None

    # Block-diagonal expansion of grouped weights: (G,3,3,Cg,Cg) -> (9, C, C) [in, out]
    wbd = jnp.zeros((3, 3, inner, inner), jnp.float32)
    for g in range(G):
        wbd = wbd.at[:, :, g * Cg:(g + 1) * Cg, g * Cg:(g + 1) * Cg].set(wg[g])
    wbd = wbd.reshape(9, inner, inner)

    return dict(
        w1=w1, wg=wg, wg_bd=wbd, w3=w3, wsc=wsc,
        bn1=bn_raw(ks[4], inner), bn2=bn_raw(ks[5], inner),
        bn3=bn_raw(ks[6], out_planes), bn0=bn_raw(ks[7], out_planes),
        cfg=dict(G=G, Cg=Cg, inner=inner, out_planes=out_planes,
                 stride=stride, in_planes=in_planes),
    )


# Pure-JAX f32 reference (for correctness checking only).
def reference_forward(params, x_nchw):
    cfg = params['cfg']
    eps = 1e-5
    x = jnp.transpose(x_nchw, (0, 2, 3, 1)).astype(jnp.float32)

    def bn(y, p):
        gamma, beta, mean, var = p
        return (y - mean) / jnp.sqrt(var + eps) * gamma + beta

    h = jnp.einsum('nhwc,cd->nhwd', x, params['w1'])
    h = jax.nn.relu(bn(h, params['bn1']))
    w_hwio = jnp.transpose(params['wg'], (1, 2, 3, 0, 4)).reshape(
        3, 3, cfg['Cg'], cfg['inner'])
    h = jax.lax.conv_general_dilated(
        h, w_hwio, (1, 1), 'SAME', feature_group_count=cfg['G'],
        dimension_numbers=('NHWC', 'HWIO', 'NHWC'))
    h = jax.nn.relu(bn(h, params['bn2']))
    h = bn(jnp.einsum('nhwc,cd->nhwd', h, params['w3']), params['bn3'])
    sc = x if params['wsc'] is None else jnp.einsum('nhwc,cd->nhwd', x, params['wsc'])
    out = jax.nn.relu(bn(h + sc, params['bn0']))
    return jnp.transpose(out, (0, 3, 1, 2))


if __name__ == "__main__":
    key = jax.random.PRNGKey(0)
    N, H, W = 4, 8, 8

    # Module-default channel widths (cardinality=32, width=4 -> inner=128, out=256)
    # so the output / intermediate channel dims are lane-dense (>= 128).
    # Config 1: projection shortcut (in_planes != inner*expansion).
    # Config 2: identity shortcut  (in_planes == inner*expansion).
    test_cfgs = [
        dict(in_planes=64, cardinality=32, bottleneck_width=4, expansion=2),
        dict(in_planes=256, cardinality=32, bottleneck_width=4, expansion=2),
    ]

    for tc in test_cfgs:
        key, kp, kx = jax.random.split(key, 3)
        params = init_params(kp, tc['in_planes'],
                             bottleneck_width=tc['bottleneck_width'],
                             cardinality=tc['cardinality'],
                             stride=1, expansion=tc['expansion'])
        fp = fold_params(params)
        x = jax.random.normal(kx, (N, tc['in_planes'], H, W), jnp.float32)

        out = jax.block_until_ready(basic_block_forward(fp, x))
        ref = reference_forward(params, x)
        assert out.shape == ref.shape == (N, params['cfg']['out_planes'], H, W)

        max_err = float(jnp.max(jnp.abs(out - ref)))
        mean_err = float(jnp.mean(jnp.abs(out - ref)))
        scale = float(jnp.max(jnp.abs(ref)))
        # bf16 matmul operands with f32 accumulation vs pure-f32 reference.
        assert max_err <= 4e-2 * scale + 4e-2, (max_err, scale)
        assert mean_err <= 4e-2, mean_err

    print("KERNEL_OK")
</pallas_src>

<mosaic_0001>
module attributes {stable_mosaic.version = 11 : i64} {
  func.func @_fused_block_kernel(%arg0: i32, %arg1: memref<256x64xbf16, #tpu.memory_space<vmem>>, %arg2: memref<64x128xbf16, #tpu.memory_space<vmem>>, %arg3: memref<1x128xf32, #tpu.memory_space<vmem>>, %arg4: memref<9x128x128xbf16, #tpu.memory_space<vmem>>, %arg5: memref<1x128xf32, #tpu.memory_space<vmem>>, %arg6: memref<128x256xbf16, #tpu.memory_space<vmem>>, %arg7: memref<64x256xbf16, #tpu.memory_space<vmem>>, %arg8: memref<1x256xf32, #tpu.memory_space<vmem>>, %arg9: memref<256x256xf32, #tpu.memory_space<vmem>>, %arg10: memref<336x128xbf16, #tpu.memory_space<vmem>>) attributes {dimension_semantics = [#tpu.dimension_semantics<parallel>], iteration_bounds = array<i64: 1>, scalar_prefetch = 0 : i64, scratch_operands = 1 : i64, tpu.core_type = #tpu.core_type<tc>, window_params = [{transform_indices = @transform_0, window_bounds = array<i64: 256, 64>}, {pipeline_mode = #tpu.pipeline_mode<synchronous>, transform_indices = @transform_1, window_bounds = array<i64: 64, 128>}, {pipeline_mode = #tpu.pipeline_mode<synchronous>, transform_indices = @transform_2, window_bounds = array<i64: 1, 128>}, {pipeline_mode = #tpu.pipeline_mode<synchronous>, transform_indices = @transform_3, window_bounds = array<i64: 9, 128, 128>}, {pipeline_mode = #tpu.pipeline_mode<synchronous>, transform_indices = @transform_4, window_bounds = array<i64: 1, 128>}, {pipeline_mode = #tpu.pipeline_mode<synchronous>, transform_indices = @transform_5, window_bounds = array<i64: 128, 256>}, {pipeline_mode = #tpu.pipeline_mode<synchronous>, transform_indices = @transform_6, window_bounds = array<i64: 64, 256>}, {pipeline_mode = #tpu.pipeline_mode<synchronous>, transform_indices = @transform_7, window_bounds = array<i64: 1, 256>}, {transform_indices = @transform_8, window_bounds = array<i64: 256, 256>}]} {
    %c0 = arith.constant 0 : index
    %c0_0 = arith.constant 0 : index
    %0 = vector.load %arg1[%c0, %c0_0] : memref<256x64xbf16, #tpu.memory_space<vmem>>, vector<256x64xbf16>
    %c0_1 = arith.constant 0 : index
    %c0_2 = arith.constant 0 : index
    %1 = vector.load %arg2[%c0_1, %c0_2] : memref<64x128xbf16, #tpu.memory_space<vmem>>, vector<64x128xbf16>
    %cst = arith.constant dense<0.000000e+00> : vector<256x128xf32>
    %2 = tpu.matmul %0, %1, %cst {dimension_numbers = #tpu.dot_dimension_numbers<[1], [0], [0], [1], [0, 0, 1, 1], [], []>} : vector<256x64xbf16>, vector<64x128xbf16>, vector<256x128xf32> -> vector<256x128xf32>
    %c0_3 = arith.constant 0 : index
    %c0_4 = arith.constant 0 : index
    %3 = vector.load %arg3[%c0_3, %c0_4] : memref<1x128xf32, #tpu.memory_space<vmem>>, vector<1x128xf32>
    %4 = vector.broadcast %3 : vector<1x128xf32> to vector<256x128xf32>
    %5 = arith.addf %2, %4 : vector<256x128xf32>
    %cst_5 = arith.constant 0.000000e+00 : f32
    %6 = vector.broadcast %cst_5 : f32 to vector<256x128xf32>
    %7 = arith.maximumf %5, %6 : vector<256x128xf32>
    %8 = arith.truncf %7 : vector<256x128xf32> to vector<256x128xbf16>
    %cst_6 = arith.constant 0.000000e+00 : bf16
    %9 = vector.broadcast %cst_6 : bf16 to vector<16x128xbf16>
    %c0_7 = arith.constant 0 : index
    %c0_8 = arith.constant 0 : index
    %10 = vector.load %arg10[%c0_7, %c0_8] : memref<336x128xbf16, #tpu.memory_space<vmem>>, vector<16x128xbf16>
    tpu.vector_store %arg10[%c0_7, %c0_8], %9 {strides = array<i32>} : memref<336x128xbf16, #tpu.memory_space<vmem>>, vector<16x128xbf16>,
    %11 = vector.extract_strided_slice %8 {offsets = [0, 0], sizes = [64, 128], strides = [1, 1]} : vector<256x128xbf16> to vector<64x128xbf16>
    %c16 = arith.constant 16 : index
    %c0_9 = arith.constant 0 : index
    %12 = vector.load %arg10[%c16, %c0_9] : memref<336x128xbf16, #tpu.memory_space<vmem>>, vector<64x128xbf16>
    tpu.vector_store %arg10[%c16, %c0_9], %11 {strides = array<i32>} : memref<336x128xbf16, #tpu.memory_space<vmem>>, vector<64x128xbf16>,
    %c80 = arith.constant 80 : index
    %c0_10 = arith.constant 0 : index
    %13 = vector.load %arg10[%c80, %c0_10] : memref<336x128xbf16, #tpu.memory_space<vmem>>, vector<16x128xbf16>
    tpu.vector_store %arg10[%c80, %c0_10], %9 {strides = array<i32>} : memref<336x128xbf16, #tpu.memory_space<vmem>>, vector<16x128xbf16>,
    %14 = vector.extract_strided_slice %8 {offsets = [64, 0], sizes = [64, 128], strides = [1, 1]} : vector<256x128xbf16> to vector<64x128xbf16>
    %c96 = arith.constant 96 : index
    %c0_11 = arith.constant 0 : index
    %15 = vector.load %arg10[%c96, %c0_11] : memref<336x128xbf16, #tpu.memory_space<vmem>>, vector<64x128xbf16>
    tpu.vector_store %arg10[%c96, %c0_11], %14 {strides = array<i32>} : memref<336x128xbf16, #tpu.memory_space<vmem>>, vector<64x128xbf16>,
    %c160 = arith.constant 160 : index
    %c0_12 = arith.constant 0 : index
    %16 = vector.load %arg10[%c160, %c0_12] : memref<336x128xbf16, #tpu.memory_space<vmem>>, vector<16x128xbf16>
    tpu.vector_store %arg10[%c160, %c0_12], %9 {strides = array<i32>} : memref<336x128xbf16, #tpu.memory_space<vmem>>, vector<16x128xbf16>,
    %17 = vector.extract_strided_slice %8 {offsets = [128, 0], sizes = [64, 128], strides = [1, 1]} : vector<256x128xbf16> to vector<64x128xbf16>
    %c176 = arith.constant 176 : index
    %c0_13 = arith.constant 0 : index
    %18 = vector.load %arg10[%c176, %c0_13] : memref<336x128xbf16, #tpu.memory_space<vmem>>, vector<64x128xbf16>
    tpu.vector_store %arg10[%c176, %c0_13], %17 {strides = array<i32>} : memref<336x128xbf16, #tpu.memory_space<vmem>>, vector<64x128xbf16>,
    %c240 = arith.constant 240 : index
    %c0_14 = arith.constant 0 : index
    %19 = vector.load %arg10[%c240, %c0_14] : memref<336x128xbf16, #tpu.memory_space<vmem>>, vector<16x128xbf16>
    tpu.vector_store %arg10[%c240, %c0_14], %9 {strides = array<i32>} : memref<336x128xbf16, #tpu.memory_space<vmem>>, vector<16x128xbf16>,
    %20 = vector.extract_strided_slice %8 {offsets = [192, 0], sizes = [64, 128], strides = [1, 1]} : vector<256x128xbf16> to vector<64x128xbf16>
    %c256 = arith.constant 256 : index
    %c0_15 = arith.constant 0 : index
    %21 = vector.load %arg10[%c256, %c0_15] : memref<336x128xbf16, #tpu.memory_space<vmem>>, vector<64x128xbf16>
    tpu.vector_store %arg10[%c256, %c0_15], %20 {strides = array<i32>} : memref<336x128xbf16, #tpu.memory_space<vmem>>, vector<64x128xbf16>,
    %c320 = arith.constant 320 : index
    %c0_16 = arith.constant 0 : index
    %22 = vector.load %arg10[%c320, %c0_16] : memref<336x128xbf16, #tpu.memory_space<vmem>>, vector<16x128xbf16>
    tpu.vector_store %arg10[%c320, %c0_16], %9 {strides = array<i32>} : memref<336x128xbf16, #tpu.memory_space<vmem>>, vector<16x128xbf16>,
    %23 = tpu.iota {dimensions = array<i32: 0>} : vector<304x128xi32>
    %c8_i32 = arith.constant 8 : i32
    %c0_i32 = arith.constant 0 : i32
    %24 = arith.cmpi eq, %c8_i32, %c0_i32 : i32
    %c1_i32 = arith.constant 1 : i32
    %25 = arith.select %24, %c1_i32, %c8_i32 : i32
    %26 = vector.broadcast %25 : i32 to vector<304x128xi32>
    %27 = arith.remsi %23, %26 : vector<304x128xi32>
    %c0_i32_17 = arith.constant 0 : i32
    %28 = vector.broadcast %c0_i32_17 : i32 to vector<304x128xi32>
    %29 = arith.cmpi ne, %27, %28 : vector<304x128xi32>
    %c0_i32_18 = arith.constant 0 : i32
    %30 = vector.broadcast %c0_i32_18 : i32 to vector<304x128xi32>
    %31 = arith.cmpi slt, %27, %30 : vector<304x128xi32>
    %c0_i32_19 = arith.constant 0 : i32
    %32 = arith.cmpi slt, %25, %c0_i32_19 : i32
    %33 = vector.broadcast %32 : i1 to vector<304x128xi1>
    %34 = vector.broadcast %33 : vector<304x128xi1> to vector<304x128xi1>
    %35 = arith.xori %31, %34 : vector<304x128xi1>
    %36 = arith.andi %35, %29 : vector<304x128xi1>
    %37 = vector.broadcast %25 : i32 to vector<304x128xi32>
    %38 = arith.addi %27, %37 : vector<304x128xi32>
    %39 = arith.select %36, %38, %27 : vector<304x128xi1>, vector<304x128xi32>
    %c8 = arith.constant 8 : index
    %c0_20 = arith.constant 0 : index
    %40 = vector.load %arg10[%c8, %c0_20] : memref<336x128xbf16, #tpu.memory_space<vmem>>, vector<304x128xbf16>
    %c1 = arith.constant 1 : index
    %c0_21 = arith.constant 0 : index
    %c0_22 = arith.constant 0 : index
    %41 = vector.load %arg4[%c1, %c0_21, %c0_22] : memref<9x128x128xbf16, #tpu.memory_space<vmem>>, vector<1x128x128xbf16>
    %42 = vector.shape_cast %41 : vector<1x128x128xbf16> to vector<128x128xbf16>
    %cst_23 = arith.constant dense<0.000000e+00> : vector<304x128xf32>
    %43 = tpu.matmul %40, %42, %cst_23 {dimension_numbers = #tpu.dot_dimension_numbers<[1], [0], [0], [1], [0, 0, 1, 1], [], []>} : vector<304x128xbf16>, vector<128x128xbf16>, vector<304x128xf32> -> vector<304x128xf32>
    %c24 = arith.constant 24 : index
    %c0_24 = arith.constant 0 : index
    %44 = vector.load %arg10[%c24, %c0_24] : memref<336x128xbf16, #tpu.memory_space<vmem>>, vector<304x128xbf16>
    %c7 = arith.constant 7 : index
    %c0_25 = arith.constant 0 : index
    %c0_26 = arith.constant 0 : index
    %45 = vector.load %arg4[%c7, %c0_25, %c0_26] : memref<9x128x128xbf16, #tpu.memory_space<vmem>>, vector<1x128x128xbf16>
    %46 = vector.shape_cast %45 : vector<1x128x128xbf16> to vector<128x128xbf16>
    %cst_27 = arith.constant dense<0.000000e+00> : vector<304x128xf32>
    %47 = tpu.matmul %44, %46, %cst_27 {dimension_numbers = #tpu.dot_dimension_numbers<[1], [0], [0], [1], [0, 0, 1, 1], [], []>} : vector<304x128xbf16>, vector<128x128xbf16>, vector<304x128xf32> -> vector<304x128xf32>
    %48 = arith.addf %43, %47 : vector<304x128xf32>
    %c0_i32_28 = arith.constant 0 : i32
    %49 = vector.broadcast %c0_i32_28 : i32 to vector<304x128xi32>
    %50 = arith.cmpi eq, %39, %49 : vector<304x128xi32>
    %c7_29 = arith.constant 7 : index
    %c0_30 = arith.constant 0 : index
    %51 = vector.load %arg10[%c7_29, %c0_30] : memref<336x128xbf16, #tpu.memory_space<vmem>>, vector<304x128xbf16>
    %c0_31 = arith.constant 0 : index
    %c0_32 = arith.constant 0 : index
    %c0_33 = arith.constant 0 : index
    %52 = vector.load %arg4[%c0_31, %c0_32, %c0_33] : memref<9x128x128xbf16, #tpu.memory_space<vmem>>, vector<1x128x128xbf16>
    %53 = vector.shape_cast %52 : vector<1x128x128xbf16> to vector<128x128xbf16>
    %cst_34 = arith.constant dense<0.000000e+00> : vector<304x128xf32>
    %54 = tpu.matmul %51, %53, %cst_34 {dimension_numbers = #tpu.dot_dimension_numbers<[1], [0], [0], [1], [0, 0, 1, 1], [], []>} : vector<304x128xbf16>, vector<128x128xbf16>, vector<304x128xf32> -> vector<304x128xf32>
    %c15 = arith.constant 15 : index
    %c0_35 = arith.constant 0 : index
    %55 = vector.load %arg10[%c15, %c0_35] : memref<336x128xbf16, #tpu.memory_space<vmem>>, vector<304x128xbf16>
    %c3 = arith.constant 3 : index
    %c0_36 = arith.constant 0 : index
    %c0_37 = arith.constant 0 : index
    %56 = vector.load %arg4[%c3, %c0_36, %c0_37] : memref<9x128x128xbf16, #tpu.memory_space<vmem>>, vector<1x128x128xbf16>
    %57 = vector.shape_cast %56 : vector<1x128x128xbf16> to vector<128x128xbf16>
    %cst_38 = arith.constant dense<0.000000e+00> : vector<304x128xf32>
    %58 = tpu.matmul %55, %57, %cst_38 {dimension_numbers = #tpu.dot_dimension_numbers<[1], [0], [0], [1], [0, 0, 1, 1], [], []>} : vector<304x128xbf16>, vector<128x128xbf16>, vector<304x128xf32> -> vector<304x128xf32>
    %59 = arith.addf %54, %58 : vector<304x128xf32>
    %c23 = arith.constant 23 : index
    %c0_39 = arith.constant 0 : index
    %60 = vector.load %arg10[%c23, %c0_39] : memref<336x128xbf16, #tpu.memory_space<vmem>>, vector<304x128xbf16>
    %c6 = arith.constant 6 : index
    %c0_40 = arith.constant 0 : index
    %c0_41 = arith.constant 0 : index
    %61 = vector.load %arg4[%c6, %c0_40, %c0_41] : memref<9x128x128xbf16, #tpu.memory_space<vmem>>, vector<1x128x128xbf16>
    %62 = vector.shape_cast %61 : vector<1x128x128xbf16> to vector<128x128xbf16>
    %cst_42 = arith.constant dense<0.000000e+00> : vector<304x128xf32>
    %63 = tpu.matmul %60, %62, %cst_42 {dimension_numbers = #tpu.dot_dimension_numbers<[1], [0], [0], [1], [0, 0, 1, 1], [], []>} : vector<304x128xbf16>, vector<128x128xbf16>, vector<304x128xf32> -> vector<304x128xf32>
    %64 = arith.addf %59, %63 : vector<304x128xf32>
    %cst_43 = arith.constant 0.000000e+00 : f32
    %65 = vector.broadcast %cst_43 : f32 to vector<304x128xf32>
    %66 = arith.select %50, %65, %64 : vector<304x128xi1>, vector<304x128xf32>
    %67 = arith.addf %48, %66 : vector<304x128xf32>
    %c7_i32 = arith.constant 7 : i32
    %68 = vector.broadcast %c7_i32 : i32 to vector<304x128xi32>
    %69 = arith.cmpi eq, %39, %68 : vector<304x128xi32>
    %c9 = arith.constant 9 : index
    %c0_44 = arith.constant 0 : index
    %70 = vector.load %arg10[%c9, %c0_44] : memref<336x128xbf16, #tpu.memory_space<vmem>>, vector<304x128xbf16>
    %c2 = arith.constant 2 : index
    %c0_45 = arith.constant 0 : index
    %c0_46 = arith.constant 0 : index
    %71 = vector.load %arg4[%c2, %c0_45, %c0_46] : memref<9x128x128xbf16, #tpu.memory_space<vmem>>, vector<1x128x128xbf16>
    %72 = vector.shape_cast %71 : vector<1x128x128xbf16> to vector<128x128xbf16>
    %cst_47 = arith.constant dense<0.000000e+00> : vector<304x128xf32>
    %73 = tpu.matmul %70, %72, %cst_47 {dimension_numbers = #tpu.dot_dimension_numbers<[1], [0], [0], [1], [0, 0, 1, 1], [], []>} : vector<304x128xbf16>, vector<128x128xbf16>, vector<304x128xf32> -> vector<304x128xf32>
    %c17 = arith.constant 17 : index
    %c0_48 = arith.constant 0 : index
    %74 = vector.load %arg10[%c17, %c0_48] : memref<336x128xbf16, #tpu.memory_space<vmem>>, vector<304x128xbf16>
    %c5 = arith.constant 5 : index
    %c0_49 = arith.constant 0 : index
    %c0_50 = arith.constant 0 : index
    %75 = vector.load %arg4[%c5, %c0_49, %c0_50] : memref<9x128x128xbf16, #tpu.memory_space<vmem>>, vector<1x128x128xbf16>
    %76 = vector.shape_cast %75 : vector<1x128x128xbf16> to vector<128x128xbf16>
    %cst_51 = arith.constant dense<0.000000e+00> : vector<304x128xf32>
    %77 = tpu.matmul %74, %76, %cst_51 {dimension_numbers = #tpu.dot_dimension_numbers<[1], [0], [0], [1], [0, 0, 1, 1], [], []>} : vector<304x128xbf16>, vector<128x128xbf16>, vector<304x128xf32> -> vector<304x128xf32>
    %78 = arith.addf %73, %77 : vector<304x128xf32>
    %c25 = arith.constant 25 : index
    %c0_52 = arith.constant 0 : index
    %79 = vector.load %arg10[%c25, %c0_52] : memref<336x128xbf16, #tpu.memory_space<vmem>>, vector<304x128xbf16>
    %c8_53 = arith.constant 8 : index
    %c0_54 = arith.constant 0 : index
    %c0_55 = arith.constant 0 : index
    %80 = vector.load %arg4[%c8_53, %c0_54, %c0_55] : memref<9x128x128xbf16, #tpu.memory_space<vmem>>, vector<1x128x128xbf16>
    %81 = vector.shape_cast %80 : vector<1x128x128xbf16> to vector<128x128xbf16>
    %cst_56 = arith.constant dense<0.000000e+00> : vector<304x128xf32>
    %82 = tpu.matmul %79, %81, %cst_56 {dimension_numbers = #tpu.dot_dimension_numbers<[1], [0], [0], [1], [0, 0, 1, 1], [], []>} : vector<304x128xbf16>, vector<128x128xbf16>, vector<304x128xf32> -> vector<304x128xf32>
    %83 = arith.addf %78, %82 : vector<304x128xf32>
    %cst_57 = arith.constant 0.000000e+00 : f32
    %84 = vector.broadcast %cst_57 : f32 to vector<304x128xf32>
    %85 = arith.select %69, %84, %83 : vector<304x128xi1>, vector<304x128xf32>
    %86 = arith.addf %67, %85 : vector<304x128xf32>
    %87 = vector.extract_strided_slice %86 {offsets = [0, 0], sizes = [64, 128], strides = [1, 1]} : vector<304x128xf32> to vector<64x128xf32>
    %88 = vector.extract_strided_slice %86 {offsets = [80, 0], sizes = [64, 128], strides = [1, 1]} : vector<304x128xf32> to vector<64x128xf32>
    %89 = vector.extract_strided_slice %86 {offsets = [160, 0], sizes = [64, 128], strides = [1, 1]} : vector<304x128xf32> to vector<64x128xf32>
    %90 = vector.extract_strided_slice %86 {offsets = [240, 0], sizes = [64, 128], strides = [1, 1]} : vector<304x128xf32> to vector<64x128xf32>
    %91 = tpu.concatenate %87, %88, %89, %90 in 0 : vector<64x128xf32>, vector<64x128xf32>, vector<64x128xf32>, vector<64x128xf32> -> vector<256x128xf32>
    %c4 = arith.constant 4 : index
    %c0_58 = arith.constant 0 : index
    %c0_59 = arith.constant 0 : index
    %92 = vector.load %arg4[%c4, %c0_58, %c0_59] : memref<9x128x128xbf16, #tpu.memory_space<vmem>>, vector<1x128x128xbf16>
    %93 = vector.shape_cast %92 : vector<1x128x128xbf16> to vector<128x128xbf16>
    %cst_60 = arith.constant dense<0.000000e+00> : vector<256x128xf32>
    %94 = tpu.matmul %8, %93, %cst_60 {dimension_numbers = #tpu.dot_dimension_numbers<[1], [0], [0], [1], [0, 0, 1, 1], [], []>} : vector<256x128xbf16>, vector<128x128xbf16>, vector<256x128xf32> -> vector<256x128xf32>
    %95 = arith.addf %91, %94 : vector<256x128xf32>
    %c0_61 = arith.constant 0 : index
    %c0_62 = arith.constant 0 : index
    %96 = vector.load %arg5[%c0_61, %c0_62] : memref<1x128xf32, #tpu.memory_space<vmem>>, vector<1x128xf32>
    %97 = vector.broadcast %96 : vector<1x128xf32> to vector<256x128xf32>
    %98 = arith.addf %95, %97 : vector<256x128xf32>
    %cst_63 = arith.constant 0.000000e+00 : f32
    %99 = vector.broadcast %cst_63 : f32 to vector<256x128xf32>
    %100 = arith.maximumf %98, %99 : vector<256x128xf32>
    %101 = arith.truncf %100 : vector<256x128xf32> to vector<256x128xbf16>
    %c0_64 = arith.constant 0 : index
    %c0_65 = arith.constant 0 : index
    %102 = vector.load %arg6[%c0_64, %c0_65] : memref<128x256xbf16, #tpu.memory_space<vmem>>, vector<128x256xbf16>
    %cst_66 = arith.constant dense<0.000000e+00> : vector<256x256xf32>
    %103 = tpu.matmul %101, %102, %cst_66 {dimension_numbers = #tpu.dot_dimension_numbers<[1], [0], [0], [1], [0, 0, 1, 1], [], []>} : vector<256x128xbf16>, vector<128x256xbf16>, vector<256x256xf32> -> vector<256x256xf32>
    %c0_67 = arith.constant 0 : index
    %c0_68 = arith.constant 0 : index
    %104 = vector.load %arg7[%c0_67, %c0_68] : memref<64x256xbf16, #tpu.memory_space<vmem>>, vector<64x256xbf16>
    %cst_69 = arith.constant dense<0.000000e+00> : vector<256x256xf32>
    %105 = tpu.matmul %0, %104, %cst_69 {dimension_numbers = #tpu.dot_dimension_numbers<[1], [0], [0], [1], [0, 0, 1, 1], [], []>} : vector<256x64xbf16>, vector<64x256xbf16>, vector<256x256xf32> -> vector<256x256xf32>
    %106 = arith.addf %103, %105 : vector<256x256xf32>
    %c0_70 = arith.constant 0 : index
    %c0_71 = arith.constant 0 : index
    %107 = vector.load %arg8[%c0_70, %c0_71] : memref<1x256xf32, #tpu.memory_space<vmem>>, vector<1x256xf32>
    %108 = vector.broadcast %107 : vector<1x256xf32> to vector<256x256xf32>
    %109 = arith.addf %106, %108 : vector<256x256xf32>
    %cst_72 = arith.constant 0.000000e+00 : f32
    %110 = vector.broadcast %cst_72 : f32 to vector<256x256xf32>
    %111 = arith.maximumf %109, %110 : vector<256x256xf32>
    %c0_73 = arith.constant 0 : index
    %c0_74 = arith.constant 0 : index
    %112 = vector.load %arg9[%c0_73, %c0_74] : memref<256x256xf32, #tpu.memory_space<vmem>>, vector<256x256xf32>
    tpu.vector_store %arg9[%c0_73, %c0_74], %111 {strides = array<i32>} : memref<256x256xf32, #tpu.memory_space<vmem>>, vector<256x256xf32>,
    return
  }
  func.func @transform_0(%arg0: i32) -> (i32, i32) {
    %c0_i32 = arith.constant 0 : i32
    %c0_i32_0 = arith.constant 0 : i32
    return %arg0, %c0_i32 : i32, i32
  }
  func.func @transform_1(%arg0: i32) -> (i32, i32) {
    %c0_i32 = arith.constant 0 : i32
    %c0_i32_0 = arith.constant 0 : i32
    %c0_i32_1 = arith.constant 0 : i32
    return %c0_i32, %c0_i32_0 : i32, i32
  }
  func.func @transform_2(%arg0: i32) -> (i32, i32) {
    %c0_i32 = arith.constant 0 : i32
    %c0_i32_0 = arith.constant 0 : i32
    %c0_i32_1 = arith.constant 0 : i32
    return %c0_i32, %c0_i32_0 : i32, i32
  }
  func.func @transform_3(%arg0: i32) -> (i32, i32, i32) {
    %c0_i32 = arith.constant 0 : i32
    %c0_i32_0 = arith.constant 0 : i32
    %c0_i32_1 = arith.constant 0 : i32
    %c0_i32_2 = arith.constant 0 : i32
    return %c0_i32, %c0_i32_0, %c0_i32_1 : i32, i32, i32
  }
  func.func @transform_4(%arg0: i32) -> (i32, i32) {
    %c0_i32 = arith.constant 0 : i32
    %c0_i32_0 = arith.constant 0 : i32
    %c0_i32_1 = arith.constant 0 : i32
    return %c0_i32, %c0_i32_0 : i32, i32
  }
  func.func @transform_5(%arg0: i32) -> (i32, i32) {
    %c0_i32 = arith.constant 0 : i32
    %c0_i32_0 = arith.constant 0 : i32
    %c0_i32_1 = arith.constant 0 : i32
    return %c0_i32, %c0_i32_0 : i32, i32
  }
  func.func @transform_6(%arg0: i32) -> (i32, i32) {
    %c0_i32 = arith.constant 0 : i32
    %c0_i32_0 = arith.constant 0 : i32
    %c0_i32_1 = arith.constant 0 : i32
    return %c0_i32, %c0_i32_0 : i32, i32
  }
  func.func @transform_7(%arg0: i32) -> (i32, i32) {
    %c0_i32 = arith.constant 0 : i32
    %c0_i32_0 = arith.constant 0 : i32
    %c0_i32_1 = arith.constant 0 : i32
    return %c0_i32, %c0_i32_0 : i32, i32
  }
  func.func @transform_8(%arg0: i32) -> (i32, i32) {
    %c0_i32 = arith.constant 0 : i32
    %c0_i32_0 = arith.constant 0 : i32
    return %arg0, %c0_i32 : i32, i32
  }
}

</mosaic_0001>

<llo_original>
// kernel: tpu_custom_call.1
$region0: #{tpu_custom_call.1}
  #allocation0 [shape = 'u32[]', space=smem, size = 0x4, offset = 0x4, fixed_abs, tag = 'smem constant byte address 0x4 - core index']
  #allocation1 [shape = 'u32[144,128]{1,0:T(1,128)}', space=vmem, size = 0x12000, scoped, tag = 'internal scratch']
  #allocation2 [shape = 'bf16[336,128]{1,0:T(8,128)(2,1)}', space=vmem, size = 0x15000, scoped, tag = 'scratch operand']
  %s0 = inlined_call_operand.vmem [shape: bf16[256,64], index: 0, kind: input, shape index: {}]
  %s1 = inlined_call_operand.hbm [shape: bf16[64,128], index: 1, kind: input, shape index: {}]
  %s2 = inlined_call_operand.vmem [shape: f32[1,128], index: 2, kind: input, shape index: {}]
  %s3 = inlined_call_operand.hbm [shape: bf16[9,128,128], index: 3, kind: input, shape index: {}]
  %s4 = inlined_call_operand.vmem [shape: f32[1,128], index: 4, kind: input, shape index: {}]
  %s5 = inlined_call_operand.vmem [shape: bf16[128,256], index: 5, kind: input, shape index: {}]
  %s6 = inlined_call_operand.vmem [shape: bf16[64,256], index: 6, kind: input, shape index: {}]
  %s7 = inlined_call_operand.vmem [shape: f32[1,256], index: 7, kind: input, shape index: {}]
  %s8 = inlined_call_operand.hbm [shape: f32[256,256], index: 8, kind: output, shape index: {}]
  %s9 = sld [smem:[#allocation0]]
  $region50: #{tpu_custom_call.1} parent=0
    _
  %s11 = ssub.s32 1, %s9
  %s12 = scalar_select 0, %s11, %s9
  $region1: #{tpu_custom_call.1} parent=0
    #allocation3 [shape = 'u8[16384]{0}', space=vmem, size = 0x4000, scoped, tag = 'input window, operand 1, single buffered']
    #allocation4 [shape = 's32[1]{0}', space=sflag, size = 0x4, scoped, tag = 'scoped memory for tpu_custom_call.1']
    #allocation5 [shape = 's32[1]{0}', space=sflag, size = 0x4, scoped, tag = 'scoped memory for tpu_custom_call.1']
    #allocation6 [shape = 'u8[294912]{0}', space=vmem, size = 0x48000, scoped, tag = 'input window, operand 3, single buffered']
    #allocation7 [shape = 's32[1]{0}', space=sflag, size = 0x4, scoped, tag = 'scoped memory for tpu_custom_call.1']
    #allocation8 [shape = 'u8[262144]{0}', space=vmem, size = 0x40000, scoped, tag = 'output window, operand 0, single buffered']
    %13 = vsyncpa [#allocation4], 0
    %14 = vsyncpa [#allocation7], 0
    %15 = vsyncpa [#allocation5], 0
    // Predicated region
    $region2: #{tpu_custom_call.1} parent=1 // pred_check
      _
    $region3: #{tpu_custom_call.1} parent=1 // pred_check_branch
      %17 = sbr.rel (0) target = $region5
    $region4: #{tpu_custom_call.1} parent=1 // pred_region
      _
    $region5: #{tpu_custom_call.1} parent=1 // pred_fallthru
      _
    // Predicated region
    $region6: #{tpu_custom_call.1} parent=1 // pred_check
      _
    $region7: #{tpu_custom_call.1} parent=1 // pred_check_branch
      %19 = sbr.rel (0) target = $region9
    $region8: #{tpu_custom_call.1} parent=1 // pred_region
      %s21 = ssub.s32 512, 512
      %22 = vsyncadd [#allocation4], %s21
      %s23 = sshll.u32 [#allocation3], 4
      %s24 = int_to_ptr.vmem [resolvable:$true] %s23
      %29 = dma.hbm_to_vmem [thread:$0]  %s1, 512, %s24, [#allocation4], 64, 64, 4
    $region9: #{tpu_custom_call.1} parent=1 // pred_fallthru
      _
    // Predicated region
    $region10: #{tpu_custom_call.1} parent=1 // pred_check
      _
    $region11: #{tpu_custom_call.1} parent=1 // pred_check_branch
      %31 = sbr.rel (0) target = $region13
    $region12: #{tpu_custom_call.1} parent=1 // pred_region
      _
    $region13: #{tpu_custom_call.1} parent=1 // pred_fallthru
      _
    // Predicated region
    $region14: #{tpu_custom_call.1} parent=1 // pred_check
      _
    $region15: #{tpu_custom_call.1} parent=1 // pred_check_branch
      %33 = sbr.rel (0) target = $region17
    $region16: #{tpu_custom_call.1} parent=1 // pred_region
      %s35 = ssub.s32 9216, 9216
      %36 = vsyncadd [#allocation7], %s35
      %s37 = sshll.u32 [#allocation6], 4
      %s38 = int_to_ptr.vmem [resolvable:$true] %s37
      %43 = dma.hbm_to_vmem [thread:$0]  %s3, 9216, %s38, [#allocation7], 64, 64, 4
    $region17: #{tpu_custom_call.1} parent=1 // pred_fallthru
      _
    // Predicated region
    $region18: #{tpu_custom_call.1} parent=1 // pred_check
      _
    $region19: #{tpu_custom_call.1} parent=1 // pred_check_branch
      %45 = sbr.rel (0) target = $region21
    $region20: #{tpu_custom_call.1} parent=1 // pred_region
      _
    $region21: #{tpu_custom_call.1} parent=1 // pred_fallthru
      _
    // Predicated region
    $region22: #{tpu_custom_call.1} parent=1 // pred_check
      _
    $region23: #{tpu_custom_call.1} parent=1 // pred_check_branch
      %47 = sbr.rel (0) target = $region25
    $region24: #{tpu_custom_call.1} parent=1 // pred_region
      _
    $region25: #{tpu_custom_call.1} parent=1 // pred_fallthru
      _
    // Predicated region
    $region26: #{tpu_custom_call.1} parent=1 // pred_check
      _
    $region27: #{tpu_custom_call.1} parent=1 // pred_check_branch
      %49 = sbr.rel (0) target = $region29
    $region28: #{tpu_custom_call.1} parent=1 // pred_region
      _
    $region29: #{tpu_custom_call.1} parent=1 // pred_fallthru
      _
    // Predicated region
    $region30: #{tpu_custom_call.1} parent=1 // pred_check
      _
    $region31: #{tpu_custom_call.1} parent=1 // pred_check_branch
      %51 = sbr.rel (0) target = $region33
    $region32: #{tpu_custom_call.1} parent=1 // pred_region
      _
    $region33: #{tpu_custom_call.1} parent=1 // pred_fallthru
      _
    // Predicated region
    $region34: #{tpu_custom_call.1} parent=1 // pred_check
      _
    $region35: #{tpu_custom_call.1} parent=1 // pred_check_branch
      %53 = sbr.rel (0) target = $region37
    $region36: #{tpu_custom_call.1} parent=1 // pred_region
      %54 = dma.done [#allocation4], 512
    $region37: #{tpu_custom_call.1} parent=1 // pred_fallthru
      _
    // Predicated region
    $region38: #{tpu_custom_call.1} parent=1 // pred_check
      _
    $region39: #{tpu_custom_call.1} parent=1 // pred_check_branch
      %56 = sbr.rel (0) target = $region41
    $region40: #{tpu_custom_call.1} parent=1 // pred_region
      %57 = dma.done [#allocation7], 9216
    $region41: #{tpu_custom_call.1} parent=1 // pred_fallthru
      _
    %v59 = vld [vmem:[%s0] sm:$0xf]
    %v60 = vld [vmem:[%s0 + $0x4] sm:$0xf]
    %v61 = vld [vmem:[%s0 + $0x8] sm:$0xf]
    %v62 = vld [vmem:[%s0 + $0xc] sm:$0xf]
    %v63 = vld [vmem:[%s0 + $0x10] sm:$0xf]
    %v64 = vld [vmem:[%s0 + $0x14] sm:$0xf]
    %v65 = vld [vmem:[%s0 + $0x18] sm:$0xf]
    %v66 = vld [vmem:[%s0 + $0x1c] sm:$0xf]
    %v67 = vld [vmem:[%s0 + $0x20] sm:$0xf]
    %v68 = vld [vmem:[%s0 + $0x24] sm:$0xf]
    %v69 = vld [vmem:[%s0 + $0x28] sm:$0xf]
    %v70 = vld [vmem:[%s0 + $0x2c] sm:$0xf]
    %v71 = vld [vmem:[%s0 + $0x30] sm:$0xf]
    %v72 = vld [vmem:[%s0 + $0x34] sm:$0xf]
    %v73 = vld [vmem:[%s0 + $0x38] sm:$0xf]
    %v74 = vld [vmem:[%s0 + $0x3c] sm:$0xf]
    %v75 = vld [vmem:[%s0 + $0x40] sm:$0xf]
    %v76 = vld [vmem:[%s0 + $0x44] sm:$0xf]
    %v77 = vld [vmem:[%s0 + $0x48] sm:$0xf]
    %v78 = vld [vmem:[%s0 + $0x4c] sm:$0xf]
    %v79 = vld [vmem:[%s0 + $0x50] sm:$0xf]
    %v80 = vld [vmem:[%s0 + $0x54] sm:$0xf]
    %v81 = vld [vmem:[%s0 + $0x58] sm:$0xf]
    %v82 = vld [vmem:[%s0 + $0x5c] sm:$0xf]
    %v83 = vld [vmem:[%s0 + $0x60] sm:$0xf]
    %v84 = vld [vmem:[%s0 + $0x64] sm:$0xf]
    %v85 = vld [vmem:[%s0 + $0x68] sm:$0xf]
    %v86 = vld [vmem:[%s0 + $0x6c] sm:$0xf]
    %v87 = vld [vmem:[%s0 + $0x70] sm:$0xf]
    %v88 = vld [vmem:[%s0 + $0x74] sm:$0xf]
    %v89 = vld [vmem:[%s0 + $0x78] sm:$0xf]
    %v90 = vld [vmem:[%s0 + $0x7c] sm:$0xf]
    %v91 = vld [vmem:[#allocation3] sm:$0xf]
    %v92 = vld [vmem:[#allocation3 + $0x4] sm:$0xf]
    %v93 = vld [vmem:[#allocation3 + $0x8] sm:$0xf]
    %v94 = vld [vmem:[#allocation3 + $0xc] sm:$0xf]
    %v95 = vld [vmem:[#allocation3 + $0x10] sm:$0xf]
    %v96 = vld [vmem:[#allocation3 + $0x14] sm:$0xf]
    %v97 = vld [vmem:[#allocation3 + $0x18] sm:$0xf]
    %v98 = vld [vmem:[#allocation3 + $0x1c] sm:$0xf]
    %v99 = vld [vmem:[%s2] sm:$0x1]
    %v101 = vlaneseq
    %v102 = vshrl.u32 %v101, 7
    %v103 = vsub.s32 0, %v102
    %v104 = vrot.slane %v99, %v103
    %v138 = vunpack.c.l.b16 %v59
    %v139 = vunpack.c.l.b16 %v60
    %v140 = vunpack.c.l.b16 %v61
    %v141 = vunpack.c.l.b16 %v62
    %v142 = vunpack.c.l.b16 %v63
    %v143 = vunpack.c.l.b16 %v64
    %v144 = vunpack.c.l.b16 %v65
    %v145 = vunpack.c.l.b16 %v66
    %v146 = vunpack.c.l.b16 %v67
    %v147 = vunpack.c.l.b16 %v68
    %v148 = vunpack.c.l.b16 %v69
    %v149 = vunpack.c.l.b16 %v70
    %v150 = vunpack.c.l.b16 %v71
    %v151 = vunpack.c.l.b16 %v72
    %v152 = vunpack.c.l.b16 %v73
    %v153 = vunpack.c.l.b16 %v74
    %v154 = vunpack.c.l.b16 %v75
    %v155 = vunpack.c.l.b16 %v76
    %v156 = vunpack.c.l.b16 %v77
    %v157 = vunpack.c.l.b16 %v78
    %v158 = vunpack.c.l.b16 %v79
    %v159 = vunpack.c.l.b16 %v80
    %v160 = vunpack.c.l.b16 %v81
    %v161 = vunpack.c.l.b16 %v82
    %v162 = vunpack.c.l.b16 %v83
    %v163 = vunpack.c.l.b16 %v84
    %v164 = vunpack.c.l.b16 %v85
    %v165 = vunpack.c.l.b16 %v86
    %v166 = vunpack.c.l.b16 %v87
    %v167 = vunpack.c.l.b16 %v88
    %v168 = vunpack.c.l.b16 %v89
    %v169 = vunpack.c.l.b16 %v90
    %v170 = vpack.c.b16 %v139, %v138
    %v171 = vpack.c.b16 %v141, %v140
    %v172 = vpack.c.b16 %v143, %v142
    %v173 = vpack.c.b16 %v145, %v144
    %v174 = vpack.c.b16 %v147, %v146
    %v175 = vpack.c.b16 %v149, %v148
    %v176 = vpack.c.b16 %v151, %v150
    %v177 = vpack.c.b16 %v153, %v152
    %v178 = vpack.c.b16 %v155, %v154
    %v179 = vpack.c.b16 %v157, %v156
    %v180 = vpack.c.b16 %v159, %v158
    %v181 = vpack.c.b16 %v161, %v160
    %v182 = vpack.c.b16 %v163, %v162
    %v183 = vpack.c.b16 %v165, %v164
    %v184 = vpack.c.b16 %v167, %v166
    %v185 = vpack.c.b16 %v169, %v168
    %v194 = vunpack.c.l.b16 %v91
    %v195 = vunpack.c.l.b16 %v92
    %v196 = vunpack.c.l.b16 %v93
    %v197 = vunpack.c.l.b16 %v94
    %v198 = vunpack.c.l.b16 %v95
    %v199 = vunpack.c.l.b16 %v96
    %v200 = vunpack.c.l.b16 %v97
    %v201 = vunpack.c.l.b16 %v98
    %v202 = vpack.c.b16 %v195, %v194
    %v203 = vpack.c.b16 %v197, %v196
    %v204 = vpack.c.b16 %v199, %v198
    %v205 = vpack.c.b16 %v201, %v200
    %vm210 = vcmask 523264
    %v212 = vsel %vm210, %v170, 0
    %v215 = vsel %vm210, %v171, 0
    %v218 = vsel %vm210, %v172, 0
    %v221 = vsel %vm210, %v173, 0
    %v224 = vsel %vm210, %v174, 0
    %v227 = vsel %vm210, %v175, 0
    %v230 = vsel %vm210, %v176, 0
    %v233 = vsel %vm210, %v177, 0
    %v236 = vsel %vm210, %v178, 0
    %v239 = vsel %vm210, %v179, 0
    %v242 = vsel %vm210, %v180, 0
    %v245 = vsel %vm210, %v181, 0
    %v248 = vsel %vm210, %v182, 0
    %v251 = vsel %vm210, %v183, 0
    %v254 = vsel %vm210, %v184, 0
    %v257 = vsel %vm210, %v185, 0
    %259 = vmatprep.subr.bf16.mxu0 0
    %260 = vmatpush1.bf16.msra.mxu0 0
    %261 = vmatprep.subr.bf16.mxu0 0
    %262 = vmatpush1.bf16.msra.mxu0 0
    %263 = vmatprep.subr.bf16.mxu0 0
    %264 = vmatpush1.bf16.msra.mxu0 0
    %265 = vmatprep.subr.bf16.mxu0 0
    %266 = vmatpush1.bf16.msra.mxu0 0
    %267 = vmatprep.subr.bf16.mxu0 0
    %268 = vmatpush1.bf16.msra.mxu0 %v205
    %269 = vmatprep.subr.bf16.mxu0 0
    %270 = vmatpush1.bf16.msra.mxu0 %v204
    %271 = vmatprep.subr.bf16.mxu0 0
    %272 = vmatpush1.bf16.msra.mxu0 %v203
    %273 = vmatprep.subr.bf16.mxu0 0
    %274 = vmatpush1.bf16.msra.mxu0 %v202
    %275 = vmatprep.subr.bf16.mxu0 0
    %276 = vmatpush2.bf16.msra.mxu0 0
    %277 = vmatprep.subr.bf16.mxu0 0
    %278 = vmatpush2.bf16.msra.mxu0 0
    %279 = vmatprep.subr.bf16.mxu0 0
    %280 = vmatpush2.bf16.msra.mxu0 0
    %281 = vmatprep.subr.bf16.mxu0 0
    %282 = vmatpush2.bf16.msra.mxu0 0
    %283 = vmatprep.subr.bf16.mxu0 0
    %284 = vmatpush2.bf16.msra.mxu0 0
    %285 = vmatprep.subr.bf16.mxu0 0
    %286 = vmatpush2.bf16.msra.mxu0 0
    %287 = vmatprep.subr.bf16.mxu0 0
    %288 = vmatpush2.bf16.msra.mxu0 0
    %289 = vmatprep.subr.bf16.mxu0 0
    %290 = vmatpush2.bf16.msra.mxu0 0
    %291 = vmatprep.mubr.bf16.mxu0 0
    %292 = vmatmul.mubr.bf16.gmra.mxu0 %v212
    %v293 = vpop.f32.mrf.mxu0
    %v294 = vadd.f32 %v104, %v293
    %v295 = vpop.f32.mrf.mxu0
    %v296 = vpop.f32.mrf.mxu0
    %v297 = vadd.f32 %v104, %v296
    %v298 = vpop.f32.mrf.mxu0
    %299 = vmatprep.mubr.bf16.mxu0 0
    %300 = vmatmul.mubr.bf16.gmra.mxu0 %v215
    %v301 = vpop.f32.mrf.mxu0
    %v302 = vadd.f32 %v104, %v301
    %v303 = vpop.f32.mrf.mxu0
    %v304 = vpop.f32.mrf.mxu0
    %v305 = vadd.f32 %v104, %v304
    %v306 = vpop.f32.mrf.mxu0
    %307 = vmatprep.mubr.bf16.mxu0 0
    %308 = vmatmul.mubr.bf16.gmra.mxu0 %v218
    %v309 = vpop.f32.mrf.mxu0
    %v310 = vadd.f32 %v104, %v309
    %v311 = vpop.f32.mrf.mxu0
    %v312 = vpop.f32.mrf.mxu0
    %v313 = vadd.f32 %v104, %v312
    %v314 = vpop.f32.mrf.mxu0
    %315 = vmatprep.mubr.bf16.mxu0 0
    %316 = vmatmul.mubr.bf16.gmra.mxu0 %v221
    %v317 = vpop.f32.mrf.mxu0
    %v318 = vadd.f32 %v104, %v317
    %v319 = vpop.f32.mrf.mxu0
    %v320 = vpop.f32.mrf.mxu0
    %v321 = vadd.f32 %v104, %v320
    %v322 = vpop.f32.mrf.mxu0
    %323 = vmatprep.mubr.bf16.mxu0 0
    %324 = vmatmul.mubr.bf16.gmra.mxu0 %v224
    %v325 = vpop.f32.mrf.mxu0
    %v326 = vadd.f32 %v104, %v325
    %v327 = vpop.f32.mrf.mxu0
    %v328 = vpop.f32.mrf.mxu0
    %v329 = vadd.f32 %v104, %v328
    %v330 = vpop.f32.mrf.mxu0
    %331 = vmatprep.mubr.bf16.mxu0 0
    %332 = vmatmul.mubr.bf16.gmra.mxu0 %v227
    %v333 = vpop.f32.mrf.mxu0
    %v334 = vadd.f32 %v104, %v333
    %v335 = vpop.f32.mrf.mxu0
    %v336 = vpop.f32.mrf.mxu0
    %v337 = vadd.f32 %v104, %v336
    %v338 = vpop.f32.mrf.mxu0
    %339 = vmatprep.mubr.bf16.mxu0 0
    %340 = vmatmul.mubr.bf16.gmra.mxu0 %v230
    %v341 = vpop.f32.mrf.mxu0
    %v342 = vadd.f32 %v104, %v341
    %v343 = vpop.f32.mrf.mxu0
    %v344 = vpop.f32.mrf.mxu0
    %v345 = vadd.f32 %v104, %v344
    %v346 = vpop.f32.mrf.mxu0
    %347 = vmatprep.mubr.bf16.mxu0 0
    %348 = vmatmul.mubr.bf16.gmra.mxu0 %v233
    %v349 = vpop.f32.mrf.mxu0
    %v350 = vadd.f32 %v104, %v349
    %v351 = vpop.f32.mrf.mxu0
    %v352 = vpop.f32.mrf.mxu0
    %v353 = vadd.f32 %v104, %v352
    %v354 = vpop.f32.mrf.mxu0
    %355 = vmatprep.mubr.bf16.mxu0 0
    %356 = vmatmul.mubr.bf16.gmra.mxu0 %v236
    %v357 = vpop.f32.mrf.mxu0
    %v358 = vadd.f32 %v104, %v357
    %v359 = vpop.f32.mrf.mxu0
    %v360 = vpop.f32.mrf.mxu0
    %v361 = vadd.f32 %v104, %v360
    %v362 = vpop.f32.mrf.mxu0
    %363 = vmatprep.mubr.bf16.mxu0 0
    %364 = vmatmul.mubr.bf16.gmra.mxu0 %v239
    %v365 = vpop.f32.mrf.mxu0
    %v366 = vadd.f32 %v104, %v365
    %v367 = vpop.f32.mrf.mxu0
    %v368 = vpop.f32.mrf.mxu0
    %v369 = vadd.f32 %v104, %v368
    %v370 = vpop.f32.mrf.mxu0
    %371 = vmatprep.mubr.bf16.mxu0 0
    %372 = vmatmul.mubr.bf16.gmra.mxu0 %v242
    %v373 = vpop.f32.mrf.mxu0
    %v374 = vadd.f32 %v104, %v373
    %v375 = vpop.f32.mrf.mxu0
    %v376 = vpop.f32.mrf.mxu0
    %v377 = vadd.f32 %v104, %v376
    %v378 = vpop.f32.mrf.mxu0
    %379 = vmatprep.mubr.bf16.mxu0 0
    %380 = vmatmul.mubr.bf16.gmra.mxu0 %v245
    %v381 = vpop.f32.mrf.mxu0
    %v382 = vadd.f32 %v104, %v381
    %v383 = vpop.f32.mrf.mxu0
    %v384 = vpop.f32.mrf.mxu0
    %v385 = vadd.f32 %v104, %v384
    %v386 = vpop.f32.mrf.mxu0
    %387 = vmatprep.mubr.bf16.mxu0 0
    %388 = vmatmul.mubr.bf16.gmra.mxu0 %v248
    %v389 = vpop.f32.mrf.mxu0
    %v390 = vadd.f32 %v104, %v389
    %v391 = vpop.f32.mrf.mxu0
    %v392 = vpop.f32.mrf.mxu0
    %v393 = vadd.f32 %v104, %v392
    %v394 = vpop.f32.mrf.mxu0
    %395 = vmatprep.mubr.bf16.mxu0 0
    %396 = vmatmul.mubr.bf16.gmra.mxu0 %v251
    %v397 = vpop.f32.mrf.mxu0
    %v398 = vadd.f32 %v104, %v397
    %v399 = vpop.f32.mrf.mxu0
    %v400 = vpop.f32.mrf.mxu0
    %v401 = vadd.f32 %v104, %v400
    %v402 = vpop.f32.mrf.mxu0
    %403 = vmatprep.mubr.bf16.mxu0 0
    %404 = vmatmul.mubr.bf16.gmra.mxu0 %v254
    %v405 = vpop.f32.mrf.mxu0
    %v406 = vadd.f32 %v104, %v405
    %v407 = vpop.f32.mrf.mxu0
    %v408 = vpop.f32.mrf.mxu0
    %v409 = vadd.f32 %v104, %v408
    %v410 = vpop.f32.mrf.mxu0
    %411 = vmatprep.mubr.bf16.mxu0 0
    %412 = vmatmul.mubr.bf16.gmra.mxu0 %v257
    %v413 = vpop.f32.mrf.mxu0
    %v414 = vadd.f32 %v104, %v413
    %v415 = vpop.f32.mrf.mxu0
    %v416 = vpop.f32.mrf.mxu0
    %v417 = vadd.f32 %v104, %v416
    %v418 = vpop.f32.mrf.mxu0
    %419 = vdwg.mxu0
    %v420 = vmax.f32 %v294, 0.0
    %v421 = vmax.f32 %v297, 0.0
    %v422 = vmax.f32 %v302, 0.0
    %v423 = vmax.f32 %v305, 0.0
    %v424 = vmax.f32 %v310, 0.0
    %v425 = vmax.f32 %v313, 0.0
    %v426 = vmax.f32 %v318, 0.0
    %v427 = vmax.f32 %v321, 0.0
    %v428 = vmax.f32 %v326, 0.0
    %v429 = vmax.f32 %v329, 0.0
    %v430 = vmax.f32 %v334, 0.0
    %v431 = vmax.f32 %v337, 0.0
    %v432 = vmax.f32 %v342, 0.0
    %v433 = vmax.f32 %v345, 0.0
    %v434 = vmax.f32 %v350, 0.0
    %v435 = vmax.f32 %v353, 0.0
    %v436 = vmax.f32 %v358, 0.0
    %v437 = vmax.f32 %v361, 0.0
    %v438 = vmax.f32 %v366, 0.0
    %v439 = vmax.f32 %v369, 0.0
    %v440 = vmax.f32 %v374, 0.0
    %v441 = vmax.f32 %v377, 0.0
    %v442 = vmax.f32 %v382, 0.0
    %v443 = vmax.f32 %v385, 0.0
    %v444 = vmax.f32 %v390, 0.0
    %v445 = vmax.f32 %v393, 0.0
    %v446 = vmax.f32 %v398, 0.0
    %v447 = vmax.f32 %v401, 0.0
    %v448 = vmax.f32 %v406, 0.0
    %v449 = vmax.f32 %v409, 0.0
    %v450 = vmax.f32 %v414, 0.0
    %v451 = vmax.f32 %v417, 0.0
    %v452 = vpack.c.bf16 %v421, %v420
    %v453 = vpack.c.bf16 %v423, %v422
    %v454 = vpack.c.bf16 %v425, %v424
    %v455 = vpack.c.bf16 %v427, %v426
    %v456 = vpack.c.bf16 %v429, %v428
    %v457 = vpack.c.bf16 %v431, %v430
    %v458 = vpack.c.bf16 %v433, %v432
    %v459 = vpack.c.bf16 %v435, %v434
    %v460 = vpack.c.bf16 %v437, %v436
    %v461 = vpack.c.bf16 %v439, %v438
    %v462 = vpack.c.bf16 %v441, %v440
    %v463 = vpack.c.bf16 %v443, %v442
    %v464 = vpack.c.bf16 %v445, %v444
    %v465 = vpack.c.bf16 %v447, %v446
    %v466 = vpack.c.bf16 %v449, %v448
    %v467 = vpack.c.bf16 %v451, %v450
    %468 = vst [vmem:[#allocation2] sm:$0xf] 0
    %469 = vst [vmem:[#allocation2 + $0x4] sm:$0xf] 0
    %v474 = vunpack.c.l.b16 %v452
    %v475 = vunpack.c.h.b16 %v452
    %v476 = vunpack.c.l.b16 %v453
    %v477 = vunpack.c.h.b16 %v453
    %v478 = vunpack.c.l.b16 %v454
    %v479 = vunpack.c.h.b16 %v454
    %v480 = vunpack.c.l.b16 %v455
    %v481 = vunpack.c.h.b16 %v455
    %v482 = vpack.c.b16 %v474, %v474
    %v483 = vpack.c.b16 %v475, %v475
    %v484 = vpack.c.b16 %v476, %v476
    %v485 = vpack.c.b16 %v477, %v477
    %v486 = vpack.c.b16 %v478, %v478
    %v487 = vpack.c.b16 %v479, %v479
    %v488 = vpack.c.b16 %v480, %v480
    %v489 = vpack.c.b16 %v481, %v481
    %498 = vst [vmem:[#allocation2 + $0x8] sm:$0xf] %v482
    %499 = vst [vmem:[#allocation2 + $0xc] sm:$0xf] %v483
    %500 = vst [vmem:[#allocation2 + $0x10] sm:$0xf] %v484
    %501 = vst [vmem:[#allocation2 + $0x14] sm:$0xf] %v485
    %502 = vst [vmem:[#allocation2 + $0x18] sm:$0xf] %v486
    %503 = vst [vmem:[#allocation2 + $0x1c] sm:$0xf] %v487
    %504 = vst [vmem:[#allocation2 + $0x20] sm:$0xf] %v488
    %505 = vst [vmem:[#allocation2 + $0x24] sm:$0xf] %v489
    %506 = vst [vmem:[#allocation2 + $0x28] sm:$0xf] 0
    %507 = vst [vmem:[#allocation2 + $0x2c] sm:$0xf] 0
    %v512 = vunpack.c.l.b16 %v456
    %v513 = vunpack.c.h.b16 %v456
    %v514 = vunpack.c.l.b16 %v457
    %v515 = vunpack.c.h.b16 %v457
    %v516 = vunpack.c.l.b16 %v458
    %v517 = vunpack.c.h.b16 %v458
    %v518 = vunpack.c.l.b16 %v459
    %v519 = vunpack.c.h.b16 %v459
    %v520 = vpack.c.b16 %v512, %v512
    %v521 = vpack.c.b16 %v513, %v513
    %v522 = vpack.c.b16 %v514, %v514
    %v523 = vpack.c.b16 %v515, %v515
    %v524 = vpack.c.b16 %v516, %v516
    %v525 = vpack.c.b16 %v517, %v517
    %v526 = vpack.c.b16 %v518, %v518
    %v527 = vpack.c.b16 %v519, %v519
    %536 = vst [vmem:[#allocation2 + $0x30] sm:$0xf] %v520
    %537 = vst [vmem:[#allocation2 + $0x34] sm:$0xf] %v521
    %538 = vst [vmem:[#allocation2 + $0x38] sm:$0xf] %v522
    %539 = vst [vmem:[#allocation2 + $0x3c] sm:$0xf] %v523
    %540 = vst [vmem:[#allocation2 + $0x40] sm:$0xf] %v524
    %541 = vst [vmem:[#allocation2 + $0x44] sm:$0xf] %v525
    %542 = vst [vmem:[#allocation2 + $0x48] sm:$0xf] %v526
    %543 = vst [vmem:[#allocation2 + $0x4c] sm:$0xf] %v527
    %544 = vst [vmem:[#allocation2 + $0x50] sm:$0xf] 0
    %545 = vst [vmem:[#allocation2 + $0x54] sm:$0xf] 0
    %v550 = vunpack.c.l.b16 %v460
    %v551 = vunpack.c.h.b16 %v460
    %v552 = vunpack.c.l.b16 %v461
    %v553 = vunpack.c.h.b16 %v461
    %v554 = vunpack.c.l.b16 %v462
    %v555 = vunpack.c.h.b16 %v462
    %v556 = vunpack.c.l.b16 %v463
    %v557 = vunpack.c.h.b16 %v463
    %v558 = vpack.c.b16 %v550, %v550
    %v559 = vpack.c.b16 %v551, %v551
    %v560 = vpack.c.b16 %v552, %v552
    %v561 = vpack.c.b16 %v553, %v553
    %v562 = vpack.c.b16 %v554, %v554
    %v563 = vpack.c.b16 %v555, %v555
    %v564 = vpack.c.b16 %v556, %v556
    %v565 = vpack.c.b16 %v557, %v557
    %574 = vst [vmem:[#allocation2 + $0x58] sm:$0xf] %v558
    %575 = vst [vmem:[#allocation2 + $0x5c] sm:$0xf] %v559
    %576 = vst [vmem:[#allocation2 + $0x60] sm:$0xf] %v560
    %577 = vst [vmem:[#allocation2 + $0x64] sm:$0xf] %v561
    %578 = vst [vmem:[#allocation2 + $0x68] sm:$0xf] %v562
    %579 = vst [vmem:[#allocation2 + $0x6c] sm:$0xf] %v563
    %580 = vst [vmem:[#allocation2 + $0x70] sm:$0xf] %v564
    %581 = vst [vmem:[#allocation2 + $0x74] sm:$0xf] %v565
    %582 = vst [vmem:[#allocation2 + $0x78] sm:$0xf] 0
    %583 = vst [vmem:[#allocation2 + $0x7c] sm:$0xf] 0
    %v588 = vunpack.c.l.b16 %v464
    %v589 = vunpack.c.h.b16 %v464
    %v590 = vunpack.c.l.b16 %v465
    %v591 = vunpack.c.h.b16 %v465
    %v592 = vunpack.c.l.b16 %v466
    %v593 = vunpack.c.h.b16 %v466
    %v594 = vunpack.c.l.b16 %v467
    %v595 = vunpack.c.h.b16 %v467
    %v596 = vpack.c.b16 %v588, %v588
    %v597 = vpack.c.b16 %v589, %v589
    %v598 = vpack.c.b16 %v590, %v590
    %v599 = vpack.c.b16 %v591, %v591
    %v600 = vpack.c.b16 %v592, %v592
    %v601 = vpack.c.b16 %v593, %v593
    %v602 = vpack.c.b16 %v594, %v594
    %v603 = vpack.c.b16 %v595, %v595
    %612 = vst [vmem:[#allocation2 + $0x80] sm:$0xf] %v596
    %613 = vst [vmem:[#allocation2 + $0x84] sm:$0xf] %v597
    %614 = vst [vmem:[#allocation2 + $0x88] sm:$0xf] %v598
    %615 = vst [vmem:[#allocation2 + $0x8c] sm:$0xf] %v599
    %616 = vst [vmem:[#allocation2 + $0x90] sm:$0xf] %v600
    %617 = vst [vmem:[#allocation2 + $0x94] sm:$0xf] %v601
    %618 = vst [vmem:[#allocation2 + $0x98] sm:$0xf] %v602
    %619 = vst [vmem:[#allocation2 + $0x9c] sm:$0xf] %v603
    %620 = vst [vmem:[#allocation2 + $0xa0] sm:$0xf] 0
    %621 = vst [vmem:[#allocation2 + $0xa4] sm:$0xf] 0
    %v622 = vlaneseq
    %v623 = vshrl.u32 %v622, 7
    %v624 = vadd.s32 %v623, 8
    %v625 = vadd.s32 %v623, 16
    %v626 = vadd.s32 %v623, 24
    %v627 = vadd.s32 %v623, 32
    %v628 = vadd.s32 %v623, 40
    %v629 = vadd.s32 %v623, 48
    %v630 = vadd.s32 %v623, 56
    %v631 = vadd.s32 %v623, 80
    %v632 = vadd.s32 %v623, 88
    %v633 = vadd.s32 %v623, 96
    %v634 = vadd.s32 %v623, 104
    %v635 = vadd.s32 %v623, 112
    %v636 = vadd.s32 %v623, 120
    %v637 = vadd.s32 %v623, 128
    %v638 = vadd.s32 %v623, 136
    %v639 = vadd.s32 %v623, 160
    %v640 = vadd.s32 %v623, 168
    %v641 = vadd.s32 %v623, 176
    %v642 = vadd.s32 %v623, 184
    %v643 = vadd.s32 %v623, 192
    %v644 = vadd.s32 %v623, 200
    %v645 = vadd.s32 %v623, 208
    %v646 = vadd.s32 %v623, 216
    %v647 = vadd.s32 %v623, 240
    %v648 = vadd.s32 %v623, 248
    %v649 = vadd.s32 %v623, 256
    %v650 = vadd.s32 %v623, 264
    %v651 = vadd.s32 %v623, 272
    %v652 = vadd.s32 %v623, 280
    %v653 = vadd.s32 %v623, 288
    %v654 = vadd.s32 %v623, 296
    %vm655 = vcmp.lt.s32.totalorder %v623, 0
    %v656 = vsub.s32 0, %v623
    %v657 = vsel %vm655, %v656, %v623
    %v658 = vshrl.u32 %v657, 3
    %v659 = vand.u32 %v657, 7
    %v660 = vsub.s32 0, %v659
    %v661 = vsel %vm655, %v660, %v659
    %vm662 = vcmp.lt.s32.totalorder %v624, 0
    %v663 = vsub.s32 0, %v624
    %v664 = vsel %vm662, %v663, %v624
    %v665 = vshrl.u32 %v664, 3
    %v666 = vand.u32 %v664, 7
    %v667 = vsub.s32 0, %v666
    %v668 = vsel %vm662, %v667, %v666
    %vm669 = vcmp.lt.s32.totalorder %v625, 0
    %v670 = vsub.s32 0, %v625
    %v671 = vsel %vm669, %v670, %v625
    %v672 = vshrl.u32 %v671, 3
    %v673 = vand.u32 %v671, 7
    %v674 = vsub.s32 0, %v673
    %v675 = vsel %vm669, %v674, %v673
    %vm676 = vcmp.lt.s32.totalorder %v626, 0
    %v677 = vsub.s32 0, %v626
    %v678 = vsel %vm676, %v677, %v626
    %v679 = vshrl.u32 %v678, 3
    %v680 = vand.u32 %v678, 7
    %v681 = vsub.s32 0, %v680
    %v682 = vsel %vm676, %v681, %v680
    %vm683 = vcmp.lt.s32.totalorder %v627, 0
    %v684 = vsub.s32 0, %v627
    %v685 = vsel %vm683, %v684, %v627
    %v686 = vshrl.u32 %v685, 3
    %v687 = vand.u32 %v685, 7
    %v688 = vsub.s32 0, %v687
    %v689 = vsel %vm683, %v688, %v687
    %vm690 = vcmp.lt.s32.totalorder %v628, 0
    %v691 = vsub.s32 0, %v628
    %v692 = vsel %vm690, %v691, %v628
    %v693 = vshrl.u32 %v692, 3
    %v694 = vand.u32 %v692, 7
    %v695 = vsub.s32 0, %v694
    %v696 = vsel %vm690, %v695, %v694
    %vm697 = vcmp.lt.s32.totalorder %v629, 0
    %v698 = vsub.s32 0, %v629
    %v699 = vsel %vm697, %v698, %v629
    %v700 = vshrl.u32 %v699, 3
    %v701 = vand.u32 %v699, 7
    %v702 = vsub.s32 0, %v701
    %v703 = vsel %vm697, %v702, %v701
    %vm704 = vcmp.lt.s32.totalorder %v630, 0
    %v705 = vsub.s32 0, %v630
    %v706 = vsel %vm704, %v705, %v630
    %v707 = vshrl.u32 %v706, 3
    %v708 = vand.u32 %v706, 7
    %v709 = vsub.s32 0, %v708
    %v710 = vsel %vm704, %v709, %v708
    %vm711 = vcmp.lt.s32.totalorder %v631, 0
    %v712 = vsub.s32 0, %v631
    %v713 = vsel %vm711, %v712, %v631
    %v714 = vshrl.u32 %v713, 3
    %v715 = vand.u32 %v713, 7
    %v716 = vsub.s32 0, %v715
    %v717 = vsel %vm711, %v716, %v715
    %vm718 = vcmp.lt.s32.totalorder %v632, 0
    %v719 = vsub.s32 0, %v632
    %v720 = vsel %vm718, %v719, %v632
    %v721 = vshrl.u32 %v720, 3
    %v722 = vand.u32 %v720, 7
    %v723 = vsub.s32 0, %v722
    %v724 = vsel %vm718, %v723, %v722
    %vm725 = vcmp.lt.s32.totalorder %v633, 0
    %v726 = vsub.s32 0, %v633
    %v727 = vsel %vm725, %v726, %v633
    %v728 = vshrl.u32 %v727, 3
    %v729 = vand.u32 %v727, 7
    %v730 = vsub.s32 0, %v729
    %v731 = vsel %vm725, %v730, %v729
    %vm732 = vcmp.lt.s32.totalorder %v634, 0
    %v733 = vsub.s32 0, %v634
    %v734 = vsel %vm732, %v733, %v634
    %v735 = vshrl.u32 %v734, 3
    %v736 = vand.u32 %v734, 7
    %v737 = vsub.s32 0, %v736
    %v738 = vsel %vm732, %v737, %v736
    %vm739 = vcmp.lt.s32.totalorder %v635, 0
    %v740 = vsub.s32 0, %v635
    %v741 = vsel %vm739, %v740, %v635
    %v742 = vshrl.u32 %v741, 3
    %v743 = vand.u32 %v741, 7
    %v744 = vsub.s32 0, %v743
    %v745 = vsel %vm739, %v744, %v743
    %vm746 = vcmp.lt.s32.totalorder %v636, 0
    %v747 = vsub.s32 0, %v636
    %v748 = vsel %vm746, %v747, %v636
    %v749 = vshrl.u32 %v748, 3
    %v750 = vand.u32 %v748, 7
    %v751 = vsub.s32 0, %v750
    %v752 = vsel %vm746, %v751, %v750
    %vm753 = vcmp.lt.s32.totalorder %v637, 0
    %v754 = vsub.s32 0, %v637
    %v755 = vsel %vm753, %v754, %v637
    %v756 = vshrl.u32 %v755, 3
    %v757 = vand.u32 %v755, 7
    %v758 = vsub.s32 0, %v757
    %v759 = vsel %vm753, %v758, %v757
    %vm760 = vcmp.lt.s32.totalorder %v638, 0
    %v761 = vsub.s32 0, %v638
    %v762 = vsel %vm760, %v761, %v638
    %v763 = vshrl.u32 %v762, 3
    %v764 = vand.u32 %v762, 7
    %v765 = vsub.s32 0, %v764
    %v766 = vsel %vm760, %v765, %v764
    %vm767 = vcmp.lt.s32.totalorder %v639, 0
    %v768 = vsub.s32 0, %v639
    %v769 = vsel %vm767, %v768, %v639
    %v770 = vshrl.u32 %v769, 3
    %v771 = vand.u32 %v769, 7
    %v772 = vsub.s32 0, %v771
    %v773 = vsel %vm767, %v772, %v771
    %vm774 = vcmp.lt.s32.totalorder %v640, 0
    %v775 = vsub.s32 0, %v640
    %v776 = vsel %vm774, %v775, %v640
    %v777 = vshrl.u32 %v776, 3
    %v778 = vand.u32 %v776, 7
    %v779 = vsub.s32 0, %v778
    %v780 = vsel %vm774, %v779, %v778
    %vm781 = vcmp.lt.s32.totalorder %v641, 0
    %v782 = vsub.s32 0, %v641
    %v783 = vsel %vm781, %v782, %v641
    %v784 = vshrl.u32 %v783, 3
    %v785 = vand.u32 %v783, 7
    %v786 = vsub.s32 0, %v785
    %v787 = vsel %vm781, %v786, %v785
    %vm788 = vcmp.lt.s32.totalorder %v642, 0
    %v789 = vsub.s32 0, %v642
    %v790 = vsel %vm788, %v789, %v642
    %v791 = vshrl.u32 %v790, 3
    %v792 = vand.u32 %v790, 7
    %v793 = vsub.s32 0, %v792
    %v794 = vsel %vm788, %v793, %v792
    %vm795 = vcmp.lt.s32.totalorder %v643, 0
    %v796 = vsub.s32 0, %v643
    %v797 = vsel %vm795, %v796, %v643
    %v798 = vshrl.u32 %v797, 3
    %v799 = vand.u32 %v797, 7
    %v800 = vsub.s32 0, %v799
    %v801 = vsel %vm795, %v800, %v799
    %vm802 = vcmp.lt.s32.totalorder %v644, 0
    %v803 = vsub.s32 0, %v644
    %v804 = vsel %vm802, %v803, %v644
    %v805 = vshrl.u32 %v804, 3
    %v806 = vand.u32 %v804, 7
    %v807 = vsub.s32 0, %v806
    %v808 = vsel %vm802, %v807, %v806
    %vm809 = vcmp.lt.s32.totalorder %v645, 0
    %v810 = vsub.s32 0, %v645
    %v811 = vsel %vm809, %v810, %v645
    %v812 = vshrl.u32 %v811, 3
    %v813 = vand.u32 %v811, 7
    %v814 = vsub.s32 0, %v813
    %v815 = vsel %vm809, %v814, %v813
    %vm816 = vcmp.lt.s32.totalorder %v646, 0
    %v817 = vsub.s32 0, %v646
    %v818 = vsel %vm816, %v817, %v646
    %v819 = vshrl.u32 %v818, 3
    %v820 = vand.u32 %v818, 7
    %v821 = vsub.s32 0, %v820
    %v822 = vsel %vm816, %v821, %v820
    %vm823 = vcmp.lt.s32.totalorder %v647, 0
    %v824 = vsub.s32 0, %v647
    %v825 = vsel %vm823, %v824, %v647
    %v826 = vshrl.u32 %v825, 3
    %v827 = vand.u32 %v825, 7
    %v828 = vsub.s32 0, %v827
    %v829 = vsel %vm823, %v828, %v827
    %vm830 = vcmp.lt.s32.totalorder %v648, 0
    %v831 = vsub.s32 0, %v648
    %v832 = vsel %vm830, %v831, %v648
    %v833 = vshrl.u32 %v832, 3
    %v834 = vand.u32 %v832, 7
    %v835 = vsub.s32 0, %v834
    %v836 = vsel %vm830, %v835, %v834
    %vm837 = vcmp.lt.s32.totalorder %v649, 0
    %v838 = vsub.s32 0, %v649
    %v839 = vsel %vm837, %v838, %v649
    %v840 = vshrl.u32 %v839, 3
    %v841 = vand.u32 %v839, 7
    %v842 = vsub.s32 0, %v841
    %v843 = vsel %vm837, %v842, %v841
    %vm844 = vcmp.lt.s32.totalorder %v650, 0
    %v845 = vsub.s32 0, %v650
    %v846 = vsel %vm844, %v845, %v650
    %v847 = vshrl.u32 %v846, 3
    %v848 = vand.u32 %v846, 7
    %v849 = vsub.s32 0, %v848
    %v850 = vsel %vm844, %v849, %v848
    %vm851 = vcmp.lt.s32.totalorder %v651, 0
    %v852 = vsub.s32 0, %v651
    %v853 = vsel %vm851, %v852, %v651
    %v854 = vshrl.u32 %v853, 3
    %v855 = vand.u32 %v853, 7
    %v856 = vsub.s32 0, %v855
    %v857 = vsel %vm851, %v856, %v855
    %vm858 = vcmp.lt.s32.totalorder %v652, 0
    %v859 = vsub.s32 0, %v652
    %v860 = vsel %vm858, %v859, %v652
    %v861 = vshrl.u32 %v860, 3
    %v862 = vand.u32 %v860, 7
    %v863 = vsub.s32 0, %v862
    %v864 = vsel %vm858, %v863, %v862
    %vm865 = vcmp.lt.s32.totalorder %v653, 0
    %v866 = vsub.s32 0, %v653
    %v867 = vsel %vm865, %v866, %v653
    %v868 = vshrl.u32 %v867, 3
    %v869 = vand.u32 %v867, 7
    %v870 = vsub.s32 0, %v869
    %v871 = vsel %vm865, %v870, %v869
    %vm872 = vcmp.lt.s32.totalorder %v654, 0
    %v873 = vsub.s32 0, %v654
    %v874 = vsel %vm872, %v873, %v654
    %v875 = vshrl.u32 %v874, 3
    %v876 = vand.u32 %v874, 7
    %v877 = vsub.s32 0, %v876
    %v878 = vsel %vm872, %v877, %v876
    %vm879 = vcmp.ne.s32.totalorder %v661, 0
    %vm880 = vcmp.ne.s32.totalorder %v668, 0
    %vm881 = vcmp.ne.s32.totalorder %v675, 0
    %vm882 = vcmp.ne.s32.totalorder %v682, 0
    %vm883 = vcmp.ne.s32.totalorder %v689, 0
    %vm884 = vcmp.ne.s32.totalorder %v696, 0
    %vm885 = vcmp.ne.s32.totalorder %v703, 0
    %vm886 = vcmp.ne.s32.totalorder %v710, 0
    %vm887 = vcmp.ne.s32.totalorder %v717, 0
    %vm888 = vcmp.ne.s32.totalorder %v724, 0
    %vm889 = vcmp.ne.s32.totalorder %v731, 0
    %vm890 = vcmp.ne.s32.totalorder %v738, 0
    %vm891 = vcmp.ne.s32.totalorder %v745, 0
    %vm892 = vcmp.ne.s32.totalorder %v752, 0
    %vm893 = vcmp.ne.s32.totalorder %v759, 0
    %vm894 = vcmp.ne.s32.totalorder %v766, 0
    %vm895 = vcmp.ne.s32.totalorder %v773, 0
    %vm896 = vcmp.ne.s32.totalorder %v780, 0
    %vm897 = vcmp.ne.s32.totalorder %v787, 0
    %vm898 = vcmp.ne.s32.totalorder %v794, 0
    %vm899 = vcmp.ne.s32.totalorder %v801, 0
    %vm900 = vcmp.ne.s32.totalorder %v808, 0
    %vm901 = vcmp.ne.s32.totalorder %v815, 0
    %vm902 = vcmp.ne.s32.totalorder %v822, 0
    %vm903 = vcmp.ne.s32.totalorder %v829, 0
    %vm904 = vcmp.ne.s32.totalorder %v836, 0
    %vm905 = vcmp.ne.s32.totalorder %v843, 0
    %vm906 = vcmp.ne.s32.totalorder %v850, 0
    %vm907 = vcmp.ne.s32.totalorder %v857, 0
    %vm908 = vcmp.ne.s32.totalorder %v864, 0
    %vm909 = vcmp.ne.s32.totalorder %v871, 0
    %vm910 = vcmp.ne.s32.totalorder %v878, 0
    %vm911 = vcmp.lt.s32.totalorder %v661, 0
    %vm912 = vcmp.lt.s32.totalorder %v668, 0
    %vm913 = vcmp.lt.s32.totalorder %v675, 0
    %vm914 = vcmp.lt.s32.totalorder %v682, 0
    %vm915 = vcmp.lt.s32.totalorder %v689, 0
    %vm916 = vcmp.lt.s32.totalorder %v696, 0
    %vm917 = vcmp.lt.s32.totalorder %v703, 0
    %vm918 = vcmp.lt.s32.totalorder %v710, 0
    %vm919 = vcmp.lt.s32.totalorder %v717, 0
    %vm920 = vcmp.lt.s32.totalorder %v724, 0
    %vm921 = vcmp.lt.s32.totalorder %v731, 0
    %vm922 = vcmp.lt.s32.totalorder %v738, 0
    %vm923 = vcmp.lt.s32.totalorder %v745, 0
    %vm924 = vcmp.lt.s32.totalorder %v752, 0
    %vm925 = vcmp.lt.s32.totalorder %v759, 0
    %vm926 = vcmp.lt.s32.totalorder %v766, 0
    %vm927 = vcmp.lt.s32.totalorder %v773, 0
    %vm928 = vcmp.lt.s32.totalorder %v780, 0
    %vm929 = vcmp.lt.s32.totalorder %v787, 0
    %vm930 = vcmp.lt.s32.totalorder %v794, 0
    %vm931 = vcmp.lt.s32.totalorder %v801, 0
    %vm932 = vcmp.lt.s32.totalorder %v808, 0
    %vm933 = vcmp.lt.s32.totalorder %v815, 0
    %vm934 = vcmp.lt.s32.totalorder %v822, 0
    %vm935 = vcmp.lt.s32.totalorder %v829, 0
    %vm936 = vcmp.lt.s32.totalorder %v836, 0
    %vm937 = vcmp.lt.s32.totalorder %v843, 0
    %vm938 = vcmp.lt.s32.totalorder %v850, 0
    %vm939 = vcmp.lt.s32.totalorder %v857, 0
    %vm940 = vcmp.lt.s32.totalorder %v864, 0
    %vm941 = vcmp.lt.s32.totalorder %v871, 0
    %vm942 = vcmp.lt.s32.totalorder %v878, 0
    %vm943 = vmand %vm911, %vm879
    %vm944 = vmand %vm912, %vm880
    %vm945 = vmand %vm913, %vm881
    %vm946 = vmand %vm914, %vm882
    %vm947 = vmand %vm915, %vm883
    %vm948 = vmand %vm916, %vm884
    %vm949 = vmand %vm917, %vm885
    %vm950 = vmand %vm918, %vm886
    %vm951 = vmand %vm919, %vm887
    %vm952 = vmand %vm920, %vm888
    %vm953 = vmand %vm921, %vm889
    %vm954 = vmand %vm922, %vm890
    %vm955 = vmand %vm923, %vm891
    %vm956 = vmand %vm924, %vm892
    %vm957 = vmand %vm925, %vm893
    %vm958 = vmand %vm926, %vm894
    %vm959 = vmand %vm927, %vm895
    %vm960 = vmand %vm928, %vm896
    %vm961 = vmand %vm929, %vm897
    %vm962 = vmand %vm930, %vm898
    %vm963 = vmand %vm931, %vm899
    %vm964 = vmand %vm932, %vm900
    %vm965 = vmand %vm933, %vm901
    %vm966 = vmand %vm934, %vm902
    %vm967 = vmand %vm935, %vm903
    %vm968 = vmand %vm936, %vm904
    %vm969 = vmand %vm937, %vm905
    %vm970 = vmand %vm938, %vm906
    %vm971 = vmand %vm939, %vm907
    %vm972 = vmand %vm940, %vm908
    %vm973 = vmand %vm941, %vm909
    %vm974 = vmand %vm942, %vm910
    %v975 = vadd.s32 %v661, 8
    %v976 = vadd.s32 %v668, 8
    %v977 = vadd.s32 %v675, 8
    %v978 = vadd.s32 %v682, 8
    %v979 = vadd.s32 %v689, 8
    %v980 = vadd.s32 %v696, 8
    %v981 = vadd.s32 %v703, 8
    %v982 = vadd.s32 %v710, 8
    %v983 = vadd.s32 %v717, 8
    %v984 = vadd.s32 %v724, 8
    %v985 = vadd.s32 %v731, 8
    %v986 = vadd.s32 %v738, 8
    %v987 = vadd.s32 %v745, 8
    %v988 = vadd.s32 %v752, 8
    %v989 = vadd.s32 %v759, 8
    %v990 = vadd.s32 %v766, 8
    %v991 = vadd.s32 %v773, 8
    %v992 = vadd.s32 %v780, 8
    %v993 = vadd.s32 %v787, 8
    %v994 = vadd.s32 %v794, 8
    %v995 = vadd.s32 %v801, 8
    %v996 = vadd.s32 %v808, 8
    %v997 = vadd.s32 %v815, 8
    %v998 = vadd.s32 %v822, 8
    %v999 = vadd.s32 %v829, 8
    %v1000 = vadd.s32 %v836, 8
    %v1001 = vadd.s32 %v843, 8
    %v1002 = vadd.s32 %v850, 8
    %v1003 = vadd.s32 %v857, 8
    %v1004 = vadd.s32 %v864, 8
    %v1005 = vadd.s32 %v871, 8
    %v1006 = vadd.s32 %v878, 8
    %v1007 = vsel %vm943, %v975, %v661
    %v1008 = vsel %vm944, %v976, %v668
    %v1009 = vsel %vm945, %v977, %v675
    %v1010 = vsel %vm946, %v978, %v682
    %v1011 = vsel %vm947, %v979, %v689
    %v1012 = vsel %vm948, %v980, %v696
    %v1013 = vsel %vm949, %v981, %v703
    %v1014 = vsel %vm950, %v982, %v710
    %v1015 = vsel %vm951, %v983, %v717
    %v1016 = vsel %vm952, %v984, %v724
    %v1017 = vsel %vm953, %v985, %v731
    %v1018 = vsel %vm954, %v986, %v738
    %v1019 = vsel %vm955, %v987, %v745
    %v1020 = vsel %vm956, %v988, %v752
    %v1021 = vsel %vm957, %v989, %v759
    %v1022 = vsel %vm958, %v990, %v766
    %v1023 = vsel %vm959, %v991, %v773
    %v1024 = vsel %vm960, %v992, %v780
    %v1025 = vsel %vm961, %v993, %v787
    %v1026 = vsel %vm962, %v994, %v794
    %v1027 = vsel %vm963, %v995, %v801
    %v1028 = vsel %vm964, %v996, %v808
    %v1029 = vsel %vm965, %v997, %v815
    %v1030 = vsel %vm966, %v998, %v822
    %v1031 = vsel %vm967, %v999, %v829
    %v1032 = vsel %vm968, %v1000, %v836
    %v1033 = vsel %vm969, %v1001, %v843
    %v1034 = vsel %vm970, %v1002, %v850
    %v1035 = vsel %vm971, %v1003, %v857
    %v1036 = vsel %vm972, %v1004, %v864
    %v1037 = vsel %vm973, %v1005, %v871
    %v1038 = vsel %vm974, %v1006, %v878
    %v1039 = vld [vmem:[#allocation2 + $0x4] sm:$0xf]
    %v1040 = vld [vmem:[#allocation2 + $0x8] sm:$0xf]
    %v1041 = vld [vmem:[#allocation2 + $0xc] sm:$0xf]
    %v1042 = vld [vmem:[#allocation2 + $0x10] sm:$0xf]
    %v1043 = vld [vmem:[#allocation2 + $0x14] sm:$0xf]
    %v1044 = vld [vmem:[#allocation2 + $0x18] sm:$0xf]
    %v1045 = vld [vmem:[#allocation2 + $0x1c] sm:$0xf]
    %v1046 = vld [vmem:[#allocation2 + $0x20] sm:$0xf]
    %v1047 = vld [vmem:[#allocation2 + $0x24] sm:$0xf]
    %v1048 = vld [vmem:[#allocation2 + $0x28] sm:$0xf]
    %v1049 = vld [vmem:[#allocation2 + $0x2c] sm:$0xf]
    %v1050 = vld [vmem:[#allocation2 + $0x30] sm:$0xf]
    %v1051 = vld [vmem:[#allocation2 + $0x34] sm:$0xf]
    %v1052 = vld [vmem:[#allocation2 + $0x38] sm:$0xf]
    %v1053 = vld [vmem:[#allocation2 + $0x3c] sm:$0xf]
    %v1054 = vld [vmem:[#allocation2 + $0x40] sm:$0xf]
    %v1055 = vld [vmem:[#allocation2 + $0x44] sm:$0xf]
    %v1056 = vld [vmem:[#allocation2 + $0x48] sm:$0xf]
    %v1057 = vld [vmem:[#allocation2 + $0x4c] sm:$0xf]
    %v1058 = vld [vmem:[#allocation2 + $0x50] sm:$0xf]
    %v1059 = vld [vmem:[#allocation2 + $0x54] sm:$0xf]
    %v1060 = vld [vmem:[#allocation2 + $0x58] sm:$0xf]
    %v1061 = vld [vmem:[#allocation2 + $0x5c] sm:$0xf]
    %v1062 = vld [vmem:[#allocation2 + $0x60] sm:$0xf]
    %v1063 = vld [vmem:[#allocation2 + $0x64] sm:$0xf]
    %v1064 = vld [vmem:[#allocation2 + $0x68] sm:$0xf]
    %v1065 = vld [vmem:[#allocation2 + $0x6c] sm:$0xf]
    %v1066 = vld [vmem:[#allocation2 + $0x70] sm:$0xf]
    %v1067 = vld [vmem:[#allocation2 + $0x74] sm:$0xf]
    %v1068 = vld [vmem:[#allocation2 + $0x78] sm:$0xf]
    %v1069 = vld [vmem:[#allocation2 + $0x7c] sm:$0xf]
    %v1070 = vld [vmem:[#allocation2 + $0x80] sm:$0xf]
    %v1071 = vld [vmem:[#allocation2 + $0x84] sm:$0xf]
    %v1072 = vld [vmem:[#allocation2 + $0x88] sm:$0xf]
    %v1073 = vld [vmem:[#allocation2 + $0x8c] sm:$0xf]
    %v1074 = vld [vmem:[#allocation2 + $0x90] sm:$0xf]
    %v1075 = vld [vmem:[#allocation2 + $0x94] sm:$0xf]
    %v1076 = vld [vmem:[#allocation2 + $0x98] sm:$0xf]
    %s1077 = scalar_lea.vmem [#allocation6], 64
    %v1078 = vld [vmem:[%s1077] sm:$0xf]
    %v1079 = vld [vmem:[%s1077 + $0x4] sm:$0xf]
    %v1080 = vld [vmem:[%s1077 + $0x8] sm:$0xf]
    %v1081 = vld [vmem:[%s1077 + $0xc] sm:$0xf]
    %v1082 = vld [vmem:[%s1077 + $0x10] sm:$0xf]
    %v1083 = vld [vmem:[%s1077 + $0x14] sm:$0xf]
    %v1084 = vld [vmem:[%s1077 + $0x18] sm:$0xf]
    %v1085 = vld [vmem:[%s1077 + $0x1c] sm:$0xf]
    %v1086 = vld [vmem:[%s1077 + $0x20] sm:$0xf]
    %v1087 = vld [vmem:[%s1077 + $0x24] sm:$0xf]
    %v1088 = vld [vmem:[%s1077 + $0x28] sm:$0xf]
    %v1089 = vld [vmem:[%s1077 + $0x2c] sm:$0xf]
    %v1090 = vld [vmem:[%s1077 + $0x30] sm:$0xf]
    %v1091 = vld [vmem:[%s1077 + $0x34] sm:$0xf]
    %v1092 = vld [vmem:[%s1077 + $0x38] sm:$0xf]
    %v1093 = vld [vmem:[%s1077 + $0x3c] sm:$0xf]
    %v1094 = vld [vmem:[#allocation2 + $0x9c] sm:$0xf]
    %v1095 = vld [vmem:[#allocation2 + $0xa0] sm:$0xf]
    %s1096 = scalar_lea.vmem [#allocation6], 448
    %v1097 = vld [vmem:[%s1096] sm:$0xf]
    %v1098 = vld [vmem:[%s1096 + $0x4] sm:$0xf]
    %v1099 = vld [vmem:[%s1096 + $0x8] sm:$0xf]
    %v1100 = vld [vmem:[%s1096 + $0xc] sm:$0xf]
    %v1101 = vld [vmem:[%s1096 + $0x10] sm:$0xf]
    %v1102 = vld [vmem:[%s1096 + $0x14] sm:$0xf]
    %v1103 = vld [vmem:[%s1096 + $0x18] sm:$0xf]
    %v1104 = vld [vmem:[%s1096 + $0x1c] sm:$0xf]
    %v1105 = vld [vmem:[%s1096 + $0x20] sm:$0xf]
    %v1106 = vld [vmem:[%s1096 + $0x24] sm:$0xf]
    %v1107 = vld [vmem:[%s1096 + $0x28] sm:$0xf]
    %v1108 = vld [vmem:[%s1096 + $0x2c] sm:$0xf]
    %v1109 = vld [vmem:[%s1096 + $0x30] sm:$0xf]
    %v1110 = vld [vmem:[%s1096 + $0x34] sm:$0xf]
    %v1111 = vld [vmem:[%s1096 + $0x38] sm:$0xf]
    %v1112 = vld [vmem:[%s1096 + $0x3c] sm:$0xf]
    %v1151 = vunpack.c.l.b16 %v1041
    %v1152 = vunpack.c.l.b16 %v1042
    %v1153 = vunpack.c.l.b16 %v1043
    %v1154 = vunpack.c.l.b16 %v1044
    %v1155 = vunpack.c.l.b16 %v1045
    %v1156 = vunpack.c.l.b16 %v1046
    %v1157 = vunpack.c.l.b16 %v1047
    %v1158 = vunpack.c.l.b16 %v1048
    %v1159 = vunpack.c.l.b16 %v1049
    %v1160 = vunpack.c.l.b16 %v1050
    %v1161 = vunpack.c.l.b16 %v1051
    %v1162 = vunpack.c.l.b16 %v1052
    %v1163 = vunpack.c.l.b16 %v1053
    %v1164 = vunpack.c.l.b16 %v1054
    %v1165 = vunpack.c.l.b16 %v1055
    %v1166 = vunpack.c.l.b16 %v1056
    %v1167 = vunpack.c.l.b16 %v1057
    %v1168 = vunpack.c.l.b16 %v1058
    %v1169 = vunpack.c.l.b16 %v1059
    %v1170 = vunpack.c.l.b16 %v1060
    %v1171 = vunpack.c.l.b16 %v1061
    %v1172 = vunpack.c.l.b16 %v1062
    %v1173 = vunpack.c.l.b16 %v1063
    %v1174 = vunpack.c.l.b16 %v1064
    %v1175 = vunpack.c.l.b16 %v1065
    %v1176 = vunpack.c.l.b16 %v1066
    %v1177 = vunpack.c.l.b16 %v1067
    %v1178 = vunpack.c.l.b16 %v1068
    %v1179 = vunpack.c.l.b16 %v1069
    %v1180 = vunpack.c.l.b16 %v1070
    %v1181 = vunpack.c.l.b16 %v1071
    %v1182 = vunpack.c.l.b16 %v1072
    %v1183 = vunpack.c.l.b16 %v1073
    %v1184 = vunpack.c.l.b16 %v1074
    %v1185 = vunpack.c.l.b16 %v1075
    %v1186 = vunpack.c.l.b16 %v1076
    %v1187 = vunpack.c.l.b16 %v1094
    %v1188 = vunpack.c.l.b16 %v1095
    %v1189 = vpack.c.b16 %v1152, %v1151
    %v1190 = vpack.c.b16 %v1154, %v1153
    %v1191 = vpack.c.b16 %v1156, %v1155
    %v1192 = vpack.c.b16 %v1158, %v1157
    %v1193 = vpack.c.b16 %v1160, %v1159
    %v1194 = vpack.c.b16 %v1162, %v1161
    %v1195 = vpack.c.b16 %v1164, %v1163
    %v1196 = vpack.c.b16 %v1166, %v1165
    %v1197 = vpack.c.b16 %v1168, %v1167
    %v1198 = vpack.c.b16 %v1170, %v1169
    %v1199 = vpack.c.b16 %v1172, %v1171
    %v1200 = vpack.c.b16 %v1174, %v1173
    %v1201 = vpack.c.b16 %v1176, %v1175
    %v1202 = vpack.c.b16 %v1178, %v1177
    %v1203 = vpack.c.b16 %v1180, %v1179
    %v1204 = vpack.c.b16 %v1182, %v1181
    %v1205 = vpack.c.b16 %v1184, %v1183
    %v1206 = vpack.c.b16 %v1186, %v1185
    %v1207 = vpack.c.b16 %v1188, %v1187
    %v1243 = vunpack.c.l.b16 %v1097
    %v1244 = vunpack.c.l.b16 %v1098
    %v1245 = vunpack.c.l.b16 %v1099
    %v1246 = vunpack.c.l.b16 %v1100
    %v1247 = vunpack.c.l.b16 %v1101
    %v1248 = vunpack.c.l.b16 %v1102
    %v1249 = vunpack.c.l.b16 %v1103
    %v1250 = vunpack.c.l.b16 %v1104
    %v1251 = vunpack.c.l.b16 %v1105
    %v1252 = vunpack.c.l.b16 %v1106
    %v1253 = vunpack.c.l.b16 %v1107
    %v1254 = vunpack.c.l.b16 %v1108
    %v1255 = vunpack.c.l.b16 %v1109
    %v1256 = vunpack.c.l.b16 %v1110
    %v1257 = vunpack.c.l.b16 %v1111
    %v1258 = vunpack.c.l.b16 %v1112
    %v1259 = vpack.c.b16 %v1244, %v1243
    %v1260 = vpack.c.b16 %v1246, %v1245
    %v1261 = vpack.c.b16 %v1248, %v1247
    %v1262 = vpack.c.b16 %v1250, %v1249
    %v1263 = vpack.c.b16 %v1252, %v1251
    %v1264 = vpack.c.b16 %v1254, %v1253
    %v1265 = vpack.c.b16 %v1256, %v1255
    %v1266 = vpack.c.b16 %v1258, %v1257
    %1275 = vmatprep.subr.bf16.mxu0 0
    %1276 = vmatpush1.bf16.msra.mxu0 %v1266
    %1277 = vmatprep.subr.bf16.mxu0 0
    %1278 = vmatpush1.bf16.msra.mxu0 %v1265
    %1279 = vmatprep.subr.bf16.mxu0 0
    %1280 = vmatpush1.bf16.msra.mxu0 %v1264
    %1281 = vmatprep.subr.bf16.mxu0 0
    %1282 = vmatpush1.bf16.msra.mxu0 %v1263
    %1283 = vmatprep.subr.bf16.mxu0 0
    %1284 = vmatpush1.bf16.msra.mxu0 %v1262
    %1285 = vmatprep.subr.bf16.mxu0 0
    %1286 = vmatpush1.bf16.msra.mxu0 %v1261
    %1287 = vmatprep.subr.bf16.mxu0 0
    %1288 = vmatpush1.bf16.msra.mxu0 %v1260
    %1289 = vmatprep.subr.bf16.mxu0 0
    %1290 = vmatpush1.bf16.msra.mxu0 %v1259
    %1291 = vmatprep.subr.bf16.mxu0 0
    %1292 = vmatpush2.bf16.msra.mxu0 0
    %1293 = vmatprep.subr.bf16.mxu0 0
    %1294 = vmatpush2.bf16.msra.mxu0 0
    %1295 = vmatprep.subr.bf16.mxu0 0
    %1296 = vmatpush2.bf16.msra.mxu0 0
    %1297 = vmatprep.subr.bf16.mxu0 0
    %1298 = vmatpush2.bf16.msra.mxu0 0
    %1299 = vmatprep.subr.bf16.mxu0 0
    %1300 = vmatpush2.bf16.msra.mxu0 0
    %1301 = vmatprep.subr.bf16.mxu0 0
    %1302 = vmatpush2.bf16.msra.mxu0 0
    %1303 = vmatprep.subr.bf16.mxu0 0
    %1304 = vmatpush2.bf16.msra.mxu0 0
    %1305 = vmatprep.subr.bf16.mxu0 0
    %1306 = vmatpush2.bf16.msra.mxu0 0
    %1307 = vmatprep.mubr.bf16.mxu0 0
    %1308 = vmatmul.mubr.bf16.gmra.mxu0 %v1189
    %v1309 = vpop.f32.mrf.mxu0
    %v1310 = vadd.f32 0.0, %v1309
    %v1311 = vpop.f32.mrf.mxu0
    %v1312 = vpop.f32.mrf.mxu0
    %v1313 = vadd.f32 0.0, %v1312
    %v1314 = vpop.f32.mrf.mxu0
    %1315 = vmatprep.mubr.bf16.mxu0 0
    %1316 = vmatmul.mubr.bf16.gmra.mxu0 %v1190
    %v1317 = vpop.f32.mrf.mxu0
    %v1318 = vadd.f32 0.0, %v1317
    %v1319 = vpop.f32.mrf.mxu0
    %v1320 = vpop.f32.mrf.mxu0
    %v1321 = vadd.f32 0.0, %v1320
    %v1322 = vpop.f32.mrf.mxu0
    %1323 = vmatprep.mubr.bf16.mxu0 0
    %1324 = vmatmul.mubr.bf16.gmra.mxu0 %v1191
    %v1325 = vpop.f32.mrf.mxu0
    %v1326 = vadd.f32 0.0, %v1325
    %v1327 = vpop.f32.mrf.mxu0
    %v1328 = vpop.f32.mrf.mxu0
    %v1329 = vadd.f32 0.0, %v1328
    %v1330 = vpop.f32.mrf.mxu0
    %1331 = vmatprep.mubr.bf16.mxu0 0
    %1332 = vmatmul.mubr.bf16.gmra.mxu0 %v1192
    %v1333 = vpop.f32.mrf.mxu0
    %v1334 = vadd.f32 0.0, %v1333
    %v1335 = vpop.f32.mrf.mxu0
    %v1336 = vpop.f32.mrf.mxu0
    %v1337 = vadd.f32 0.0, %v1336
    %v1338 = vpop.f32.mrf.mxu0
    %1339 = vmatprep.mubr.bf16.mxu0 0
    %1340 = vmatmul.mubr.bf16.gmra.mxu0 %v1193
    %v1341 = vpop.f32.mrf.mxu0
    %v1342 = vpop.f32.mrf.mxu0
    %v1343 = vpop.f32.mrf.mxu0
    %v1344 = vpop.f32.mrf.mxu0
    %1345 = vmatprep.mubr.bf16.mxu0 0
    %1346 = vmatmul.mubr.bf16.gmra.mxu0 %v1194
    %v1347 = vpop.f32.mrf.mxu0
    %v1348 = vadd.f32 0.0, %v1347
    %v1349 = vpop.f32.mrf.mxu0
    %v1350 = vpop.f32.mrf.mxu0
    %v1351 = vadd.f32 0.0, %v1350
    %v1352 = vpop.f32.mrf.mxu0
    %1353 = vmatprep.mubr.bf16.mxu0 0
    %1354 = vmatmul.mubr.bf16.gmra.mxu0 %v1195
    %v1355 = vpop.f32.mrf.mxu0
    %v1356 = vadd.f32 0.0, %v1355
    %v1357 = vpop.f32.mrf.mxu0
    %v1358 = vpop.f32.mrf.mxu0
    %v1359 = vadd.f32 0.0, %v1358
    %v1360 = vpop.f32.mrf.mxu0
    %1361 = vmatprep.mubr.bf16.mxu0 0
    %1362 = vmatmul.mubr.bf16.gmra.mxu0 %v1196
    %v1363 = vpop.f32.mrf.mxu0
    %v1364 = vadd.f32 0.0, %v1363
    %v1365 = vpop.f32.mrf.mxu0
    %v1366 = vpop.f32.mrf.mxu0
    %v1367 = vadd.f32 0.0, %v1366
    %v1368 = vpop.f32.mrf.mxu0
    %1369 = vmatprep.mubr.bf16.mxu0 0
    %1370 = vmatmul.mubr.bf16.gmra.mxu0 %v1197
    %v1371 = vpop.f32.mrf.mxu0
    %v1372 = vadd.f32 0.0, %v1371
    %v1373 = vpop.f32.mrf.mxu0
    %v1374 = vpop.f32.mrf.mxu0
    %v1375 = vadd.f32 0.0, %v1374
    %v1376 = vpop.f32.mrf.mxu0
    %1377 = vmatprep.mubr.bf16.mxu0 0
    %1378 = vmatmul.mubr.bf16.gmra.mxu0 %v1198
    %v1379 = vpop.f32.mrf.mxu0
    %v1380 = vpop.f32.mrf.mxu0
    %v1381 = vpop.f32.mrf.mxu0
    %v1382 = vpop.f32.mrf.mxu0
    %1383 = vmatprep.mubr.bf16.mxu0 0
    %1384 = vmatmul.mubr.bf16.gmra.mxu0 %v1199
    %v1385 = vpop.f32.mrf.mxu0
    %v1386 = vadd.f32 0.0, %v1385
    %v1387 = vpop.f32.mrf.mxu0
    %v1388 = vpop.f32.mrf.mxu0
    %v1389 = vadd.f32 0.0, %v1388
    %v1390 = vpop.f32.mrf.mxu0
    %1391 = vmatprep.mubr.bf16.mxu0 0
    %1392 = vmatmul.mubr.bf16.gmra.mxu0 %v1200
    %v1393 = vpop.f32.mrf.mxu0
    %v1394 = vadd.f32 0.0, %v1393
    %v1395 = vpop.f32.mrf.mxu0
    %v1396 = vpop.f32.mrf.mxu0
    %v1397 = vadd.f32 0.0, %v1396
    %v1398 = vpop.f32.mrf.mxu0
    %1399 = vmatprep.mubr.bf16.mxu0 0
    %1400 = vmatmul.mubr.bf16.gmra.mxu0 %v1201
    %v1401 = vpop.f32.mrf.mxu0
    %v1402 = vadd.f32 0.0, %v1401
    %v1403 = vpop.f32.mrf.mxu0
    %v1404 = vpop.f32.mrf.mxu0
    %v1405 = vadd.f32 0.0, %v1404
    %v1406 = vpop.f32.mrf.mxu0
    %1407 = vmatprep.mubr.bf16.mxu0 0
    %1408 = vmatmul.mubr.bf16.gmra.mxu0 %v1202
    %v1409 = vpop.f32.mrf.mxu0
    %v1410 = vadd.f32 0.0, %v1409
    %v1411 = vpop.f32.mrf.mxu0
    %v1412 = vpop.f32.mrf.mxu0
    %v1413 = vadd.f32 0.0, %v1412
    %v1414 = vpop.f32.mrf.mxu0
    %1415 = vmatprep.mubr.bf16.mxu0 0
    %1416 = vmatmul.mubr.bf16.gmra.mxu0 %v1203
    %v1417 = vpop.f32.mrf.mxu0
    %v1418 = vpop.f32.mrf.mxu0
    %v1419 = vpop.f32.mrf.mxu0
    %v1420 = vpop.f32.mrf.mxu0
    %1421 = vmatprep.mubr.bf16.mxu0 0
    %1422 = vmatmul.mubr.bf16.gmra.mxu0 %v1204
    %v1423 = vpop.f32.mrf.mxu0
    %v1424 = vadd.f32 0.0, %v1423
    %v1425 = vpop.f32.mrf.mxu0
    %v1426 = vpop.f32.mrf.mxu0
    %v1427 = vadd.f32 0.0, %v1426
    %v1428 = vpop.f32.mrf.mxu0
    %1429 = vmatprep.mubr.bf16.mxu0 0
    %1430 = vmatmul.mubr.bf16.gmra.mxu0 %v1205
    %v1431 = vpop.f32.mrf.mxu0
    %v1432 = vadd.f32 0.0, %v1431
    %v1433 = vpop.f32.mrf.mxu0
    %v1434 = vpop.f32.mrf.mxu0
    %v1435 = vadd.f32 0.0, %v1434
    %v1436 = vpop.f32.mrf.mxu0
    %1437 = vmatprep.mubr.bf16.mxu0 0
    %1438 = vmatmul.mubr.bf16.gmra.mxu0 %v1206
    %v1439 = vpop.f32.mrf.mxu0
    %v1440 = vadd.f32 0.0, %v1439
    %v1441 = vpop.f32.mrf.mxu0
    %v1442 = vpop.f32.mrf.mxu0
    %v1443 = vadd.f32 0.0, %v1442
    %v1444 = vpop.f32.mrf.mxu0
    %1445 = vmatprep.mubr.bf16.mxu0 0
    %1446 = vmatmul.mubr.bf16.gmra.mxu0 %v1207
    %v1447 = vpop.f32.mrf.mxu0
    %v1448 = vadd.f32 0.0, %v1447
    %v1449 = vpop.f32.mrf.mxu0
    %v1450 = vpop.f32.mrf.mxu0
    %v1451 = vadd.f32 0.0, %v1450
    %v1452 = vpop.f32.mrf.mxu0
    %1453 = vdwg.mxu0
    %v1456 = vunpack.c.l.b16 %v1039
    %v1457 = vunpack.c.l.b16 %v1040
    %v1458 = vpack.c.b16 %v1457, %v1456
    %v1476 = vunpack.c.l.b16 %v1078
    %v1477 = vunpack.c.l.b16 %v1079
    %v1478 = vunpack.c.l.b16 %v1080
    %v1479 = vunpack.c.l.b16 %v1081
    %v1480 = vunpack.c.l.b16 %v1082
    %v1481 = vunpack.c.l.b16 %v1083
    %v1482 = vunpack.c.l.b16 %v1084
    %v1483 = vunpack.c.l.b16 %v1085
    %v1484 = vunpack.c.l.b16 %v1086
    %v1485 = vunpack.c.l.b16 %v1087
    %v1486 = vunpack.c.l.b16 %v1088
    %v1487 = vunpack.c.l.b16 %v1089
    %v1488 = vunpack.c.l.b16 %v1090
    %v1489 = vunpack.c.l.b16 %v1091
    %v1490 = vunpack.c.l.b16 %v1092
    %v1491 = vunpack.c.l.b16 %v1093
    %v1492 = vpack.c.b16 %v1477, %v1476
    %v1493 = vpack.c.b16 %v1479, %v1478
    %v1494 = vpack.c.b16 %v1481, %v1480
    %v1495 = vpack.c.b16 %v1483, %v1482
    %v1496 = vpack.c.b16 %v1485, %v1484
    %v1497 = vpack.c.b16 %v1487, %v1486
    %v1498 = vpack.c.b16 %v1489, %v1488
    %v1499 = vpack.c.b16 %v1491, %v1490
    %1508 = vmatprep.subr.bf16.mxu0 0
    %1509 = vmatpush1.bf16.msra.mxu0 %v1499
    %1510 = vmatprep.subr.bf16.mxu0 0
    %1511 = vmatpush1.bf16.msra.mxu0 %v1498
    %1512 = vmatprep.subr.bf16.mxu0 0
    %1513 = vmatpush1.bf16.msra.mxu0 %v1497
    %1514 = vmatprep.subr.bf16.mxu0 0
    %1515 = vmatpush1.bf16.msra.mxu0 %v1496
    %1516 = vmatprep.subr.bf16.mxu0 0
    %1517 = vmatpush1.bf16.msra.mxu0 %v1495
    %1518 = vmatprep.subr.bf16.mxu0 0
    %1519 = vmatpush1.bf16.msra.mxu0 %v1494
    %1520 = vmatprep.subr.bf16.mxu0 0
    %1521 = vmatpush1.bf16.msra.mxu0 %v1493
    %1522 = vmatprep.subr.bf16.mxu0 0
    %1523 = vmatpush1.bf16.msra.mxu0 %v1492
    %1524 = vmatprep.subr.bf16.mxu0 0
    %1525 = vmatpush2.bf16.msra.mxu0 0
    %1526 = vmatprep.subr.bf16.mxu0 0
    %1527 = vmatpush2.bf16.msra.mxu0 0
    %1528 = vmatprep.subr.bf16.mxu0 0
    %1529 = vmatpush2.bf16.msra.mxu0 0
    %1530 = vmatprep.subr.bf16.mxu0 0
    %1531 = vmatpush2.bf16.msra.mxu0 0
    %1532 = vmatprep.subr.bf16.mxu0 0
    %1533 = vmatpush2.bf16.msra.mxu0 0
    %1534 = vmatprep.subr.bf16.mxu0 0
    %1535 = vmatpush2.bf16.msra.mxu0 0
    %1536 = vmatprep.subr.bf16.mxu0 0
    %1537 = vmatpush2.bf16.msra.mxu0 0
    %1538 = vmatprep.subr.bf16.mxu0 0
    %1539 = vmatpush2.bf16.msra.mxu0 0
    %1540 = vmatprep.mubr.bf16.mxu0 0
    %1541 = vmatmul.mubr.bf16.gmra.mxu0 %v1458
    %v1542 = vpop.f32.mrf.mxu0
    %v1543 = vadd.f32 %v1310, %v1542
    %v1544 = vpop.f32.mrf.mxu0
    %v1545 = vpop.f32.mrf.mxu0
    %v1546 = vadd.f32 %v1313, %v1545
    %v1547 = vpop.f32.mrf.mxu0
    %1548 = vmatprep.mubr.bf16.mxu0 0
    %1549 = vmatmul.mubr.bf16.gmra.mxu0 %v1189
    %v1550 = vpop.f32.mrf.mxu0
    %v1551 = vadd.f32 %v1318, %v1550
    %v1552 = vpop.f32.mrf.mxu0
    %v1553 = vpop.f32.mrf.mxu0
    %v1554 = vadd.f32 %v1321, %v1553
    %v1555 = vpop.f32.mrf.mxu0
    %1556 = vmatprep.mubr.bf16.mxu0 0
    %1557 = vmatmul.mubr.bf16.gmra.mxu0 %v1190
    %v1558 = vpop.f32.mrf.mxu0
    %v1559 = vadd.f32 %v1326, %v1558
    %v1560 = vpop.f32.mrf.mxu0
    %v1561 = vpop.f32.mrf.mxu0
    %v1562 = vadd.f32 %v1329, %v1561
    %v1563 = vpop.f32.mrf.mxu0
    %1564 = vmatprep.mubr.bf16.mxu0 0
    %1565 = vmatmul.mubr.bf16.gmra.mxu0 %v1191
    %v1566 = vpop.f32.mrf.mxu0
    %v1567 = vadd.f32 %v1334, %v1566
    %v1568 = vpop.f32.mrf.mxu0
    %v1569 = vpop.f32.mrf.mxu0
    %v1570 = vadd.f32 %v1337, %v1569
    %v1571 = vpop.f32.mrf.mxu0
    %1572 = vmatprep.mubr.bf16.mxu0 0
    %1573 = vmatmul.mubr.bf16.gmra.mxu0 %v1192
    %v1574 = vpop.f32.mrf.mxu0
    %v1575 = vpop.f32.mrf.mxu0
    %v1576 = vpop.f32.mrf.mxu0
    %v1577 = vpop.f32.mrf.mxu0
    %1578 = vmatprep.mubr.bf16.mxu0 0
    %1579 = vmatmul.mubr.bf16.gmra.mxu0 %v1193
    %v1580 = vpop.f32.mrf.mxu0
    %v1581 = vadd.f32 %v1348, %v1580
    %v1582 = vpop.f32.mrf.mxu0
    %v1583 = vpop.f32.mrf.mxu0
    %v1584 = vadd.f32 %v1351, %v1583
    %v1585 = vpop.f32.mrf.mxu0
    %1586 = vmatprep.mubr.bf16.mxu0 0
    %1587 = vmatmul.mubr.bf16.gmra.mxu0 %v1194
    %v1588 = vpop.f32.mrf.mxu0
    %v1589 = vadd.f32 %v1356, %v1588
    %v1590 = vpop.f32.mrf.mxu0
    %v1591 = vpop.f32.mrf.mxu0
    %v1592 = vadd.f32 %v1359, %v1591
    %v1593 = vpop.f32.mrf.mxu0
    %1594 = vmatprep.mubr.bf16.mxu0 0
    %1595 = vmatmul.mubr.bf16.gmra.mxu0 %v1195
    %v1596 = vpop.f32.mrf.mxu0
    %v1597 = vadd.f32 %v1364, %v1596
    %v1598 = vpop.f32.mrf.mxu0
    %v1599 = vpop.f32.mrf.mxu0
    %v1600 = vadd.f32 %v1367, %v1599
    %v1601 = vpop.f32.mrf.mxu0
    %1602 = vmatprep.mubr.bf16.mxu0 0
    %1603 = vmatmul.mubr.bf16.gmra.mxu0 %v1196
    %v1604 = vpop.f32.mrf.mxu0
    %v1605 = vadd.f32 %v1372, %v1604
    %v1606 = vpop.f32.mrf.mxu0
    %v1607 = vpop.f32.mrf.mxu0
    %v1608 = vadd.f32 %v1375, %v1607
    %v1609 = vpop.f32.mrf.mxu0
    %1610 = vmatprep.mubr.bf16.mxu0 0
    %1611 = vmatmul.mubr.bf16.gmra.mxu0 %v1197
    %v1612 = vpop.f32.mrf.mxu0
    %v1613 = vpop.f32.mrf.mxu0
    %v1614 = vpop.f32.mrf.mxu0
    %v1615 = vpop.f32.mrf.mxu0
    %1616 = vmatprep.mubr.bf16.mxu0 0
    %1617 = vmatmul.mubr.bf16.gmra.mxu0 %v1198
    %v1618 = vpop.f32.mrf.mxu0
    %v1619 = vadd.f32 %v1386, %v1618
    %v1620 = vpop.f32.mrf.mxu0
    %v1621 = vpop.f32.mrf.mxu0
    %v1622 = vadd.f32 %v1389, %v1621
    %v1623 = vpop.f32.mrf.mxu0
    %1624 = vmatprep.mubr.bf16.mxu0 0
    %1625 = vmatmul.mubr.bf16.gmra.mxu0 %v1199
    %v1626 = vpop.f32.mrf.mxu0
    %v1627 = vadd.f32 %v1394, %v1626
    %v1628 = vpop.f32.mrf.mxu0
    %v1629 = vpop.f32.mrf.mxu0
    %v1630 = vadd.f32 %v1397, %v1629
    %v1631 = vpop.f32.mrf.mxu0
    %1632 = vmatprep.mubr.bf16.mxu0 0
    %1633 = vmatmul.mubr.bf16.gmra.mxu0 %v1200
    %v1634 = vpop.f32.mrf.mxu0
    %v1635 = vadd.f32 %v1402, %v1634
    %v1636 = vpop.f32.mrf.mxu0
    %v1637 = vpop.f32.mrf.mxu0
    %v1638 = vadd.f32 %v1405, %v1637
    %v1639 = vpop.f32.mrf.mxu0
    %1640 = vmatprep.mubr.bf16.mxu0 0
    %1641 = vmatmul.mubr.bf16.gmra.mxu0 %v1201
    %v1642 = vpop.f32.mrf.mxu0
    %v1643 = vadd.f32 %v1410, %v1642
    %v1644 = vpop.f32.mrf.mxu0
    %v1645 = vpop.f32.mrf.mxu0
    %v1646 = vadd.f32 %v1413, %v1645
    %v1647 = vpop.f32.mrf.mxu0
    %1648 = vmatprep.mubr.bf16.mxu0 0
    %1649 = vmatmul.mubr.bf16.gmra.mxu0 %v1202
    %v1650 = vpop.f32.mrf.mxu0
    %v1651 = vpop.f32.mrf.mxu0
    %v1652 = vpop.f32.mrf.mxu0
    %v1653 = vpop.f32.mrf.mxu0
    %1654 = vmatprep.mubr.bf16.mxu0 0
    %1655 = vmatmul.mubr.bf16.gmra.mxu0 %v1203
    %v1656 = vpop.f32.mrf.mxu0
    %v1657 = vadd.f32 %v1424, %v1656
    %v1658 = vpop.f32.mrf.mxu0
    %v1659 = vpop.f32.mrf.mxu0
    %v1660 = vadd.f32 %v1427, %v1659
    %v1661 = vpop.f32.mrf.mxu0
    %1662 = vmatprep.mubr.bf16.mxu0 0
    %1663 = vmatmul.mubr.bf16.gmra.mxu0 %v1204
    %v1664 = vpop.f32.mrf.mxu0
    %v1665 = vadd.f32 %v1432, %v1664
    %v1666 = vpop.f32.mrf.mxu0
    %v1667 = vpop.f32.mrf.mxu0
    %v1668 = vadd.f32 %v1435, %v1667
    %v1669 = vpop.f32.mrf.mxu0
    %1670 = vmatprep.mubr.bf16.mxu0 0
    %1671 = vmatmul.mubr.bf16.gmra.mxu0 %v1205
    %v1672 = vpop.f32.mrf.mxu0
    %v1673 = vadd.f32 %v1440, %v1672
    %v1674 = vpop.f32.mrf.mxu0
    %v1675 = vpop.f32.mrf.mxu0
    %v1676 = vadd.f32 %v1443, %v1675
    %v1677 = vpop.f32.mrf.mxu0
    %1678 = vmatprep.mubr.bf16.mxu0 0
    %1679 = vmatmul.mubr.bf16.gmra.mxu0 %v1206
    %v1680 = vpop.f32.mrf.mxu0
    %v1681 = vadd.f32 %v1448, %v1680
    %v1682 = vpop.f32.mrf.mxu0
    %v1683 = vpop.f32.mrf.mxu0
    %v1684 = vadd.f32 %v1451, %v1683
    %v1685 = vpop.f32.mrf.mxu0
    %1686 = vdwg.mxu0
    %vm1687 = vcmp.eq.s32.totalorder %v1007, 0
    %vm1688 = vcmp.eq.s32.totalorder %v1008, 0
    %vm1689 = vcmp.eq.s32.totalorder %v1009, 0
    %vm1690 = vcmp.eq.s32.totalorder %v1010, 0
    %vm1691 = vcmp.eq.s32.totalorder %v1011, 0
    %vm1692 = vcmp.eq.s32.totalorder %v1012, 0
    %vm1693 = vcmp.eq.s32.totalorder %v1013, 0
    %vm1694 = vcmp.eq.s32.totalorder %v1014, 0
    %vm1695 = vcmp.eq.s32.totalorder %v1015, 0
    %vm1696 = vcmp.eq.s32.totalorder %v1016, 0
    %vm1697 = vcmp.eq.s32.totalorder %v1017, 0
    %vm1698 = vcmp.eq.s32.totalorder %v1018, 0
    %vm1699 = vcmp.eq.s32.totalorder %v1019, 0
    %vm1700 = vcmp.eq.s32.totalorder %v1020, 0
    %vm1701 = vcmp.eq.s32.totalorder %v1021, 0
    %vm1702 = vcmp.eq.s32.totalorder %v1022, 0
    %vm1703 = vcmp.eq.s32.totalorder %v1023, 0
    %vm1704 = vcmp.eq.s32.totalorder %v1024, 0
    %vm1705 = vcmp.eq.s32.totalorder %v1025, 0
    %vm1706 = vcmp.eq.s32.totalorder %v1026, 0
    %vm1707 = vcmp.eq.s32.totalorder %v1027, 0
    %vm1708 = vcmp.eq.s32.totalorder %v1028, 0
    %vm1709 = vcmp.eq.s32.totalorder %v1029, 0
    %vm1710 = vcmp.eq.s32.totalorder %v1030, 0
    %vm1711 = vcmp.eq.s32.totalorder %v1031, 0
    %vm1712 = vcmp.eq.s32.totalorder %v1032, 0
    %vm1713 = vcmp.eq.s32.totalorder %v1033, 0
    %vm1714 = vcmp.eq.s32.totalorder %v1034, 0
    %vm1715 = vcmp.eq.s32.totalorder %v1035, 0
    %vm1716 = vcmp.eq.s32.totalorder %v1036, 0
    %vm1717 = vcmp.eq.s32.totalorder %v1037, 0
    %vm1718 = vcmp.eq.s32.totalorder %v1038, 0
    %v1719 = vld [vmem:[#allocation2] sm:$0x8]
    %v1720 = vld [vmem:[#allocation6] sm:$0xf]
    %v1721 = vld [vmem:[#allocation6 + $0x4] sm:$0xf]
    %v1722 = vld [vmem:[#allocation6 + $0x8] sm:$0xf]
    %v1723 = vld [vmem:[#allocation6 + $0xc] sm:$0xf]
    %v1724 = vld [vmem:[#allocation6 + $0x10] sm:$0xf]
    %v1725 = vld [vmem:[#allocation6 + $0x14] sm:$0xf]
    %v1726 = vld [vmem:[#allocation6 + $0x18] sm:$0xf]
    %v1727 = vld [vmem:[#allocation6 + $0x1c] sm:$0xf]
    %v1728 = vld [vmem:[#allocation6 + $0x20] sm:$0xf]
    %v1729 = vld [vmem:[#allocation6 + $0x24] sm:$0xf]
    %v1730 = vld [vmem:[#allocation6 + $0x28] sm:$0xf]
    %v1731 = vld [vmem:[#allocation6 + $0x2c] sm:$0xf]
    %v1732 = vld [vmem:[#allocation6 + $0x30] sm:$0xf]
    %v1733 = vld [vmem:[#allocation6 + $0x34] sm:$0xf]
    %v1734 = vld [vmem:[#allocation6 + $0x38] sm:$0xf]
    %v1735 = vld [vmem:[#allocation6 + $0x3c] sm:$0xf]
    %v1736 = vld [vmem:[#allocation2 + $0x4] sm:$0x8]
    %v1737 = vld [vmem:[#allocation2 + $0x8] sm:$0xf]
    %v1738 = vld [vmem:[#allocation2 + $0xc] sm:$0xf]
    %v1739 = vld [vmem:[#allocation2 + $0x10] sm:$0xf]
    %v1740 = vld [vmem:[#allocation2 + $0x14] sm:$0xf]
    %v1741 = vld [vmem:[#allocation2 + $0x18] sm:$0xf]
    %v1742 = vld [vmem:[#allocation2 + $0x1c] sm:$0xf]
    %v1743 = vld [vmem:[#allocation2 + $0x20] sm:$0xf]
    %v1744 = vld [vmem:[#allocation2 + $0x24] sm:$0xf]
    %v1745 = vld [vmem:[#allocation2 + $0x28] sm:$0xf]
    %v1746 = vld [vmem:[#allocation2 + $0x2c] sm:$0xf]
    %v1747 = vld [vmem:[#allocation2 + $0x30] sm:$0xf]
    %v1748 = vld [vmem:[#allocation2 + $0x34] sm:$0xf]
    %v1749 = vld [vmem:[#allocation2 + $0x38] sm:$0xf]
    %v1750 = vld [vmem:[#allocation2 + $0x3c] sm:$0xf]
    %v1751 = vld [vmem:[#allocation2 + $0x40] sm:$0xf]
    %v1752 = vld [vmem:[#allocation2 + $0x44] sm:$0xf]
    %v1753 = vld [vmem:[#allocation2 + $0x48] sm:$0xf]
    %v1754 = vld [vmem:[#allocation2 + $0x4c] sm:$0xf]
    %v1755 = vld [vmem:[#allocation2 + $0x50] sm:$0xf]
    %v1756 = vld [vmem:[#allocation2 + $0x54] sm:$0xf]
    %v1757 = vld [vmem:[#allocation2 + $0x58] sm:$0xf]
    %v1758 = vld [vmem:[#allocation2 + $0x5c] sm:$0xf]
    %v1759 = vld [vmem:[#allocation2 + $0x60] sm:$0xf]
    %v1760 = vld [vmem:[#allocation2 + $0x64] sm:$0xf]
    %v1761 = vld [vmem:[#allocation2 + $0x68] sm:$0xf]
    %v1762 = vld [vmem:[#allocation2 + $0x6c] sm:$0xf]
    %v1763 = vld [vmem:[#allocation2 + $0x70] sm:$0xf]
    %v1764 = vld [vmem:[#allocation2 + $0x74] sm:$0xf]
    %v1765 = vld [vmem:[#allocation2 + $0x78] sm:$0xf]
    %v1766 = vld [vmem:[#allocation2 + $0x7c] sm:$0xf]
    %v1767 = vld [vmem:[#allocation2 + $0x80] sm:$0xf]
    %v1768 = vld [vmem:[#allocation2 + $0x84] sm:$0xf]
    %v1769 = vld [vmem:[#allocation2 + $0x88] sm:$0xf]
    %v1770 = vld [vmem:[#allocation2 + $0x8c] sm:$0xf]
    %v1771 = vld [vmem:[#allocation2 + $0x90] sm:$0xf]
    %v1772 = vld [vmem:[#allocation2 + $0x94] sm:$0xf]
    %v1773 = vld [vmem:[#allocation2 + $0x98] sm:$0xf]
    %v1774 = vld [vmem:[#allocation2 + $0x9c] sm:$0xf]
    %s1775 = scalar_lea.vmem [#allocation6], 192
    %v1776 = vld [vmem:[%s1775] sm:$0xf]
    %v1777 = vld [vmem:[%s1775 + $0x4] sm:$0xf]
    %v1778 = vld [vmem:[%s1775 + $0x8] sm:$0xf]
    %v1779 = vld [vmem:[%s1775 + $0xc] sm:$0xf]
    %v1780 = vld [vmem:[%s1775 + $0x10] sm:$0xf]
    %v1781 = vld [vmem:[%s1775 + $0x14] sm:$0xf]
    %v1782 = vld [vmem:[%s1775 + $0x18] sm:$0xf]
    %v1783 = vld [vmem:[%s1775 + $0x1c] sm:$0xf]
    %v1784 = vld [vmem:[%s1775 + $0x20] sm:$0xf]
    %v1785 = vld [vmem:[%s1775 + $0x24] sm:$0xf]
    %v1786 = vld [vmem:[%s1775 + $0x28] sm:$0xf]
    %v1787 = vld [vmem:[%s1775 + $0x2c] sm:$0xf]
    %v1788 = vld [vmem:[%s1775 + $0x30] sm:$0xf]
    %v1789 = vld [vmem:[%s1775 + $0x34] sm:$0xf]
    %v1790 = vld [vmem:[%s1775 + $0x38] sm:$0xf]
    %v1791 = vld [vmem:[%s1775 + $0x3c] sm:$0xf]
    %v1831 = vunpack.c.l.b16 %v1736
    %v1832 = vunpack.c.l.b16 %v1737
    %v1833 = vunpack.c.l.b16 %v1738
    %v1834 = vunpack.c.l.b16 %v1739
    %v1835 = vunpack.c.l.b16 %v1740
    %v1836 = vunpack.c.l.b16 %v1741
    %v1837 = vunpack.c.l.b16 %v1742
    %v1838 = vunpack.c.l.b16 %v1743
    %v1839 = vunpack.c.l.b16 %v1744
    %v1840 = vunpack.c.l.b16 %v1745
    %v1841 = vunpack.c.l.b16 %v1746
    %v1842 = vunpack.c.l.b16 %v1747
    %v1843 = vunpack.c.l.b16 %v1748
    %v1844 = vunpack.c.l.b16 %v1749
    %v1845 = vunpack.c.l.b16 %v1750
    %v1846 = vunpack.c.l.b16 %v1751
    %v1847 = vunpack.c.l.b16 %v1752
    %v1848 = vunpack.c.l.b16 %v1753
    %v1849 = vunpack.c.l.b16 %v1754
    %v1850 = vunpack.c.l.b16 %v1755
    %v1851 = vunpack.c.l.b16 %v1756
    %v1852 = vunpack.c.l.b16 %v1757
    %v1853 = vunpack.c.l.b16 %v1758
    %v1854 = vunpack.c.l.b16 %v1759
    %v1855 = vunpack.c.l.b16 %v1760
    %v1856 = vunpack.c.l.b16 %v1761
    %v1857 = vunpack.c.l.b16 %v1762
    %v1858 = vunpack.c.l.b16 %v1763
    %v1859 = vunpack.c.l.b16 %v1764
    %v1860 = vunpack.c.l.b16 %v1765
    %v1861 = vunpack.c.l.b16 %v1766
    %v1862 = vunpack.c.l.b16 %v1767
    %v1863 = vunpack.c.l.b16 %v1768
    %v1864 = vunpack.c.l.b16 %v1769
    %v1865 = vunpack.c.l.b16 %v1770
    %v1866 = vunpack.c.l.b16 %v1771
    %v1867 = vunpack.c.l.b16 %v1772
    %v1868 = vunpack.c.l.b16 %v1773
    %v1869 = vunpack.c.l.b16 %v1774
    %v1870 = vpack.c.b16 %v1832, %v1831
    %v1871 = vpack.c.b16 %v1834, %v1833
    %v1872 = vpack.c.b16 %v1836, %v1835
    %v1873 = vpack.c.b16 %v1838, %v1837
    %v1874 = vpack.c.b16 %v1840, %v1839
    %v1875 = vpack.c.b16 %v1842, %v1841
    %v1876 = vpack.c.b16 %v1844, %v1843
    %v1877 = vpack.c.b16 %v1846, %v1845
    %v1878 = vpack.c.b16 %v1848, %v1847
    %v1879 = vpack.c.b16 %v1850, %v1849
    %v1880 = vpack.c.b16 %v1852, %v1851
    %v1881 = vpack.c.b16 %v1854, %v1853
    %v1882 = vpack.c.b16 %v1856, %v1855
    %v1883 = vpack.c.b16 %v1858, %v1857
    %v1884 = vpack.c.b16 %v1860, %v1859
    %v1885 = vpack.c.b16 %v1862, %v1861
    %v1886 = vpack.c.b16 %v1864, %v1863
    %v1887 = vpack.c.b16 %v1866, %v1865
    %v1888 = vpack.c.b16 %v1868, %v1867
    %v1889 = vpack.c.b16 %v1869, %v1869
    %vm1890 = vsmask.f32 4352
    %v1892 = vshrl.u32 %v1870, 16
    %v1894 = vrot.slane %v1892, 3
    %v1895 = vshll.u32 %v1870, 16
    %v1897 = vrot.slane %v1895, 4
    %v1898 = vor.u32 %v1894, %v1897
    %v1900 = vshrl.u32 %v1871, 16
    %v1902 = vrot.slane %v1900, 3
    %v1903 = vshll.u32 %v1871, 16
    %v1905 = vrot.slane %v1903, 4
    %v1906 = vor.u32 %v1902, %v1905
    %v1907 = vsel %vm1890, %v1898, %v1906
    %v1909 = vshrl.u32 %v1872, 16
    %v1911 = vrot.slane %v1909, 3
    %v1912 = vshll.u32 %v1872, 16
    %v1914 = vrot.slane %v1912, 4
    %v1915 = vor.u32 %v1911, %v1914
    %v1916 = vsel %vm1890, %v1906, %v1915
    %v1918 = vshrl.u32 %v1873, 16
    %v1920 = vrot.slane %v1918, 3
    %v1921 = vshll.u32 %v1873, 16
    %v1923 = vrot.slane %v1921, 4
    %v1924 = vor.u32 %v1920, %v1923
    %v1925 = vsel %vm1890, %v1915, %v1924
    %v1927 = vshrl.u32 %v1874, 16
    %v1929 = vrot.slane %v1927, 3
    %v1930 = vshll.u32 %v1874, 16
    %v1932 = vrot.slane %v1930, 4
    %v1933 = vor.u32 %v1929, %v1932
    %v1934 = vsel %vm1890, %v1924, %v1933
    %v1936 = vshrl.u32 %v1875, 16
    %v1938 = vrot.slane %v1936, 3
    %v1939 = vshll.u32 %v1875, 16
    %v1941 = vrot.slane %v1939, 4
    %v1942 = vor.u32 %v1938, %v1941
    %v1943 = vsel %vm1890, %v1933, %v1942
    %v1945 = vshrl.u32 %v1876, 16
    %v1947 = vrot.slane %v1945, 3
    %v1948 = vshll.u32 %v1876, 16
    %v1950 = vrot.slane %v1948, 4
    %v1951 = vor.u32 %v1947, %v1950
    %v1952 = vsel %vm1890, %v1942, %v1951
    %v1954 = vshrl.u32 %v1877, 16
    %v1956 = vrot.slane %v1954, 3
    %v1957 = vshll.u32 %v1877, 16
    %v1959 = vrot.slane %v1957, 4
    %v1960 = vor.u32 %v1956, %v1959
    %v1961 = vsel %vm1890, %v1951, %v1960
    %v1963 = vshrl.u32 %v1878, 16
    %v1965 = vrot.slane %v1963, 3
    %v1966 = vshll.u32 %v1878, 16
    %v1968 = vrot.slane %v1966, 4
    %v1969 = vor.u32 %v1965, %v1968
    %v1970 = vsel %vm1890, %v1960, %v1969
    %v1972 = vshrl.u32 %v1879, 16
    %v1974 = vrot.slane %v1972, 3
    %v1975 = vshll.u32 %v1879, 16
    %v1977 = vrot.slane %v1975, 4
    %v1978 = vor.u32 %v1974, %v1977
    %v1979 = vsel %vm1890, %v1969, %v1978
    %v1981 = vshrl.u32 %v1880, 16
    %v1983 = vrot.slane %v1981, 3
    %v1984 = vshll.u32 %v1880, 16
    %v1986 = vrot.slane %v1984, 4
    %v1987 = vor.u32 %v1983, %v1986
    %v1988 = vsel %vm1890, %v1978, %v1987
    %v1990 = vshrl.u32 %v1881, 16
    %v1992 = vrot.slane %v1990, 3
    %v1993 = vshll.u32 %v1881, 16
    %v1995 = vrot.slane %v1993, 4
    %v1996 = vor.u32 %v1992, %v1995
    %v1997 = vsel %vm1890, %v1987, %v1996
    %v1999 = vshrl.u32 %v1882, 16
    %v2001 = vrot.slane %v1999, 3
    %v2002 = vshll.u32 %v1882, 16
    %v2004 = vrot.slane %v2002, 4
    %v2005 = vor.u32 %v2001, %v2004
    %v2006 = vsel %vm1890, %v1996, %v2005
    %v2008 = vshrl.u32 %v1883, 16
    %v2010 = vrot.slane %v2008, 3
    %v2011 = vshll.u32 %v1883, 16
    %v2013 = vrot.slane %v2011, 4
    %v2014 = vor.u32 %v2010, %v2013
    %v2015 = vsel %vm1890, %v2005, %v2014
    %v2017 = vshrl.u32 %v1884, 16
    %v2019 = vrot.slane %v2017, 3
    %v2020 = vshll.u32 %v1884, 16
    %v2022 = vrot.slane %v2020, 4
    %v2023 = vor.u32 %v2019, %v2022
    %v2024 = vsel %vm1890, %v2014, %v2023
    %v2026 = vshrl.u32 %v1885, 16
    %v2028 = vrot.slane %v2026, 3
    %v2029 = vshll.u32 %v1885, 16
    %v2031 = vrot.slane %v2029, 4
    %v2032 = vor.u32 %v2028, %v2031
    %v2033 = vsel %vm1890, %v2023, %v2032
    %v2035 = vshrl.u32 %v1886, 16
    %v2037 = vrot.slane %v2035, 3
    %v2038 = vshll.u32 %v1886, 16
    %v2040 = vrot.slane %v2038, 4
    %v2041 = vor.u32 %v2037, %v2040
    %v2042 = vsel %vm1890, %v2032, %v2041
    %v2044 = vshrl.u32 %v1887, 16
    %v2046 = vrot.slane %v2044, 3
    %v2047 = vshll.u32 %v1887, 16
    %v2049 = vrot.slane %v2047, 4
    %v2050 = vor.u32 %v2046, %v2049
    %v2051 = vsel %vm1890, %v2041, %v2050
    %v2053 = vshrl.u32 %v1888, 16
    %v2055 = vrot.slane %v2053, 3
    %v2056 = vshll.u32 %v1888, 16
    %v2058 = vrot.slane %v2056, 4
    %v2059 = vor.u32 %v2055, %v2058
    %v2060 = vsel %vm1890, %v2050, %v2059
    %v2062 = vshrl.u32 %v1889, 16
    %v2064 = vrot.slane %v2062, 3
    %v2065 = vshll.u32 %v1889, 16
    %v2067 = vrot.slane %v2065, 4
    %v2068 = vor.u32 %v2064, %v2067
    %v2069 = vsel %vm1890, %v2059, %v2068
    %v2105 = vunpack.c.l.b16 %v1776
    %v2106 = vunpack.c.l.b16 %v1777
    %v2107 = vunpack.c.l.b16 %v1778
    %v2108 = vunpack.c.l.b16 %v1779
    %v2109 = vunpack.c.l.b16 %v1780
    %v2110 = vunpack.c.l.b16 %v1781
    %v2111 = vunpack.c.l.b16 %v1782
    %v2112 = vunpack.c.l.b16 %v1783
    %v2113 = vunpack.c.l.b16 %v1784
    %v2114 = vunpack.c.l.b16 %v1785
    %v2115 = vunpack.c.l.b16 %v1786
    %v2116 = vunpack.c.l.b16 %v1787
    %v2117 = vunpack.c.l.b16 %v1788
    %v2118 = vunpack.c.l.b16 %v1789
    %v2119 = vunpack.c.l.b16 %v1790
    %v2120 = vunpack.c.l.b16 %v1791
    %v2121 = vpack.c.b16 %v2106, %v2105
    %v2122 = vpack.c.b16 %v2108, %v2107
    %v2123 = vpack.c.b16 %v2110, %v2109
    %v2124 = vpack.c.b16 %v2112, %v2111
    %v2125 = vpack.c.b16 %v2114, %v2113
    %v2126 = vpack.c.b16 %v2116, %v2115
    %v2127 = vpack.c.b16 %v2118, %v2117
    %v2128 = vpack.c.b16 %v2120, %v2119
    %2137 = vmatprep.subr.bf16.mxu0 0
    %2138 = vmatpush1.bf16.msra.mxu0 %v2128
    %2139 = vmatprep.subr.bf16.mxu0 0
    %2140 = vmatpush1.bf16.msra.mxu0 %v2127
    %2141 = vmatprep.subr.bf16.mxu0 0
    %2142 = vmatpush1.bf16.msra.mxu0 %v2126
    %2143 = vmatprep.subr.bf16.mxu0 0
    %2144 = vmatpush1.bf16.msra.mxu0 %v2125
    %2145 = vmatprep.subr.bf16.mxu0 0
    %2146 = vmatpush1.bf16.msra.mxu0 %v2124
    %2147 = vmatprep.subr.bf16.mxu0 0
    %2148 = vmatpush1.bf16.msra.mxu0 %v2123
    %2149 = vmatprep.subr.bf16.mxu0 0
    %2150 = vmatpush1.bf16.msra.mxu0 %v2122
    %2151 = vmatprep.subr.bf16.mxu0 0
    %2152 = vmatpush1.bf16.msra.mxu0 %v2121
    %2153 = vmatprep.subr.bf16.mxu0 0
    %2154 = vmatpush2.bf16.msra.mxu0 0
    %2155 = vmatprep.subr.bf16.mxu0 0
    %2156 = vmatpush2.bf16.msra.mxu0 0
    %2157 = vmatprep.subr.bf16.mxu0 0
    %2158 = vmatpush2.bf16.msra.mxu0 0
    %2159 = vmatprep.subr.bf16.mxu0 0
    %2160 = vmatpush2.bf16.msra.mxu0 0
    %2161 = vmatprep.subr.bf16.mxu0 0
    %2162 = vmatpush2.bf16.msra.mxu0 0
    %2163 = vmatprep.subr.bf16.mxu0 0
    %2164 = vmatpush2.bf16.msra.mxu0 0
    %2165 = vmatprep.subr.bf16.mxu0 0
    %2166 = vmatpush2.bf16.msra.mxu0 0
    %2167 = vmatprep.subr.bf16.mxu0 0
    %2168 = vmatpush2.bf16.msra.mxu0 0
    %2169 = vmatprep.mubr.bf16.mxu0 0
    %2170 = vmatmul.mubr.bf16.gmra.mxu0 %v1907
    %v2171 = vpop.f32.mrf.mxu0
    %v2172 = vadd.f32 0.0, %v2171
    %v2173 = vpop.f32.mrf.mxu0
    %v2174 = vpop.f32.mrf.mxu0
    %v2175 = vadd.f32 0.0, %v2174
    %v2176 = vpop.f32.mrf.mxu0
    %2177 = vmatprep.mubr.bf16.mxu0 0
    %2178 = vmatmul.mubr.bf16.gmra.mxu0 %v1916
    %v2179 = vpop.f32.mrf.mxu0
    %v2180 = vadd.f32 0.0, %v2179
    %v2181 = vpop.f32.mrf.mxu0
    %v2182 = vpop.f32.mrf.mxu0
    %v2183 = vadd.f32 0.0, %v2182
    %v2184 = vpop.f32.mrf.mxu0
    %2185 = vmatprep.mubr.bf16.mxu0 0
    %2186 = vmatmul.mubr.bf16.gmra.mxu0 %v1925
    %v2187 = vpop.f32.mrf.mxu0
    %v2188 = vadd.f32 0.0, %v2187
    %v2189 = vpop.f32.mrf.mxu0
    %v2190 = vpop.f32.mrf.mxu0
    %v2191 = vadd.f32 0.0, %v2190
    %v2192 = vpop.f32.mrf.mxu0
    %2193 = vmatprep.mubr.bf16.mxu0 0
    %2194 = vmatmul.mubr.bf16.gmra.mxu0 %v1934
    %v2195 = vpop.f32.mrf.mxu0
    %v2196 = vadd.f32 0.0, %v2195
    %v2197 = vpop.f32.mrf.mxu0
    %v2198 = vpop.f32.mrf.mxu0
    %v2199 = vadd.f32 0.0, %v2198
    %v2200 = vpop.f32.mrf.mxu0
    %2201 = vmatprep.mubr.bf16.mxu0 0
    %2202 = vmatmul.mubr.bf16.gmra.mxu0 %v1943
    %v2203 = vpop.f32.mrf.mxu0
    %v2204 = vpop.f32.mrf.mxu0
    %v2205 = vpop.f32.mrf.mxu0
    %v2206 = vpop.f32.mrf.mxu0
    %2207 = vmatprep.mubr.bf16.mxu0 0
    %2208 = vmatmul.mubr.bf16.gmra.mxu0 %v1952
    %v2209 = vpop.f32.mrf.mxu0
    %v2210 = vadd.f32 0.0, %v2209
    %v2211 = vpop.f32.mrf.mxu0
    %v2212 = vpop.f32.mrf.mxu0
    %v2213 = vadd.f32 0.0, %v2212
    %v2214 = vpop.f32.mrf.mxu0
    %2215 = vmatprep.mubr.bf16.mxu0 0
    %2216 = vmatmul.mubr.bf16.gmra.mxu0 %v1961
    %v2217 = vpop.f32.mrf.mxu0
    %v2218 = vadd.f32 0.0, %v2217
    %v2219 = vpop.f32.mrf.mxu0
    %v2220 = vpop.f32.mrf.mxu0
    %v2221 = vadd.f32 0.0, %v2220
    %v2222 = vpop.f32.mrf.mxu0
    %2223 = vmatprep.mubr.bf16.mxu0 0
    %2224 = vmatmul.mubr.bf16.gmra.mxu0 %v1970
    %v2225 = vpop.f32.mrf.mxu0
    %v2226 = vadd.f32 0.0, %v2225
    %v2227 = vpop.f32.mrf.mxu0
    %v2228 = vpop.f32.mrf.mxu0
    %v2229 = vadd.f32 0.0, %v2228
    %v2230 = vpop.f32.mrf.mxu0
    %2231 = vmatprep.mubr.bf16.mxu0 0
    %2232 = vmatmul.mubr.bf16.gmra.mxu0 %v1979
    %v2233 = vpop.f32.mrf.mxu0
    %v2234 = vadd.f32 0.0, %v2233
    %v2235 = vpop.f32.mrf.mxu0
    %v2236 = vpop.f32.mrf.mxu0
    %v2237 = vadd.f32 0.0, %v2236
    %v2238 = vpop.f32.mrf.mxu0
    %2239 = vmatprep.mubr.bf16.mxu0 0
    %2240 = vmatmul.mubr.bf16.gmra.mxu0 %v1988
    %v2241 = vpop.f32.mrf.mxu0
    %v2242 = vpop.f32.mrf.mxu0
    %v2243 = vpop.f32.mrf.mxu0
    %v2244 = vpop.f32.mrf.mxu0
    %2245 = vmatprep.mubr.bf16.mxu0 0
    %2246 = vmatmul.mubr.bf16.gmra.mxu0 %v1997
    %v2247 = vpop.f32.mrf.mxu0
    %v2248 = vadd.f32 0.0, %v2247
    %v2249 = vpop.f32.mrf.mxu0
    %v2250 = vpop.f32.mrf.mxu0
    %v2251 = vadd.f32 0.0, %v2250
    %v2252 = vpop.f32.mrf.mxu0
    %2253 = vmatprep.mubr.bf16.mxu0 0
    %2254 = vmatmul.mubr.bf16.gmra.mxu0 %v2006
    %v2255 = vpop.f32.mrf.mxu0
    %v2256 = vadd.f32 0.0, %v2255
    %v2257 = vpop.f32.mrf.mxu0
    %v2258 = vpop.f32.mrf.mxu0
    %v2259 = vadd.f32 0.0, %v2258
    %v2260 = vpop.f32.mrf.mxu0
    %2261 = vmatprep.mubr.bf16.mxu0 0
    %2262 = vmatmul.mubr.bf16.gmra.mxu0 %v2015
    %v2263 = vpop.f32.mrf.mxu0
    %v2264 = vadd.f32 0.0, %v2263
    %v2265 = vpop.f32.mrf.mxu0
    %v2266 = vpop.f32.mrf.mxu0
    %v2267 = vadd.f32 0.0, %v2266
    %v2268 = vpop.f32.mrf.mxu0
    %2269 = vmatprep.mubr.bf16.mxu0 0
    %2270 = vmatmul.mubr.bf16.gmra.mxu0 %v2024
    %v2271 = vpop.f32.mrf.mxu0
    %v2272 = vadd.f32 0.0, %v2271
    %v2273 = vpop.f32.mrf.mxu0
    %v2274 = vpop.f32.mrf.mxu0
    %v2275 = vadd.f32 0.0, %v2274
    %v2276 = vpop.f32.mrf.mxu0
    %2277 = vmatprep.mubr.bf16.mxu0 0
    %2278 = vmatmul.mubr.bf16.gmra.mxu0 %v2033
    %v2279 = vpop.f32.mrf.mxu0
    %v2280 = vpop.f32.mrf.mxu0
    %v2281 = vpop.f32.mrf.mxu0
    %v2282 = vpop.f32.mrf.mxu0
    %2283 = vmatprep.mubr.bf16.mxu0 0
    %2284 = vmatmul.mubr.bf16.gmra.mxu0 %v2042
    %v2285 = vpop.f32.mrf.mxu0
    %v2286 = vadd.f32 0.0, %v2285
    %v2287 = vpop.f32.mrf.mxu0
    %v2288 = vpop.f32.mrf.mxu0
    %v2289 = vadd.f32 0.0, %v2288
    %v2290 = vpop.f32.mrf.mxu0
    %2291 = vmatprep.mubr.bf16.mxu0 0
    %2292 = vmatmul.mubr.bf16.gmra.mxu0 %v2051
    %v2293 = vpop.f32.mrf.mxu0
    %v2294 = vadd.f32 0.0, %v2293
    %v2295 = vpop.f32.mrf.mxu0
    %v2296 = vpop.f32.mrf.mxu0
    %v2297 = vadd.f32 0.0, %v2296
    %v2298 = vpop.f32.mrf.mxu0
    %2299 = vmatprep.mubr.bf16.mxu0 0
    %2300 = vmatmul.mubr.bf16.gmra.mxu0 %v2060
    %v2301 = vpop.f32.mrf.mxu0
    %v2302 = vadd.f32 0.0, %v2301
    %v2303 = vpop.f32.mrf.mxu0
    %v2304 = vpop.f32.mrf.mxu0
    %v2305 = vadd.f32 0.0, %v2304
    %v2306 = vpop.f32.mrf.mxu0
    %2307 = vmatprep.mubr.bf16.mxu0 0
    %2308 = vmatmul.mubr.bf16.gmra.mxu0 %v2069
    %v2309 = vpop.f32.mrf.mxu0
    %v2310 = vadd.f32 0.0, %v2309
    %v2311 = vpop.f32.mrf.mxu0
    %v2312 = vpop.f32.mrf.mxu0
    %v2313 = vadd.f32 0.0, %v2312
    %v2314 = vpop.f32.mrf.mxu0
    %2315 = vdwg.mxu0
    %v2317 = vunpack.c.l.b16 %v1719
    %v2318 = vpack.c.b16 %v1456, %v2317
    %v2319 = vpack.c.b16 %v1151, %v1457
    %v2320 = vpack.c.b16 %v1153, %v1152
    %v2321 = vpack.c.b16 %v1155, %v1154
    %v2322 = vpack.c.b16 %v1157, %v1156
    %v2323 = vpack.c.b16 %v1159, %v1158
    %v2324 = vpack.c.b16 %v1161, %v1160
    %v2325 = vpack.c.b16 %v1163, %v1162
    %v2326 = vpack.c.b16 %v1165, %v1164
    %v2327 = vpack.c.b16 %v1167, %v1166
    %v2328 = vpack.c.b16 %v1169, %v1168
    %v2329 = vpack.c.b16 %v1171, %v1170
    %v2330 = vpack.c.b16 %v1173, %v1172
    %v2331 = vpack.c.b16 %v1175, %v1174
    %v2332 = vpack.c.b16 %v1177, %v1176
    %v2333 = vpack.c.b16 %v1179, %v1178
    %v2334 = vpack.c.b16 %v1181, %v1180
    %v2335 = vpack.c.b16 %v1183, %v1182
    %v2336 = vpack.c.b16 %v1185, %v1184
    %v2337 = vpack.c.b16 %v1186, %v1186
    %v2339 = vshrl.u32 %v2318, 16
    %v2341 = vrot.slane %v2339, 3
    %v2342 = vshll.u32 %v2318, 16
    %v2344 = vrot.slane %v2342, 4
    %v2345 = vor.u32 %v2341, %v2344
    %v2347 = vshrl.u32 %v2319, 16
    %v2349 = vrot.slane %v2347, 3
    %v2350 = vshll.u32 %v2319, 16
    %v2352 = vrot.slane %v2350, 4
    %v2353 = vor.u32 %v2349, %v2352
    %v2354 = vsel %vm1890, %v2345, %v2353
    %v2356 = vshrl.u32 %v2320, 16
    %v2358 = vrot.slane %v2356, 3
    %v2359 = vshll.u32 %v2320, 16
    %v2361 = vrot.slane %v2359, 4
    %v2362 = vor.u32 %v2358, %v2361
    %v2363 = vsel %vm1890, %v2353, %v2362
    %v2365 = vshrl.u32 %v2321, 16
    %v2367 = vrot.slane %v2365, 3
    %v2368 = vshll.u32 %v2321, 16
    %v2370 = vrot.slane %v2368, 4
    %v2371 = vor.u32 %v2367, %v2370
    %v2372 = vsel %vm1890, %v2362, %v2371
    %v2374 = vshrl.u32 %v2322, 16
    %v2376 = vrot.slane %v2374, 3
    %v2377 = vshll.u32 %v2322, 16
    %v2379 = vrot.slane %v2377, 4
    %v2380 = vor.u32 %v2376, %v2379
    %v2381 = vsel %vm1890, %v2371, %v2380
    %v2383 = vshrl.u32 %v2323, 16
    %v2385 = vrot.slane %v2383, 3
    %v2386 = vshll.u32 %v2323, 16
    %v2388 = vrot.slane %v2386, 4
    %v2389 = vor.u32 %v2385, %v2388
    %v2390 = vsel %vm1890, %v2380, %v2389
    %v2392 = vshrl.u32 %v2324, 16
    %v2394 = vrot.slane %v2392, 3
    %v2395 = vshll.u32 %v2324, 16
    %v2397 = vrot.slane %v2395, 4
    %v2398 = vor.u32 %v2394, %v2397
    %v2399 = vsel %vm1890, %v2389, %v2398
    %v2401 = vshrl.u32 %v2325, 16
    %v2403 = vrot.slane %v2401, 3
    %v2404 = vshll.u32 %v2325, 16
    %v2406 = vrot.slane %v2404, 4
    %v2407 = vor.u32 %v2403, %v2406
    %v2408 = vsel %vm1890, %v2398, %v2407
    %v2410 = vshrl.u32 %v2326, 16
    %v2412 = vrot.slane %v2410, 3
    %v2413 = vshll.u32 %v2326, 16
    %v2415 = vrot.slane %v2413, 4
    %v2416 = vor.u32 %v2412, %v2415
    %v2417 = vsel %vm1890, %v2407, %v2416
    %v2419 = vshrl.u32 %v2327, 16
    %v2421 = vrot.slane %v2419, 3
    %v2422 = vshll.u32 %v2327, 16
    %v2424 = vrot.slane %v2422, 4
    %v2425 = vor.u32 %v2421, %v2424
    %v2426 = vsel %vm1890, %v2416, %v2425
    %v2428 = vshrl.u32 %v2328, 16
    %v2430 = vrot.slane %v2428, 3
    %v2431 = vshll.u32 %v2328, 16
    %v2433 = vrot.slane %v2431, 4
    %v2434 = vor.u32 %v2430, %v2433
    %v2435 = vsel %vm1890, %v2425, %v2434
    %v2437 = vshrl.u32 %v2329, 16
    %v2439 = vrot.slane %v2437, 3
    %v2440 = vshll.u32 %v2329, 16
    %v2442 = vrot.slane %v2440, 4
    %v2443 = vor.u32 %v2439, %v2442
    %v2444 = vsel %vm1890, %v2434, %v2443
    %v2446 = vshrl.u32 %v2330, 16
    %v2448 = vrot.slane %v2446, 3
    %v2449 = vshll.u32 %v2330, 16
    %v2451 = vrot.slane %v2449, 4
    %v2452 = vor.u32 %v2448, %v2451
    %v2453 = vsel %vm1890, %v2443, %v2452
    %v2455 = vshrl.u32 %v2331, 16
    %v2457 = vrot.slane %v2455, 3
    %v2458 = vshll.u32 %v2331, 16
    %v2460 = vrot.slane %v2458, 4
    %v2461 = vor.u32 %v2457, %v2460
    %v2462 = vsel %vm1890, %v2452, %v2461
    %v2464 = vshrl.u32 %v2332, 16
    %v2466 = vrot.slane %v2464, 3
    %v2467 = vshll.u32 %v2332, 16
    %v2469 = vrot.slane %v2467, 4
    %v2470 = vor.u32 %v2466, %v2469
    %v2471 = vsel %vm1890, %v2461, %v2470
    %v2473 = vshrl.u32 %v2333, 16
    %v2475 = vrot.slane %v2473, 3
    %v2476 = vshll.u32 %v2333, 16
    %v2478 = vrot.slane %v2476, 4
    %v2479 = vor.u32 %v2475, %v2478
    %v2480 = vsel %vm1890, %v2470, %v2479
    %v2482 = vshrl.u32 %v2334, 16
    %v2484 = vrot.slane %v2482, 3
    %v2485 = vshll.u32 %v2334, 16
    %v2487 = vrot.slane %v2485, 4
    %v2488 = vor.u32 %v2484, %v2487
    %v2489 = vsel %vm1890, %v2479, %v2488
    %v2491 = vshrl.u32 %v2335, 16
    %v2493 = vrot.slane %v2491, 3
    %v2494 = vshll.u32 %v2335, 16
    %v2496 = vrot.slane %v2494, 4
    %v2497 = vor.u32 %v2493, %v2496
    %v2498 = vsel %vm1890, %v2488, %v2497
    %v2500 = vshrl.u32 %v2336, 16
    %v2502 = vrot.slane %v2500, 3
    %v2503 = vshll.u32 %v2336, 16
    %v2505 = vrot.slane %v2503, 4
    %v2506 = vor.u32 %v2502, %v2505
    %v2507 = vsel %vm1890, %v2497, %v2506
    %v2509 = vshrl.u32 %v2337, 16
    %v2511 = vrot.slane %v2509, 3
    %v2512 = vshll.u32 %v2337, 16
    %v2514 = vrot.slane %v2512, 4
    %v2515 = vor.u32 %v2511, %v2514
    %v2516 = vsel %vm1890, %v2506, %v2515
    %v2552 = vunpack.c.l.b16 %v1720
    %v2553 = vunpack.c.l.b16 %v1721
    %v2554 = vunpack.c.l.b16 %v1722
    %v2555 = vunpack.c.l.b16 %v1723
    %v2556 = vunpack.c.l.b16 %v1724
    %v2557 = vunpack.c.l.b16 %v1725
    %v2558 = vunpack.c.l.b16 %v1726
    %v2559 = vunpack.c.l.b16 %v1727
    %v2560 = vunpack.c.l.b16 %v1728
    %v2561 = vunpack.c.l.b16 %v1729
    %v2562 = vunpack.c.l.b16 %v1730
    %v2563 = vunpack.c.l.b16 %v1731
    %v2564 = vunpack.c.l.b16 %v1732
    %v2565 = vunpack.c.l.b16 %v1733
    %v2566 = vunpack.c.l.b16 %v1734
    %v2567 = vunpack.c.l.b16 %v1735
    %v2568 = vpack.c.b16 %v2553, %v2552
    %v2569 = vpack.c.b16 %v2555, %v2554
    %v2570 = vpack.c.b16 %v2557, %v2556
    %v2571 = vpack.c.b16 %v2559, %v2558
    %v2572 = vpack.c.b16 %v2561, %v2560
    %v2573 = vpack.c.b16 %v2563, %v2562
    %v2574 = vpack.c.b16 %v2565, %v2564
    %v2575 = vpack.c.b16 %v2567, %v2566
    %2584 = vmatprep.subr.bf16.mxu0 0
    %2585 = vmatpush1.bf16.msra.mxu0 %v2575
    %2586 = vmatprep.subr.bf16.mxu0 0
    %2587 = vmatpush1.bf16.msra.mxu0 %v2574
    %2588 = vmatprep.subr.bf16.mxu0 0
    %2589 = vmatpush1.bf16.msra.mxu0 %v2573
    %2590 = vmatprep.subr.bf16.mxu0 0
    %2591 = vmatpush1.bf16.msra.mxu0 %v2572
    %2592 = vmatprep.subr.bf16.mxu0 0
    %2593 = vmatpush1.bf16.msra.mxu0 %v2571
    %2594 = vmatprep.subr.bf16.mxu0 0
    %2595 = vmatpush1.bf16.msra.mxu0 %v2570
    %2596 = vmatprep.subr.bf16.mxu0 0
    %2597 = vmatpush1.bf16.msra.mxu0 %v2569
    %2598 = vmatprep.subr.bf16.mxu0 0
    %2599 = vmatpush1.bf16.msra.mxu0 %v2568
    %2600 = vmatprep.subr.bf16.mxu0 0
    %2601 = vmatpush2.bf16.msra.mxu0 0
    %2602 = vmatprep.subr.bf16.mxu0 0
    %2603 = vmatpush2.bf16.msra.mxu0 0
    %2604 = vmatprep.subr.bf16.mxu0 0
    %2605 = vmatpush2.bf16.msra.mxu0 0
    %2606 = vmatprep.subr.bf16.mxu0 0
    %2607 = vmatpush2.bf16.msra.mxu0 0
    %2608 = vmatprep.subr.bf16.mxu0 0
    %2609 = vmatpush2.bf16.msra.mxu0 0
    %2610 = vmatprep.subr.bf16.mxu0 0
    %2611 = vmatpush2.bf16.msra.mxu0 0
    %2612 = vmatprep.subr.bf16.mxu0 0
    %2613 = vmatpush2.bf16.msra.mxu0 0
    %2614 = vmatprep.subr.bf16.mxu0 0
    %2615 = vmatpush2.bf16.msra.mxu0 0
    %2616 = vmatprep.mubr.bf16.mxu0 0
    %2617 = vmatmul.mubr.bf16.gmra.mxu0 %v2354
    %v2618 = vpop.f32.mrf.mxu0
    %v2619 = vadd.f32 %v2172, %v2618
    %v2620 = vpop.f32.mrf.mxu0
    %v2621 = vpop.f32.mrf.mxu0
    %v2622 = vadd.f32 %v2175, %v2621
    %v2623 = vpop.f32.mrf.mxu0
    %2624 = vmatprep.mubr.bf16.mxu0 0
    %2625 = vmatmul.mubr.bf16.gmra.mxu0 %v2363
    %v2626 = vpop.f32.mrf.mxu0
    %v2627 = vadd.f32 %v2180, %v2626
    %v2628 = vpop.f32.mrf.mxu0
    %v2629 = vpop.f32.mrf.mxu0
    %v2630 = vadd.f32 %v2183, %v2629
    %v2631 = vpop.f32.mrf.mxu0
    %2632 = vmatprep.mubr.bf16.mxu0 0
    %2633 = vmatmul.mubr.bf16.gmra.mxu0 %v2372
    %v2634 = vpop.f32.mrf.mxu0
    %v2635 = vadd.f32 %v2188, %v2634
    %v2636 = vpop.f32.mrf.mxu0
    %v2637 = vpop.f32.mrf.mxu0
    %v2638 = vadd.f32 %v2191, %v2637
    %v2639 = vpop.f32.mrf.mxu0
    %2640 = vmatprep.mubr.bf16.mxu0 0
    %2641 = vmatmul.mubr.bf16.gmra.mxu0 %v2381
    %v2642 = vpop.f32.mrf.mxu0
    %v2643 = vadd.f32 %v2196, %v2642
    %v2644 = vpop.f32.mrf.mxu0
    %v2645 = vpop.f32.mrf.mxu0
    %v2646 = vadd.f32 %v2199, %v2645
    %v2647 = vpop.f32.mrf.mxu0
    %2648 = vmatprep.mubr.bf16.mxu0 0
    %2649 = vmatmul.mubr.bf16.gmra.mxu0 %v2390
    %v2650 = vpop.f32.mrf.mxu0
    %v2651 = vpop.f32.mrf.mxu0
    %v2652 = vpop.f32.mrf.mxu0
    %v2653 = vpop.f32.mrf.mxu0
    %2654 = vmatprep.mubr.bf16.mxu0 0
    %2655 = vmatmul.mubr.bf16.gmra.mxu0 %v2399
    %v2656 = vpop.f32.mrf.mxu0
    %v2657 = vadd.f32 %v2210, %v2656
    %v2658 = vpop.f32.mrf.mxu0
    %v2659 = vpop.f32.mrf.mxu0
    %v2660 = vadd.f32 %v2213, %v2659
    %v2661 = vpop.f32.mrf.mxu0
    %2662 = vmatprep.mubr.bf16.mxu0 0
    %2663 = vmatmul.mubr.bf16.gmra.mxu0 %v2408
    %v2664 = vpop.f32.mrf.mxu0
    %v2665 = vadd.f32 %v2218, %v2664
    %v2666 = vpop.f32.mrf.mxu0
    %v2667 = vpop.f32.mrf.mxu0
    %v2668 = vadd.f32 %v2221, %v2667
    %v2669 = vpop.f32.mrf.mxu0
    %2670 = vmatprep.mubr.bf16.mxu0 0
    %2671 = vmatmul.mubr.bf16.gmra.mxu0 %v2417
    %v2672 = vpop.f32.mrf.mxu0
    %v2673 = vadd.f32 %v2226, %v2672
    %v2674 = vpop.f32.mrf.mxu0
    %v2675 = vpop.f32.mrf.mxu0
    %v2676 = vadd.f32 %v2229, %v2675
    %v2677 = vpop.f32.mrf.mxu0
    %2678 = vmatprep.mubr.bf16.mxu0 0
    %2679 = vmatmul.mubr.bf16.gmra.mxu0 %v2426
    %v2680 = vpop.f32.mrf.mxu0
    %v2681 = vadd.f32 %v2234, %v2680
    %v2682 = vpop.f32.mrf.mxu0
    %v2683 = vpop.f32.mrf.mxu0
    %v2684 = vadd.f32 %v2237, %v2683
    %v2685 = vpop.f32.mrf.mxu0
    %2686 = vmatprep.mubr.bf16.mxu0 0
    %2687 = vmatmul.mubr.bf16.gmra.mxu0 %v2435
    %v2688 = vpop.f32.mrf.mxu0
    %v2689 = vpop.f32.mrf.mxu0
    %v2690 = vpop.f32.mrf.mxu0
    %v2691 = vpop.f32.mrf.mxu0
    %2692 = vmatprep.mubr.bf16.mxu0 0
    %2693 = vmatmul.mubr.bf16.gmra.mxu0 %v2444
    %v2694 = vpop.f32.mrf.mxu0
    %v2695 = vadd.f32 %v2248, %v2694
    %v2696 = vpop.f32.mrf.mxu0
    %v2697 = vpop.f32.mrf.mxu0
    %v2698 = vadd.f32 %v2251, %v2697
    %v2699 = vpop.f32.mrf.mxu0
    %2700 = vmatprep.mubr.bf16.mxu0 0
    %2701 = vmatmul.mubr.bf16.gmra.mxu0 %v2453
    %v2702 = vpop.f32.mrf.mxu0
    %v2703 = vadd.f32 %v2256, %v2702
    %v2704 = vpop.f32.mrf.mxu0
    %v2705 = vpop.f32.mrf.mxu0
    %v2706 = vadd.f32 %v2259, %v2705
    %v2707 = vpop.f32.mrf.mxu0
    %2708 = vmatprep.mubr.bf16.mxu0 0
    %2709 = vmatmul.mubr.bf16.gmra.mxu0 %v2462
    %v2710 = vpop.f32.mrf.mxu0
    %v2711 = vadd.f32 %v2264, %v2710
    %v2712 = vpop.f32.mrf.mxu0
    %v2713 = vpop.f32.mrf.mxu0
    %v2714 = vadd.f32 %v2267, %v2713
    %v2715 = vpop.f32.mrf.mxu0
    %2716 = vmatprep.mubr.bf16.mxu0 0
    %2717 = vmatmul.mubr.bf16.gmra.mxu0 %v2471
    %v2718 = vpop.f32.mrf.mxu0
    %v2719 = vadd.f32 %v2272, %v2718
    %v2720 = vpop.f32.mrf.mxu0
    %v2721 = vpop.f32.mrf.mxu0
    %v2722 = vadd.f32 %v2275, %v2721
    %v2723 = vpop.f32.mrf.mxu0
    %2724 = vmatprep.mubr.bf16.mxu0 0
    %2725 = vmatmul.mubr.bf16.gmra.mxu0 %v2480
    %v2726 = vpop.f32.mrf.mxu0
    %v2727 = vpop.f32.mrf.mxu0
    %v2728 = vpop.f32.mrf.mxu0
    %v2729 = vpop.f32.mrf.mxu0
    %2730 = vmatprep.mubr.bf16.mxu0 0
    %2731 = vmatmul.mubr.bf16.gmra.mxu0 %v2489
    %v2732 = vpop.f32.mrf.mxu0
    %v2733 = vadd.f32 %v2286, %v2732
    %v2734 = vpop.f32.mrf.mxu0
    %v2735 = vpop.f32.mrf.mxu0
    %v2736 = vadd.f32 %v2289, %v2735
    %v2737 = vpop.f32.mrf.mxu0
    %2738 = vmatprep.mubr.bf16.mxu0 0
    %2739 = vmatmul.mubr.bf16.gmra.mxu0 %v2498
    %v2740 = vpop.f32.mrf.mxu0
    %v2741 = vadd.f32 %v2294, %v2740
    %v2742 = vpop.f32.mrf.mxu0
    %v2743 = vpop.f32.mrf.mxu0
    %v2744 = vadd.f32 %v2297, %v2743
    %v2745 = vpop.f32.mrf.mxu0
    %2746 = vmatprep.mubr.bf16.mxu0 0
    %2747 = vmatmul.mubr.bf16.gmra.mxu0 %v2507
    %v2748 = vpop.f32.mrf.mxu0
    %v2749 = vadd.f32 %v2302, %v2748
    %v2750 = vpop.f32.mrf.mxu0
    %v2751 = vpop.f32.mrf.mxu0
    %v2752 = vadd.f32 %v2305, %v2751
    %v2753 = vpop.f32.mrf.mxu0
    %2754 = vmatprep.mubr.bf16.mxu0 0
    %2755 = vmatmul.mubr.bf16.gmra.mxu0 %v2516
    %v2756 = vpop.f32.mrf.mxu0
    %v2757 = vadd.f32 %v2310, %v2756
    %v2758 = vpop.f32.mrf.mxu0
    %v2759 = vpop.f32.mrf.mxu0
    %v2760 = vadd.f32 %v2313, %v2759
    %v2761 = vpop.f32.mrf.mxu0
    %2762 = vdwg.mxu0
    %v2763 = vld [vmem:[#allocation2 + $0x8] sm:$0x8]
    %s2764 = scalar_lea.vmem [#allocation6], 384
    %v2765 = vld [vmem:[%s2764] sm:$0xf]
    %v2766 = vld [vmem:[%s2764 + $0x4] sm:$0xf]
    %v2767 = vld [vmem:[%s2764 + $0x8] sm:$0xf]
    %v2768 = vld [vmem:[%s2764 + $0xc] sm:$0xf]
    %v2769 = vld [vmem:[%s2764 + $0x10] sm:$0xf]
    %v2770 = vld [vmem:[%s2764 + $0x14] sm:$0xf]
    %v2771 = vld [vmem:[%s2764 + $0x18] sm:$0xf]
    %v2772 = vld [vmem:[%s2764 + $0x1c] sm:$0xf]
    %v2773 = vld [vmem:[%s2764 + $0x20] sm:$0xf]
    %v2774 = vld [vmem:[%s2764 + $0x24] sm:$0xf]
    %v2775 = vld [vmem:[%s2764 + $0x28] sm:$0xf]
    %v2776 = vld [vmem:[%s2764 + $0x2c] sm:$0xf]
    %v2777 = vld [vmem:[%s2764 + $0x30] sm:$0xf]
    %v2778 = vld [vmem:[%s2764 + $0x34] sm:$0xf]
    %v2779 = vld [vmem:[%s2764 + $0x38] sm:$0xf]
    %v2780 = vld [vmem:[%s2764 + $0x3c] sm:$0xf]
    %v2782 = vunpack.c.l.b16 %v2763
    %v2783 = vpack.c.b16 %v1151, %v2782
    %v2784 = vpack.c.b16 %v1187, %v1186
    %v2785 = vpack.c.b16 %v1188, %v1188
    %v2787 = vshrl.u32 %v2783, 16
    %v2789 = vrot.slane %v2787, 3
    %v2790 = vshll.u32 %v2783, 16
    %v2792 = vrot.slane %v2790, 4
    %v2793 = vor.u32 %v2789, %v2792
    %v2794 = vsel %vm1890, %v2793, %v2362
    %v2796 = vshrl.u32 %v2784, 16
    %v2798 = vrot.slane %v2796, 3
    %v2799 = vshll.u32 %v2784, 16
    %v2801 = vrot.slane %v2799, 4
    %v2802 = vor.u32 %v2798, %v2801
    %v2803 = vsel %vm1890, %v2506, %v2802
    %v2805 = vshrl.u32 %v2785, 16
    %v2807 = vrot.slane %v2805, 3
    %v2808 = vshll.u32 %v2785, 16
    %v2810 = vrot.slane %v2808, 4
    %v2811 = vor.u32 %v2807, %v2810
    %v2812 = vsel %vm1890, %v2802, %v2811
    %v2832 = vunpack.c.l.b16 %v2765
    %v2833 = vunpack.c.l.b16 %v2766
    %v2834 = vunpack.c.l.b16 %v2767
    %v2835 = vunpack.c.l.b16 %v2768
    %v2836 = vunpack.c.l.b16 %v2769
    %v2837 = vunpack.c.l.b16 %v2770
    %v2838 = vunpack.c.l.b16 %v2771
    %v2839 = vunpack.c.l.b16 %v2772
    %v2840 = vunpack.c.l.b16 %v2773
    %v2841 = vunpack.c.l.b16 %v2774
    %v2842 = vunpack.c.l.b16 %v2775
    %v2843 = vunpack.c.l.b16 %v2776
    %v2844 = vunpack.c.l.b16 %v2777
    %v2845 = vunpack.c.l.b16 %v2778
    %v2846 = vunpack.c.l.b16 %v2779
    %v2847 = vunpack.c.l.b16 %v2780
    %v2848 = vpack.c.b16 %v2833, %v2832
    %v2849 = vpack.c.b16 %v2835, %v2834
    %v2850 = vpack.c.b16 %v2837, %v2836
    %v2851 = vpack.c.b16 %v2839, %v2838
    %v2852 = vpack.c.b16 %v2841, %v2840
    %v2853 = vpack.c.b16 %v2843, %v2842
    %v2854 = vpack.c.b16 %v2845, %v2844
    %v2855 = vpack.c.b16 %v2847, %v2846
    %2864 = vmatprep.subr.bf16.mxu0 0
    %2865 = vmatpush1.bf16.msra.mxu0 %v2855
    %2866 = vmatprep.subr.bf16.mxu0 0
    %2867 = vmatpush1.bf16.msra.mxu0 %v2854
    %2868 = vmatprep.subr.bf16.mxu0 0
    %2869 = vmatpush1.bf16.msra.mxu0 %v2853
    %2870 = vmatprep.subr.bf16.mxu0 0
    %2871 = vmatpush1.bf16.msra.mxu0 %v2852
    %2872 = vmatprep.subr.bf16.mxu0 0
    %2873 = vmatpush1.bf16.msra.mxu0 %v2851
    %2874 = vmatprep.subr.bf16.mxu0 0
    %2875 = vmatpush1.bf16.msra.mxu0 %v2850
    %2876 = vmatprep.subr.bf16.mxu0 0
    %2877 = vmatpush1.bf16.msra.mxu0 %v2849
    %2878 = vmatprep.subr.bf16.mxu0 0
    %2879 = vmatpush1.bf16.msra.mxu0 %v2848
    %2880 = vmatprep.subr.bf16.mxu0 0
    %2881 = vmatpush2.bf16.msra.mxu0 0
    %2882 = vmatprep.subr.bf16.mxu0 0
    %2883 = vmatpush2.bf16.msra.mxu0 0
    %2884 = vmatprep.subr.bf16.mxu0 0
    %2885 = vmatpush2.bf16.msra.mxu0 0
    %2886 = vmatprep.subr.bf16.mxu0 0
    %2887 = vmatpush2.bf16.msra.mxu0 0
    %2888 = vmatprep.subr.bf16.mxu0 0
    %2889 = vmatpush2.bf16.msra.mxu0 0
    %2890 = vmatprep.subr.bf16.mxu0 0
    %2891 = vmatpush2.bf16.msra.mxu0 0
    %2892 = vmatprep.subr.bf16.mxu0 0
    %2893 = vmatpush2.bf16.msra.mxu0 0
    %2894 = vmatprep.subr.bf16.mxu0 0
    %2895 = vmatpush2.bf16.msra.mxu0 0
    %2896 = vmatprep.mubr.bf16.mxu0 0
    %2897 = vmatmul.mubr.bf16.gmra.mxu0 %v2794
    %v2898 = vpop.f32.mrf.mxu0
    %v2899 = vadd.f32 0.0, %v2898
    %v2900 = vpop.f32.mrf.mxu0
    %v2901 = vpop.f32.mrf.mxu0
    %v2902 = vadd.f32 0.0, %v2901
    %v2903 = vpop.f32.mrf.mxu0
    %2904 = vmatprep.mubr.bf16.mxu0 0
    %2905 = vmatmul.mubr.bf16.gmra.mxu0 %v2372
    %v2906 = vpop.f32.mrf.mxu0
    %v2907 = vadd.f32 0.0, %v2906
    %v2908 = vpop.f32.mrf.mxu0
    %v2909 = vpop.f32.mrf.mxu0
    %v2910 = vadd.f32 0.0, %v2909
    %v2911 = vpop.f32.mrf.mxu0
    %2912 = vmatprep.mubr.bf16.mxu0 0
    %2913 = vmatmul.mubr.bf16.gmra.mxu0 %v2381
    %v2914 = vpop.f32.mrf.mxu0
    %v2915 = vadd.f32 0.0, %v2914
    %v2916 = vpop.f32.mrf.mxu0
    %v2917 = vpop.f32.mrf.mxu0
    %v2918 = vadd.f32 0.0, %v2917
    %v2919 = vpop.f32.mrf.mxu0
    %2920 = vmatprep.mubr.bf16.mxu0 0
    %2921 = vmatmul.mubr.bf16.gmra.mxu0 %v2390
    %v2922 = vpop.f32.mrf.mxu0
    %v2923 = vadd.f32 0.0, %v2922
    %v2924 = vpop.f32.mrf.mxu0
    %v2925 = vpop.f32.mrf.mxu0
    %v2926 = vadd.f32 0.0, %v2925
    %v2927 = vpop.f32.mrf.mxu0
    %2928 = vmatprep.mubr.bf16.mxu0 0
    %2929 = vmatmul.mubr.bf16.gmra.mxu0 %v2399
    %v2930 = vpop.f32.mrf.mxu0
    %v2931 = vpop.f32.mrf.mxu0
    %v2932 = vpop.f32.mrf.mxu0
    %v2933 = vpop.f32.mrf.mxu0
    %2934 = vmatprep.mubr.bf16.mxu0 0
    %2935 = vmatmul.mubr.bf16.gmra.mxu0 %v2408
    %v2936 = vpop.f32.mrf.mxu0
    %v2937 = vadd.f32 0.0, %v2936
    %v2938 = vpop.f32.mrf.mxu0
    %v2939 = vpop.f32.mrf.mxu0
    %v2940 = vadd.f32 0.0, %v2939
    %v2941 = vpop.f32.mrf.mxu0
    %2942 = vmatprep.mubr.bf16.mxu0 0
    %2943 = vmatmul.mubr.bf16.gmra.mxu0 %v2417
    %v2944 = vpop.f32.mrf.mxu0
    %v2945 = vadd.f32 0.0, %v2944
    %v2946 = vpop.f32.mrf.mxu0
    %v2947 = vpop.f32.mrf.mxu0
    %v2948 = vadd.f32 0.0, %v2947
    %v2949 = vpop.f32.mrf.mxu0
    %2950 = vmatprep.mubr.bf16.mxu0 0
    %2951 = vmatmul.mubr.bf16.gmra.mxu0 %v2426
    %v2952 = vpop.f32.mrf.mxu0
    %v2953 = vadd.f32 0.0, %v2952
    %v2954 = vpop.f32.mrf.mxu0
    %v2955 = vpop.f32.mrf.mxu0
    %v2956 = vadd.f32 0.0, %v2955
    %v2957 = vpop.f32.mrf.mxu0
    %2958 = vmatprep.mubr.bf16.mxu0 0
    %2959 = vmatmul.mubr.bf16.gmra.mxu0 %v2435
    %v2960 = vpop.f32.mrf.mxu0
    %v2961 = vadd.f32 0.0, %v2960
    %v2962 = vpop.f32.mrf.mxu0
    %v2963 = vpop.f32.mrf.mxu0
    %v2964 = vadd.f32 0.0, %v2963
    %v2965 = vpop.f32.mrf.mxu0
    %2966 = vmatprep.mubr.bf16.mxu0 0
    %2967 = vmatmul.mubr.bf16.gmra.mxu0 %v2444
    %v2968 = vpop.f32.mrf.mxu0
    %v2969 = vpop.f32.mrf.mxu0
    %v2970 = vpop.f32.mrf.mxu0
    %v2971 = vpop.f32.mrf.mxu0
    %2972 = vmatprep.mubr.bf16.mxu0 0
    %2973 = vmatmul.mubr.bf16.gmra.mxu0 %v2453
    %v2974 = vpop.f32.mrf.mxu0
    %v2975 = vadd.f32 0.0, %v2974
    %v2976 = vpop.f32.mrf.mxu0
    %v2977 = vpop.f32.mrf.mxu0
    %v2978 = vadd.f32 0.0, %v2977
    %v2979 = vpop.f32.mrf.mxu0
    %2980 = vmatprep.mubr.bf16.mxu0 0
    %2981 = vmatmul.mubr.bf16.gmra.mxu0 %v2462
    %v2982 = vpop.f32.mrf.mxu0
    %v2983 = vadd.f32 0.0, %v2982
    %v2984 = vpop.f32.mrf.mxu0
    %v2985 = vpop.f32.mrf.mxu0
    %v2986 = vadd.f32 0.0, %v2985
    %v2987 = vpop.f32.mrf.mxu0
    %2988 = vmatprep.mubr.bf16.mxu0 0
    %2989 = vmatmul.mubr.bf16.gmra.mxu0 %v2471
    %v2990 = vpop.f32.mrf.mxu0
    %v2991 = vadd.f32 0.0, %v2990
    %v2992 = vpop.f32.mrf.mxu0
    %v2993 = vpop.f32.mrf.mxu0
    %v2994 = vadd.f32 0.0, %v2993
    %v2995 = vpop.f32.mrf.mxu0
    %2996 = vmatprep.mubr.bf16.mxu0 0
    %2997 = vmatmul.mubr.bf16.gmra.mxu0 %v2480
    %v2998 = vpop.f32.mrf.mxu0
    %v2999 = vadd.f32 0.0, %v2998
    %v3000 = vpop.f32.mrf.mxu0
    %v3001 = vpop.f32.mrf.mxu0
    %v3002 = vadd.f32 0.0, %v3001
    %v3003 = vpop.f32.mrf.mxu0
    %3004 = vmatprep.mubr.bf16.mxu0 0
    %3005 = vmatmul.mubr.bf16.gmra.mxu0 %v2489
    %v3006 = vpop.f32.mrf.mxu0
    %v3007 = vpop.f32.mrf.mxu0
    %v3008 = vpop.f32.mrf.mxu0
    %v3009 = vpop.f32.mrf.mxu0
    %3010 = vmatprep.mubr.bf16.mxu0 0
    %3011 = vmatmul.mubr.bf16.gmra.mxu0 %v2498
    %v3012 = vpop.f32.mrf.mxu0
    %v3013 = vadd.f32 0.0, %v3012
    %v3014 = vpop.f32.mrf.mxu0
    %v3015 = vpop.f32.mrf.mxu0
    %v3016 = vadd.f32 0.0, %v3015
    %v3017 = vpop.f32.mrf.mxu0
    %3018 = vmatprep.mubr.bf16.mxu0 0
    %3019 = vmatmul.mubr.bf16.gmra.mxu0 %v2507
    %v3020 = vpop.f32.mrf.mxu0
    %v3021 = vadd.f32 0.0, %v3020
    %v3022 = vpop.f32.mrf.mxu0
    %v3023 = vpop.f32.mrf.mxu0
    %v3024 = vadd.f32 0.0, %v3023
    %v3025 = vpop.f32.mrf.mxu0
    %3026 = vmatprep.mubr.bf16.mxu0 0
    %3027 = vmatmul.mubr.bf16.gmra.mxu0 %v2803
    %v3028 = vpop.f32.mrf.mxu0
    %v3029 = vadd.f32 0.0, %v3028
    %v3030 = vpop.f32.mrf.mxu0
    %v3031 = vpop.f32.mrf.mxu0
    %v3032 = vadd.f32 0.0, %v3031
    %v3033 = vpop.f32.mrf.mxu0
    %3034 = vmatprep.mubr.bf16.mxu0 0
    %3035 = vmatmul.mubr.bf16.gmra.mxu0 %v2812
    %v3036 = vpop.f32.mrf.mxu0
    %v3037 = vadd.f32 0.0, %v3036
    %v3038 = vpop.f32.mrf.mxu0
    %v3039 = vpop.f32.mrf.mxu0
    %v3040 = vadd.f32 0.0, %v3039
    %v3041 = vpop.f32.mrf.mxu0
    %3042 = vdwg.mxu0
    %v3043 = vadd.f32 %v2619, %v2899
    %v3044 = vadd.f32 %v2622, %v2902
    %v3045 = vadd.f32 %v2627, %v2907
    %v3046 = vadd.f32 %v2630, %v2910
    %v3047 = vadd.f32 %v2635, %v2915
    %v3048 = vadd.f32 %v2638, %v2918
    %v3049 = vadd.f32 %v2643, %v2923
    %v3050 = vadd.f32 %v2646, %v2926
    %v3051 = vadd.f32 %v2657, %v2937
    %v3052 = vadd.f32 %v2660, %v2940
    %v3053 = vadd.f32 %v2665, %v2945
    %v3054 = vadd.f32 %v2668, %v2948
    %v3055 = vadd.f32 %v2673, %v2953
    %v3056 = vadd.f32 %v2676, %v2956
    %v3057 = vadd.f32 %v2681, %v2961
    %v3058 = vadd.f32 %v2684, %v2964
    %v3059 = vadd.f32 %v2695, %v2975
    %v3060 = vadd.f32 %v2698, %v2978
    %v3061 = vadd.f32 %v2703, %v2983
    %v3062 = vadd.f32 %v2706, %v2986
    %v3063 = vadd.f32 %v2711, %v2991
    %v3064 = vadd.f32 %v2714, %v2994
    %v3065 = vadd.f32 %v2719, %v2999
    %v3066 = vadd.f32 %v2722, %v3002
    %v3067 = vadd.f32 %v2733, %v3013
    %v3068 = vadd.f32 %v2736, %v3016
    %v3069 = vadd.f32 %v2741, %v3021
    %v3070 = vadd.f32 %v2744, %v3024
    %v3071 = vadd.f32 %v2749, %v3029
    %v3072 = vadd.f32 %v2752, %v3032
    %v3073 = vadd.f32 %v2757, %v3037
    %v3074 = vadd.f32 %v2760, %v3040
    %v3075 = vsel %vm1687, 0.0, %v3043
    %v3076 = vsel %vm1688, 0.0, %v3044
    %v3077 = vsel %vm1689, 0.0, %v3045
    %v3078 = vsel %vm1690, 0.0, %v3046
    %v3079 = vsel %vm1691, 0.0, %v3047
    %v3080 = vsel %vm1692, 0.0, %v3048
    %v3081 = vsel %vm1693, 0.0, %v3049
    %v3082 = vsel %vm1694, 0.0, %v3050
    %v3083 = vsel %vm1695, 0.0, %v3051
    %v3084 = vsel %vm1696, 0.0, %v3052
    %v3085 = vsel %vm1697, 0.0, %v3053
    %v3086 = vsel %vm1698, 0.0, %v3054
    %v3087 = vsel %vm1699, 0.0, %v3055
    %v3088 = vsel %vm1700, 0.0, %v3056
    %v3089 = vsel %vm1701, 0.0, %v3057
    %v3090 = vsel %vm1702, 0.0, %v3058
    %v3091 = vsel %vm1703, 0.0, %v3059
    %v3092 = vsel %vm1704, 0.0, %v3060
    %v3093 = vsel %vm1705, 0.0, %v3061
    %v3094 = vsel %vm1706, 0.0, %v3062
    %v3095 = vsel %vm1707, 0.0, %v3063
    %v3096 = vsel %vm1708, 0.0, %v3064
    %v3097 = vsel %vm1709, 0.0, %v3065
    %v3098 = vsel %vm1710, 0.0, %v3066
    %v3099 = vsel %vm1711, 0.0, %v3067
    %v3100 = vsel %vm1712, 0.0, %v3068
    %v3101 = vsel %vm1713, 0.0, %v3069
    %v3102 = vsel %vm1714, 0.0, %v3070
    %v3103 = vsel %vm1715, 0.0, %v3071
    %v3104 = vsel %vm1716, 0.0, %v3072
    %v3105 = vsel %vm1717, 0.0, %v3073
    %v3106 = vsel %vm1718, 0.0, %v3074
    %v3107 = vadd.f32 %v1543, %v3075
    %v3108 = vadd.f32 %v1546, %v3076
    %v3109 = vadd.f32 %v1551, %v3077
    %v3110 = vadd.f32 %v1554, %v3078
    %v3111 = vadd.f32 %v1559, %v3079
    %v3112 = vadd.f32 %v1562, %v3080
    %v3113 = vadd.f32 %v1567, %v3081
    %v3114 = vadd.f32 %v1570, %v3082
    %v3115 = vadd.f32 %v1581, %v3083
    %v3116 = vadd.f32 %v1584, %v3084
    %v3117 = vadd.f32 %v1589, %v3085
    %v3118 = vadd.f32 %v1592, %v3086
    %v3119 = vadd.f32 %v1597, %v3087
    %v3120 = vadd.f32 %v1600, %v3088
    %v3121 = vadd.f32 %v1605, %v3089
    %v3122 = vadd.f32 %v1608, %v3090
    %v3123 = vadd.f32 %v1619, %v3091
    %v3124 = vadd.f32 %v1622, %v3092
    %v3125 = vadd.f32 %v1627, %v3093
    %v3126 = vadd.f32 %v1630, %v3094
    %v3127 = vadd.f32 %v1635, %v3095
    %v3128 = vadd.f32 %v1638, %v3096
    %v3129 = vadd.f32 %v1643, %v3097
    %v3130 = vadd.f32 %v1646, %v3098
    %v3131 = vadd.f32 %v1657, %v3099
    %v3132 = vadd.f32 %v1660, %v3100
    %v3133 = vadd.f32 %v1665, %v3101
    %v3134 = vadd.f32 %v1668, %v3102
    %v3135 = vadd.f32 %v1673, %v3103
    %v3136 = vadd.f32 %v1676, %v3104
    %v3137 = vadd.f32 %v1681, %v3105
    %v3138 = vadd.f32 %v1684, %v3106
    %vm3139 = vcmp.eq.s32.totalorder %v1007, 7
    %vm3140 = vcmp.eq.s32.totalorder %v1008, 7
    %vm3141 = vcmp.eq.s32.totalorder %v1009, 7
    %vm3142 = vcmp.eq.s32.totalorder %v1010, 7
    %vm3143 = vcmp.eq.s32.totalorder %v1011, 7
    %vm3144 = vcmp.eq.s32.totalorder %v1012, 7
    %vm3145 = vcmp.eq.s32.totalorder %v1013, 7
    %vm3146 = vcmp.eq.s32.totalorder %v1014, 7
    %vm3147 = vcmp.eq.s32.totalorder %v1015, 7
    %vm3148 = vcmp.eq.s32.totalorder %v1016, 7
    %vm3149 = vcmp.eq.s32.totalorder %v1017, 7
    %vm3150 = vcmp.eq.s32.totalorder %v1018, 7
    %vm3151 = vcmp.eq.s32.totalorder %v1019, 7
    %vm3152 = vcmp.eq.s32.totalorder %v1020, 7
    %vm3153 = vcmp.eq.s32.totalorder %v1021, 7
    %vm3154 = vcmp.eq.s32.totalorder %v1022, 7
    %vm3155 = vcmp.eq.s32.totalorder %v1023, 7
    %vm3156 = vcmp.eq.s32.totalorder %v1024, 7
    %vm3157 = vcmp.eq.s32.totalorder %v1025, 7
    %vm3158 = vcmp.eq.s32.totalorder %v1026, 7
    %vm3159 = vcmp.eq.s32.totalorder %v1027, 7
    %vm3160 = vcmp.eq.s32.totalorder %v1028, 7
    %vm3161 = vcmp.eq.s32.totalorder %v1029, 7
    %vm3162 = vcmp.eq.s32.totalorder %v1030, 7
    %vm3163 = vcmp.eq.s32.totalorder %v1031, 7
    %vm3164 = vcmp.eq.s32.totalorder %v1032, 7
    %vm3165 = vcmp.eq.s32.totalorder %v1033, 7
    %vm3166 = vcmp.eq.s32.totalorder %v1034, 7
    %vm3167 = vcmp.eq.s32.totalorder %v1035, 7
    %vm3168 = vcmp.eq.s32.totalorder %v1036, 7
    %vm3169 = vcmp.eq.s32.totalorder %v1037, 7
    %vm3170 = vcmp.eq.s32.totalorder %v1038, 7
    %v3171 = vld [vmem:[#allocation2 + $0x4] sm:$0xf]
    %v3172 = vld [vmem:[#allocation2 + $0x9c] sm:$0x1]
    %s3173 = scalar_lea.vmem [#allocation6], 128
    %v3174 = vld [vmem:[%s3173] sm:$0xf]
    %v3175 = vld [vmem:[%s3173 + $0x4] sm:$0xf]
    %v3176 = vld [vmem:[%s3173 + $0x8] sm:$0xf]
    %v3177 = vld [vmem:[%s3173 + $0xc] sm:$0xf]
    %v3178 = vld [vmem:[%s3173 + $0x10] sm:$0xf]
    %v3179 = vld [vmem:[%s3173 + $0x14] sm:$0xf]
    %v3180 = vld [vmem:[%s3173 + $0x18] sm:$0xf]
    %v3181 = vld [vmem:[%s3173 + $0x1c] sm:$0xf]
    %v3182 = vld [vmem:[%s3173 + $0x20] sm:$0xf]
    %v3183 = vld [vmem:[%s3173 + $0x24] sm:$0xf]
    %v3184 = vld [vmem:[%s3173 + $0x28] sm:$0xf]
    %v3185 = vld [vmem:[%s3173 + $0x2c] sm:$0xf]
    %v3186 = vld [vmem:[%s3173 + $0x30] sm:$0xf]
    %v3187 = vld [vmem:[%s3173 + $0x34] sm:$0xf]
    %v3188 = vld [vmem:[%s3173 + $0x38] sm:$0xf]
    %v3189 = vld [vmem:[%s3173 + $0x3c] sm:$0xf]
    %v3190 = vld [vmem:[#allocation2 + $0x8] sm:$0xf]
    %v3191 = vld [vmem:[#allocation2 + $0xa0] sm:$0x1]
    %s3192 = scalar_lea.vmem [#allocation6], 320
    %v3193 = vld [vmem:[%s3192] sm:$0xf]
    %v3194 = vld [vmem:[%s3192 + $0x4] sm:$0xf]
    %v3195 = vld [vmem:[%s3192 + $0x8] sm:$0xf]
    %v3196 = vld [vmem:[%s3192 + $0xc] sm:$0xf]
    %v3197 = vld [vmem:[%s3192 + $0x10] sm:$0xf]
    %v3198 = vld [vmem:[%s3192 + $0x14] sm:$0xf]
    %v3199 = vld [vmem:[%s3192 + $0x18] sm:$0xf]
    %v3200 = vld [vmem:[%s3192 + $0x1c] sm:$0xf]
    %v3201 = vld [vmem:[%s3192 + $0x20] sm:$0xf]
    %v3202 = vld [vmem:[%s3192 + $0x24] sm:$0xf]
    %v3203 = vld [vmem:[%s3192 + $0x28] sm:$0xf]
    %v3204 = vld [vmem:[%s3192 + $0x2c] sm:$0xf]
    %v3205 = vld [vmem:[%s3192 + $0x30] sm:$0xf]
    %v3206 = vld [vmem:[%s3192 + $0x34] sm:$0xf]
    %v3207 = vld [vmem:[%s3192 + $0x38] sm:$0xf]
    %v3208 = vld [vmem:[%s3192 + $0x3c] sm:$0xf]
    %v3211 = vunpack.c.l.b16 %v3190
    %v3212 = vunpack.c.l.b16 %v3191
    %v3213 = vpack.c.b16 %v1151, %v3211
    %v3214 = vpack.c.b16 %v3212, %v3212
    %vm3215 = vsmask.f32 7424
    %v3217 = vshrl.u32 %v3213, 16
    %v3219 = vshll.u32 %v3213, 16
    %v3221 = vrot.slane %v3219, 1
    %v3222 = vor.u32 %v3217, %v3221
    %v3223 = vrot.slane %v2359, 1
    %v3224 = vsel %vm3215, %v3222, %v3223
    %v3225 = vor.u32 %v2356, %v3223
    %v3226 = vrot.slane %v2368, 1
    %v3227 = vsel %vm3215, %v3225, %v3226
    %v3228 = vor.u32 %v2365, %v3226
    %v3229 = vrot.slane %v2377, 1
    %v3230 = vsel %vm3215, %v3228, %v3229
    %v3231 = vor.u32 %v2374, %v3229
    %v3232 = vrot.slane %v2386, 1
    %v3233 = vsel %vm3215, %v3231, %v3232
    %v3234 = vor.u32 %v2383, %v3232
    %v3235 = vrot.slane %v2395, 1
    %v3236 = vsel %vm3215, %v3234, %v3235
    %v3237 = vor.u32 %v2392, %v3235
    %v3238 = vrot.slane %v2404, 1
    %v3239 = vsel %vm3215, %v3237, %v3238
    %v3240 = vor.u32 %v2401, %v3238
    %v3241 = vrot.slane %v2413, 1
    %v3242 = vsel %vm3215, %v3240, %v3241
    %v3243 = vor.u32 %v2410, %v3241
    %v3244 = vrot.slane %v2422, 1
    %v3245 = vsel %vm3215, %v3243, %v3244
    %v3246 = vor.u32 %v2419, %v3244
    %v3247 = vrot.slane %v2431, 1
    %v3248 = vsel %vm3215, %v3246, %v3247
    %v3249 = vor.u32 %v2428, %v3247
    %v3250 = vrot.slane %v2440, 1
    %v3251 = vsel %vm3215, %v3249, %v3250
    %v3252 = vor.u32 %v2437, %v3250
    %v3253 = vrot.slane %v2449, 1
    %v3254 = vsel %vm3215, %v3252, %v3253
    %v3255 = vor.u32 %v2446, %v3253
    %v3256 = vrot.slane %v2458, 1
    %v3257 = vsel %vm3215, %v3255, %v3256
    %v3258 = vor.u32 %v2455, %v3256
    %v3259 = vrot.slane %v2467, 1
    %v3260 = vsel %vm3215, %v3258, %v3259
    %v3261 = vor.u32 %v2464, %v3259
    %v3262 = vrot.slane %v2476, 1
    %v3263 = vsel %vm3215, %v3261, %v3262
    %v3264 = vor.u32 %v2473, %v3262
    %v3265 = vrot.slane %v2485, 1
    %v3266 = vsel %vm3215, %v3264, %v3265
    %v3267 = vor.u32 %v2482, %v3265
    %v3268 = vrot.slane %v2494, 1
    %v3269 = vsel %vm3215, %v3267, %v3268
    %v3270 = vor.u32 %v2491, %v3268
    %v3271 = vrot.slane %v2503, 1
    %v3272 = vsel %vm3215, %v3270, %v3271
    %v3273 = vor.u32 %v2500, %v3271
    %v3274 = vrot.slane %v2799, 1
    %v3275 = vsel %vm3215, %v3273, %v3274
    %v3276 = vor.u32 %v2796, %v3274
    %v3278 = vshll.u32 %v3214, 16
    %v3280 = vrot.slane %v3278, 1
    %v3281 = vsel %vm3215, %v3276, %v3280
    %v3317 = vunpack.c.l.b16 %v3193
    %v3318 = vunpack.c.l.b16 %v3194
    %v3319 = vunpack.c.l.b16 %v3195
    %v3320 = vunpack.c.l.b16 %v3196
    %v3321 = vunpack.c.l.b16 %v3197
    %v3322 = vunpack.c.l.b16 %v3198
    %v3323 = vunpack.c.l.b16 %v3199
    %v3324 = vunpack.c.l.b16 %v3200
    %v3325 = vunpack.c.l.b16 %v3201
    %v3326 = vunpack.c.l.b16 %v3202
    %v3327 = vunpack.c.l.b16 %v3203
    %v3328 = vunpack.c.l.b16 %v3204
    %v3329 = vunpack.c.l.b16 %v3205
    %v3330 = vunpack.c.l.b16 %v3206
    %v3331 = vunpack.c.l.b16 %v3207
    %v3332 = vunpack.c.l.b16 %v3208
    %v3333 = vpack.c.b16 %v3318, %v3317
    %v3334 = vpack.c.b16 %v3320, %v3319
    %v3335 = vpack.c.b16 %v3322, %v3321
    %v3336 = vpack.c.b16 %v3324, %v3323
    %v3337 = vpack.c.b16 %v3326, %v3325
    %v3338 = vpack.c.b16 %v3328, %v3327
    %v3339 = vpack.c.b16 %v3330, %v3329
    %v3340 = vpack.c.b16 %v3332, %v3331
    %3349 = vmatprep.subr.bf16.mxu0 0
    %3350 = vmatpush1.bf16.msra.mxu0 %v3340
    %3351 = vmatprep.subr.bf16.mxu0 0
    %3352 = vmatpush1.bf16.msra.mxu0 %v3339
    %3353 = vmatprep.subr.bf16.mxu0 0
    %3354 = vmatpush1.bf16.msra.mxu0 %v3338
    %3355 = vmatprep.subr.bf16.mxu0 0
    %3356 = vmatpush1.bf16.msra.mxu0 %v3337
    %3357 = vmatprep.subr.bf16.mxu0 0
    %3358 = vmatpush1.bf16.msra.mxu0 %v3336
    %3359 = vmatprep.subr.bf16.mxu0 0
    %3360 = vmatpush1.bf16.msra.mxu0 %v3335
    %3361 = vmatprep.subr.bf16.mxu0 0
    %3362 = vmatpush1.bf16.msra.mxu0 %v3334
    %3363 = vmatprep.subr.bf16.mxu0 0
    %3364 = vmatpush1.bf16.msra.mxu0 %v3333
    %3365 = vmatprep.subr.bf16.mxu0 0
    %3366 = vmatpush2.bf16.msra.mxu0 0
    %3367 = vmatprep.subr.bf16.mxu0 0
    %3368 = vmatpush2.bf16.msra.mxu0 0
    %3369 = vmatprep.subr.bf16.mxu0 0
    %3370 = vmatpush2.bf16.msra.mxu0 0
    %3371 = vmatprep.subr.bf16.mxu0 0
    %3372 = vmatpush2.bf16.msra.mxu0 0
    %3373 = vmatprep.subr.bf16.mxu0 0
    %3374 = vmatpush2.bf16.msra.mxu0 0
    %3375 = vmatprep.subr.bf16.mxu0 0
    %3376 = vmatpush2.bf16.msra.mxu0 0
    %3377 = vmatprep.subr.bf16.mxu0 0
    %3378 = vmatpush2.bf16.msra.mxu0 0
    %3379 = vmatprep.subr.bf16.mxu0 0
    %3380 = vmatpush2.bf16.msra.mxu0 0
    %3381 = vmatprep.mubr.bf16.mxu0 0
    %3382 = vmatmul.mubr.bf16.gmra.mxu0 %v3224
    %v3383 = vpop.f32.mrf.mxu0
    %v3384 = vadd.f32 0.0, %v3383
    %v3385 = vpop.f32.mrf.mxu0
    %v3386 = vpop.f32.mrf.mxu0
    %v3387 = vadd.f32 0.0, %v3386
    %v3388 = vpop.f32.mrf.mxu0
    %3389 = vmatprep.mubr.bf16.mxu0 0
    %3390 = vmatmul.mubr.bf16.gmra.mxu0 %v3227
    %v3391 = vpop.f32.mrf.mxu0
    %v3392 = vadd.f32 0.0, %v3391
    %v3393 = vpop.f32.mrf.mxu0
    %v3394 = vpop.f32.mrf.mxu0
    %v3395 = vadd.f32 0.0, %v3394
    %v3396 = vpop.f32.mrf.mxu0
    %3397 = vmatprep.mubr.bf16.mxu0 0
    %3398 = vmatmul.mubr.bf16.gmra.mxu0 %v3230
    %v3399 = vpop.f32.mrf.mxu0
    %v3400 = vadd.f32 0.0, %v3399
    %v3401 = vpop.f32.mrf.mxu0
    %v3402 = vpop.f32.mrf.mxu0
    %v3403 = vadd.f32 0.0, %v3402
    %v3404 = vpop.f32.mrf.mxu0
    %3405 = vmatprep.mubr.bf16.mxu0 0
    %3406 = vmatmul.mubr.bf16.gmra.mxu0 %v3233
    %v3407 = vpop.f32.mrf.mxu0
    %v3408 = vadd.f32 0.0, %v3407
    %v3409 = vpop.f32.mrf.mxu0
    %v3410 = vpop.f32.mrf.mxu0
    %v3411 = vadd.f32 0.0, %v3410
    %v3412 = vpop.f32.mrf.mxu0
    %3413 = vmatprep.mubr.bf16.mxu0 0
    %3414 = vmatmul.mubr.bf16.gmra.mxu0 %v3236
    %v3415 = vpop.f32.mrf.mxu0
    %v3416 = vpop.f32.mrf.mxu0
    %v3417 = vpop.f32.mrf.mxu0
    %v3418 = vpop.f32.mrf.mxu0
    %3419 = vmatprep.mubr.bf16.mxu0 0
    %3420 = vmatmul.mubr.bf16.gmra.mxu0 %v3239
    %v3421 = vpop.f32.mrf.mxu0
    %v3422 = vadd.f32 0.0, %v3421
    %v3423 = vpop.f32.mrf.mxu0
    %v3424 = vpop.f32.mrf.mxu0
    %v3425 = vadd.f32 0.0, %v3424
    %v3426 = vpop.f32.mrf.mxu0
    %3427 = vmatprep.mubr.bf16.mxu0 0
    %3428 = vmatmul.mubr.bf16.gmra.mxu0 %v3242
    %v3429 = vpop.f32.mrf.mxu0
    %v3430 = vadd.f32 0.0, %v3429
    %v3431 = vpop.f32.mrf.mxu0
    %v3432 = vpop.f32.mrf.mxu0
    %v3433 = vadd.f32 0.0, %v3432
    %v3434 = vpop.f32.mrf.mxu0
    %3435 = vmatprep.mubr.bf16.mxu0 0
    %3436 = vmatmul.mubr.bf16.gmra.mxu0 %v3245
    %v3437 = vpop.f32.mrf.mxu0
    %v3438 = vadd.f32 0.0, %v3437
    %v3439 = vpop.f32.mrf.mxu0
    %v3440 = vpop.f32.mrf.mxu0
    %v3441 = vadd.f32 0.0, %v3440
    %v3442 = vpop.f32.mrf.mxu0
    %3443 = vmatprep.mubr.bf16.mxu0 0
    %3444 = vmatmul.mubr.bf16.gmra.mxu0 %v3248
    %v3445 = vpop.f32.mrf.mxu0
    %v3446 = vadd.f32 0.0, %v3445
    %v3447 = vpop.f32.mrf.mxu0
    %v3448 = vpop.f32.mrf.mxu0
    %v3449 = vadd.f32 0.0, %v3448
    %v3450 = vpop.f32.mrf.mxu0
    %3451 = vmatprep.mubr.bf16.mxu0 0
    %3452 = vmatmul.mubr.bf16.gmra.mxu0 %v3251
    %v3453 = vpop.f32.mrf.mxu0
    %v3454 = vpop.f32.mrf.mxu0
    %v3455 = vpop.f32.mrf.mxu0
    %v3456 = vpop.f32.mrf.mxu0
    %3457 = vmatprep.mubr.bf16.mxu0 0
    %3458 = vmatmul.mubr.bf16.gmra.mxu0 %v3254
    %v3459 = vpop.f32.mrf.mxu0
    %v3460 = vadd.f32 0.0, %v3459
    %v3461 = vpop.f32.mrf.mxu0
    %v3462 = vpop.f32.mrf.mxu0
    %v3463 = vadd.f32 0.0, %v3462
    %v3464 = vpop.f32.mrf.mxu0
    %3465 = vmatprep.mubr.bf16.mxu0 0
    %3466 = vmatmul.mubr.bf16.gmra.mxu0 %v3257
    %v3467 = vpop.f32.mrf.mxu0
    %v3468 = vadd.f32 0.0, %v3467
    %v3469 = vpop.f32.mrf.mxu0
    %v3470 = vpop.f32.mrf.mxu0
    %v3471 = vadd.f32 0.0, %v3470
    %v3472 = vpop.f32.mrf.mxu0
    %3473 = vmatprep.mubr.bf16.mxu0 0
    %3474 = vmatmul.mubr.bf16.gmra.mxu0 %v3260
    %v3475 = vpop.f32.mrf.mxu0
    %v3476 = vadd.f32 0.0, %v3475
    %v3477 = vpop.f32.mrf.mxu0
    %v3478 = vpop.f32.mrf.mxu0
    %v3479 = vadd.f32 0.0, %v3478
    %v3480 = vpop.f32.mrf.mxu0
    %3481 = vmatprep.mubr.bf16.mxu0 0
    %3482 = vmatmul.mubr.bf16.gmra.mxu0 %v3263
    %v3483 = vpop.f32.mrf.mxu0
    %v3484 = vadd.f32 0.0, %v3483
    %v3485 = vpop.f32.mrf.mxu0
    %v3486 = vpop.f32.mrf.mxu0
    %v3487 = vadd.f32 0.0, %v3486
    %v3488 = vpop.f32.mrf.mxu0
    %3489 = vmatprep.mubr.bf16.mxu0 0
    %3490 = vmatmul.mubr.bf16.gmra.mxu0 %v3266
    %v3491 = vpop.f32.mrf.mxu0
    %v3492 = vpop.f32.mrf.mxu0
    %v3493 = vpop.f32.mrf.mxu0
    %v3494 = vpop.f32.mrf.mxu0
    %3495 = vmatprep.mubr.bf16.mxu0 0
    %3496 = vmatmul.mubr.bf16.gmra.mxu0 %v3269
    %v3497 = vpop.f32.mrf.mxu0
    %v3498 = vadd.f32 0.0, %v3497
    %v3499 = vpop.f32.mrf.mxu0
    %v3500 = vpop.f32.mrf.mxu0
    %v3501 = vadd.f32 0.0, %v3500
    %v3502 = vpop.f32.mrf.mxu0
    %3503 = vmatprep.mubr.bf16.mxu0 0
    %3504 = vmatmul.mubr.bf16.gmra.mxu0 %v3272
    %v3505 = vpop.f32.mrf.mxu0
    %v3506 = vadd.f32 0.0, %v3505
    %v3507 = vpop.f32.mrf.mxu0
    %v3508 = vpop.f32.mrf.mxu0
    %v3509 = vadd.f32 0.0, %v3508
    %v3510 = vpop.f32.mrf.mxu0
    %3511 = vmatprep.mubr.bf16.mxu0 0
    %3512 = vmatmul.mubr.bf16.gmra.mxu0 %v3275
    %v3513 = vpop.f32.mrf.mxu0
    %v3514 = vadd.f32 0.0, %v3513
    %v3515 = vpop.f32.mrf.mxu0
    %v3516 = vpop.f32.mrf.mxu0
    %v3517 = vadd.f32 0.0, %v3516
    %v3518 = vpop.f32.mrf.mxu0
    %3519 = vmatprep.mubr.bf16.mxu0 0
    %3520 = vmatmul.mubr.bf16.gmra.mxu0 %v3281
    %v3521 = vpop.f32.mrf.mxu0
    %v3522 = vadd.f32 0.0, %v3521
    %v3523 = vpop.f32.mrf.mxu0
    %v3524 = vpop.f32.mrf.mxu0
    %v3525 = vadd.f32 0.0, %v3524
    %v3526 = vpop.f32.mrf.mxu0
    %3527 = vdwg.mxu0
    %v3530 = vunpack.c.l.b16 %v3171
    %v3531 = vunpack.c.l.b16 %v3172
    %v3532 = vpack.c.b16 %v1832, %v3530
    %v3533 = vpack.c.b16 %v3531, %v3531
    %v3535 = vshrl.u32 %v3532, 16
    %v3537 = vshll.u32 %v3532, 16
    %v3539 = vrot.slane %v3537, 1
    %v3540 = vor.u32 %v3535, %v3539
    %v3541 = vrot.slane %v1903, 1
    %v3542 = vsel %vm3215, %v3540, %v3541
    %v3543 = vor.u32 %v1900, %v3541
    %v3544 = vrot.slane %v1912, 1
    %v3545 = vsel %vm3215, %v3543, %v3544
    %v3546 = vor.u32 %v1909, %v3544
    %v3547 = vrot.slane %v1921, 1
    %v3548 = vsel %vm3215, %v3546, %v3547
    %v3549 = vor.u32 %v1918, %v3547
    %v3550 = vrot.slane %v1930, 1
    %v3551 = vsel %vm3215, %v3549, %v3550
    %v3552 = vor.u32 %v1927, %v3550
    %v3553 = vrot.slane %v1939, 1
    %v3554 = vsel %vm3215, %v3552, %v3553
    %v3555 = vor.u32 %v1936, %v3553
    %v3556 = vrot.slane %v1948, 1
    %v3557 = vsel %vm3215, %v3555, %v3556
    %v3558 = vor.u32 %v1945, %v3556
    %v3559 = vrot.slane %v1957, 1
    %v3560 = vsel %vm3215, %v3558, %v3559
    %v3561 = vor.u32 %v1954, %v3559
    %v3562 = vrot.slane %v1966, 1
    %v3563 = vsel %vm3215, %v3561, %v3562
    %v3564 = vor.u32 %v1963, %v3562
    %v3565 = vrot.slane %v1975, 1
    %v3566 = vsel %vm3215, %v3564, %v3565
    %v3567 = vor.u32 %v1972, %v3565
    %v3568 = vrot.slane %v1984, 1
    %v3569 = vsel %vm3215, %v3567, %v3568
    %v3570 = vor.u32 %v1981, %v3568
    %v3571 = vrot.slane %v1993, 1
    %v3572 = vsel %vm3215, %v3570, %v3571
    %v3573 = vor.u32 %v1990, %v3571
    %v3574 = vrot.slane %v2002, 1
    %v3575 = vsel %vm3215, %v3573, %v3574
    %v3576 = vor.u32 %v1999, %v3574
    %v3577 = vrot.slane %v2011, 1
    %v3578 = vsel %vm3215, %v3576, %v3577
    %v3579 = vor.u32 %v2008, %v3577
    %v3580 = vrot.slane %v2020, 1
    %v3581 = vsel %vm3215, %v3579, %v3580
    %v3582 = vor.u32 %v2017, %v3580
    %v3583 = vrot.slane %v2029, 1
    %v3584 = vsel %vm3215, %v3582, %v3583
    %v3585 = vor.u32 %v2026, %v3583
    %v3586 = vrot.slane %v2038, 1
    %v3587 = vsel %vm3215, %v3585, %v3586
    %v3588 = vor.u32 %v2035, %v3586
    %v3589 = vrot.slane %v2047, 1
    %v3590 = vsel %vm3215, %v3588, %v3589
    %v3591 = vor.u32 %v2044, %v3589
    %v3592 = vrot.slane %v2056, 1
    %v3593 = vsel %vm3215, %v3591, %v3592
    %v3594 = vor.u32 %v2053, %v3592
    %v3596 = vshll.u32 %v3533, 16
    %v3598 = vrot.slane %v3596, 1
    %v3599 = vsel %vm3215, %v3594, %v3598
    %v3635 = vunpack.c.l.b16 %v3174
    %v3636 = vunpack.c.l.b16 %v3175
    %v3637 = vunpack.c.l.b16 %v3176
    %v3638 = vunpack.c.l.b16 %v3177
    %v3639 = vunpack.c.l.b16 %v3178
    %v3640 = vunpack.c.l.b16 %v3179
    %v3641 = vunpack.c.l.b16 %v3180
    %v3642 = vunpack.c.l.b16 %v3181
    %v3643 = vunpack.c.l.b16 %v3182
    %v3644 = vunpack.c.l.b16 %v3183
    %v3645 = vunpack.c.l.b16 %v3184
    %v3646 = vunpack.c.l.b16 %v3185
    %v3647 = vunpack.c.l.b16 %v3186
    %v3648 = vunpack.c.l.b16 %v3187
    %v3649 = vunpack.c.l.b16 %v3188
    %v3650 = vunpack.c.l.b16 %v3189
    %v3651 = vpack.c.b16 %v3636, %v3635
    %v3652 = vpack.c.b16 %v3638, %v3637
    %v3653 = vpack.c.b16 %v3640, %v3639
    %v3654 = vpack.c.b16 %v3642, %v3641
    %v3655 = vpack.c.b16 %v3644, %v3643
    %v3656 = vpack.c.b16 %v3646, %v3645
    %v3657 = vpack.c.b16 %v3648, %v3647
    %v3658 = vpack.c.b16 %v3650, %v3649
    %3667 = vmatprep.subr.bf16.mxu0 0
    %3668 = vmatpush1.bf16.msra.mxu0 %v3658
    %3669 = vmatprep.subr.bf16.mxu0 0
    %3670 = vmatpush1.bf16.msra.mxu0 %v3657
    %3671 = vmatprep.subr.bf16.mxu0 0
    %3672 = vmatpush1.bf16.msra.mxu0 %v3656
    %3673 = vmatprep.subr.bf16.mxu0 0
    %3674 = vmatpush1.bf16.msra.mxu0 %v3655
    %3675 = vmatprep.subr.bf16.mxu0 0
    %3676 = vmatpush1.bf16.msra.mxu0 %v3654
    %3677 = vmatprep.subr.bf16.mxu0 0
    %3678 = vmatpush1.bf16.msra.mxu0 %v3653
    %3679 = vmatprep.subr.bf16.mxu0 0
    %3680 = vmatpush1.bf16.msra.mxu0 %v3652
    %3681 = vmatprep.subr.bf16.mxu0 0
    %3682 = vmatpush1.bf16.msra.mxu0 %v3651
    %3683 = vmatprep.subr.bf16.mxu0 0
    %3684 = vmatpush2.bf16.msra.mxu0 0
    %3685 = vmatprep.subr.bf16.mxu0 0
    %3686 = vmatpush2.bf16.msra.mxu0 0
    %3687 = vmatprep.subr.bf16.mxu0 0
    %3688 = vmatpush2.bf16.msra.mxu0 0
    %3689 = vmatprep.subr.bf16.mxu0 0
    %3690 = vmatpush2.bf16.msra.mxu0 0
    %3691 = vmatprep.subr.bf16.mxu0 0
    %3692 = vmatpush2.bf16.msra.mxu0 0
    %3693 = vmatprep.subr.bf16.mxu0 0
    %3694 = vmatpush2.bf16.msra.mxu0 0
    %3695 = vmatprep.subr.bf16.mxu0 0
    %3696 = vmatpush2.bf16.msra.mxu0 0
    %3697 = vmatprep.subr.bf16.mxu0 0
    %3698 = vmatpush2.bf16.msra.mxu0 0
    %3699 = vmatprep.mubr.bf16.mxu0 0
    %3700 = vmatmul.mubr.bf16.gmra.mxu0 %v3542
    %v3701 = vpop.f32.mrf.mxu0
    %v3702 = vadd.f32 %v3384, %v3701
    %v3703 = vpop.f32.mrf.mxu0
    %v3704 = vpop.f32.mrf.mxu0
    %v3705 = vadd.f32 %v3387, %v3704
    %v3706 = vpop.f32.mrf.mxu0
    %3707 = vmatprep.mubr.bf16.mxu0 0
    %3708 = vmatmul.mubr.bf16.gmra.mxu0 %v3545
    %v3709 = vpop.f32.mrf.mxu0
    %v3710 = vadd.f32 %v3392, %v3709
    %v3711 = vpop.f32.mrf.mxu0
    %v3712 = vpop.f32.mrf.mxu0
    %v3713 = vadd.f32 %v3395, %v3712
    %v3714 = vpop.f32.mrf.mxu0
    %3715 = vmatprep.mubr.bf16.mxu0 0
    %3716 = vmatmul.mubr.bf16.gmra.mxu0 %v3548
    %v3717 = vpop.f32.mrf.mxu0
    %v3718 = vadd.f32 %v3400, %v3717
    %v3719 = vpop.f32.mrf.mxu0
    %v3720 = vpop.f32.mrf.mxu0
    %v3721 = vadd.f32 %v3403, %v3720
    %v3722 = vpop.f32.mrf.mxu0
    %3723 = vmatprep.mubr.bf16.mxu0 0
    %3724 = vmatmul.mubr.bf16.gmra.mxu0 %v3551
    %v3725 = vpop.f32.mrf.mxu0
    %v3726 = vadd.f32 %v3408, %v3725
    %v3727 = vpop.f32.mrf.mxu0
    %v3728 = vpop.f32.mrf.mxu0
    %v3729 = vadd.f32 %v3411, %v3728
    %v3730 = vpop.f32.mrf.mxu0
    %3731 = vmatprep.mubr.bf16.mxu0 0
    %3732 = vmatmul.mubr.bf16.gmra.mxu0 %v3554
    %v3733 = vpop.f32.mrf.mxu0
    %v3734 = vpop.f32.mrf.mxu0
    %v3735 = vpop.f32.mrf.mxu0
    %v3736 = vpop.f32.mrf.mxu0
    %3737 = vmatprep.mubr.bf16.mxu0 0
    %3738 = vmatmul.mubr.bf16.gmra.mxu0 %v3557
    %v3739 = vpop.f32.mrf.mxu0
    %v3740 = vadd.f32 %v3422, %v3739
    %v3741 = vpop.f32.mrf.mxu0
    %v3742 = vpop.f32.mrf.mxu0
    %v3743 = vadd.f32 %v3425, %v3742
    %v3744 = vpop.f32.mrf.mxu0
    %3745 = vmatprep.mubr.bf16.mxu0 0
    %3746 = vmatmul.mubr.bf16.gmra.mxu0 %v3560
    %v3747 = vpop.f32.mrf.mxu0
    %v3748 = vadd.f32 %v3430, %v3747
    %v3749 = vpop.f32.mrf.mxu0
    %v3750 = vpop.f32.mrf.mxu0
    %v3751 = vadd.f32 %v3433, %v3750
    %v3752 = vpop.f32.mrf.mxu0
    %3753 = vmatprep.mubr.bf16.mxu0 0
    %3754 = vmatmul.mubr.bf16.gmra.mxu0 %v3563
    %v3755 = vpop.f32.mrf.mxu0
    %v3756 = vadd.f32 %v3438, %v3755
    %v3757 = vpop.f32.mrf.mxu0
    %v3758 = vpop.f32.mrf.mxu0
    %v3759 = vadd.f32 %v3441, %v3758
    %v3760 = vpop.f32.mrf.mxu0
    %3761 = vmatprep.mubr.bf16.mxu0 0
    %3762 = vmatmul.mubr.bf16.gmra.mxu0 %v3566
    %v3763 = vpop.f32.mrf.mxu0
    %v3764 = vadd.f32 %v3446, %v3763
    %v3765 = vpop.f32.mrf.mxu0
    %v3766 = vpop.f32.mrf.mxu0
    %v3767 = vadd.f32 %v3449, %v3766
    %v3768 = vpop.f32.mrf.mxu0
    %3769 = vmatprep.mubr.bf16.mxu0 0
    %3770 = vmatmul.mubr.bf16.gmra.mxu0 %v3569
    %v3771 = vpop.f32.mrf.mxu0
    %v3772 = vpop.f32.mrf.mxu0
    %v3773 = vpop.f32.mrf.mxu0
    %v3774 = vpop.f32.mrf.mxu0
    %3775 = vmatprep.mubr.bf16.mxu0 0
    %3776 = vmatmul.mubr.bf16.gmra.mxu0 %v3572
    %v3777 = vpop.f32.mrf.mxu0
    %v3778 = vadd.f32 %v3460, %v3777
    %v3779 = vpop.f32.mrf.mxu0
    %v3780 = vpop.f32.mrf.mxu0
    %v3781 = vadd.f32 %v3463, %v3780
    %v3782 = vpop.f32.mrf.mxu0
    %3783 = vmatprep.mubr.bf16.mxu0 0
    %3784 = vmatmul.mubr.bf16.gmra.mxu0 %v3575
    %v3785 = vpop.f32.mrf.mxu0
    %v3786 = vadd.f32 %v3468, %v3785
    %v3787 = vpop.f32.mrf.mxu0
    %v3788 = vpop.f32.mrf.mxu0
    %v3789 = vadd.f32 %v3471, %v3788
    %v3790 = vpop.f32.mrf.mxu0
    %3791 = vmatprep.mubr.bf16.mxu0 0
    %3792 = vmatmul.mubr.bf16.gmra.mxu0 %v3578
    %v3793 = vpop.f32.mrf.mxu0
    %v3794 = vadd.f32 %v3476, %v3793
    %v3795 = vpop.f32.mrf.mxu0
    %v3796 = vpop.f32.mrf.mxu0
    %v3797 = vadd.f32 %v3479, %v3796
    %v3798 = vpop.f32.mrf.mxu0
    %3799 = vmatprep.mubr.bf16.mxu0 0
    %3800 = vmatmul.mubr.bf16.gmra.mxu0 %v3581
    %v3801 = vpop.f32.mrf.mxu0
    %v3802 = vadd.f32 %v3484, %v3801
    %v3803 = vpop.f32.mrf.mxu0
    %v3804 = vpop.f32.mrf.mxu0
    %v3805 = vadd.f32 %v3487, %v3804
    %v3806 = vpop.f32.mrf.mxu0
    %3807 = vmatprep.mubr.bf16.mxu0 0
    %3808 = vmatmul.mubr.bf16.gmra.mxu0 %v3584
    %v3809 = vpop.f32.mrf.mxu0
    %v3810 = vpop.f32.mrf.mxu0
    %v3811 = vpop.f32.mrf.mxu0
    %v3812 = vpop.f32.mrf.mxu0
    %3813 = vmatprep.mubr.bf16.mxu0 0
    %3814 = vmatmul.mubr.bf16.gmra.mxu0 %v3587
    %v3815 = vpop.f32.mrf.mxu0
    %v3816 = vadd.f32 %v3498, %v3815
    %v3817 = vpop.f32.mrf.mxu0
    %v3818 = vpop.f32.mrf.mxu0
    %v3819 = vadd.f32 %v3501, %v3818
    %v3820 = vpop.f32.mrf.mxu0
    %3821 = vmatprep.mubr.bf16.mxu0 0
    %3822 = vmatmul.mubr.bf16.gmra.mxu0 %v3590
    %v3823 = vpop.f32.mrf.mxu0
    %v3824 = vadd.f32 %v3506, %v3823
    %v3825 = vpop.f32.mrf.mxu0
    %v3826 = vpop.f32.mrf.mxu0
    %v3827 = vadd.f32 %v3509, %v3826
    %v3828 = vpop.f32.mrf.mxu0
    %3829 = vmatprep.mubr.bf16.mxu0 0
    %3830 = vmatmul.mubr.bf16.gmra.mxu0 %v3593
    %v3831 = vpop.f32.mrf.mxu0
    %v3832 = vadd.f32 %v3514, %v3831
    %v3833 = vpop.f32.mrf.mxu0
    %v3834 = vpop.f32.mrf.mxu0
    %v3835 = vadd.f32 %v3517, %v3834
    %v3836 = vpop.f32.mrf.mxu0
    %3837 = vmatprep.mubr.bf16.mxu0 0
    %3838 = vmatmul.mubr.bf16.gmra.mxu0 %v3599
    %v3839 = vpop.f32.mrf.mxu0
    %v3840 = vadd.f32 %v3522, %v3839
    %v3841 = vpop.f32.mrf.mxu0
    %v3842 = vpop.f32.mrf.mxu0
    %v3843 = vadd.f32 %v3525, %v3842
    %v3844 = vpop.f32.mrf.mxu0
    %3845 = vdwg.mxu0
    %v3846 = vld [vmem:[#allocation2 + $0xc] sm:$0xf]
    %v3847 = vld [vmem:[#allocation2 + $0x10] sm:$0xf]
    %v3848 = vld [vmem:[#allocation2 + $0x14] sm:$0xf]
    %v3849 = vld [vmem:[#allocation2 + $0x18] sm:$0xf]
    %v3850 = vld [vmem:[#allocation2 + $0x1c] sm:$0xf]
    %v3851 = vld [vmem:[#allocation2 + $0x20] sm:$0xf]
    %v3852 = vld [vmem:[#allocation2 + $0x24] sm:$0xf]
    %v3853 = vld [vmem:[#allocation2 + $0x28] sm:$0xf]
    %v3854 = vld [vmem:[#allocation2 + $0x2c] sm:$0xf]
    %v3855 = vld [vmem:[#allocation2 + $0x30] sm:$0xf]
    %v3856 = vld [vmem:[#allocation2 + $0x34] sm:$0xf]
    %v3857 = vld [vmem:[#allocation2 + $0x38] sm:$0xf]
    %v3858 = vld [vmem:[#allocation2 + $0x3c] sm:$0xf]
    %v3859 = vld [vmem:[#allocation2 + $0x40] sm:$0xf]
    %v3860 = vld [vmem:[#allocation2 + $0x44] sm:$0xf]
    %v3861 = vld [vmem:[#allocation2 + $0x48] sm:$0xf]
    %v3862 = vld [vmem:[#allocation2 + $0x4c] sm:$0xf]
    %v3863 = vld [vmem:[#allocation2 + $0x50] sm:$0xf]
    %v3864 = vld [vmem:[#allocation2 + $0x54] sm:$0xf]
    %v3865 = vld [vmem:[#allocation2 + $0x58] sm:$0xf]
    %v3866 = vld [vmem:[#allocation2 + $0x5c] sm:$0xf]
    %v3867 = vld [vmem:[#allocation2 + $0x60] sm:$0xf]
    %v3868 = vld [vmem:[#allocation2 + $0x64] sm:$0xf]
    %v3869 = vld [vmem:[#allocation2 + $0x68] sm:$0xf]
    %v3870 = vld [vmem:[#allocation2 + $0x6c] sm:$0xf]
    %v3871 = vld [vmem:[#allocation2 + $0x70] sm:$0xf]
    %v3872 = vld [vmem:[#allocation2 + $0x74] sm:$0xf]
    %v3873 = vld [vmem:[#allocation2 + $0x78] sm:$0xf]
    %v3874 = vld [vmem:[#allocation2 + $0x7c] sm:$0xf]
    %v3875 = vld [vmem:[#allocation2 + $0x80] sm:$0xf]
    %v3876 = vld [vmem:[#allocation2 + $0x84] sm:$0xf]
    %v3877 = vld [vmem:[#allocation2 + $0x88] sm:$0xf]
    %v3878 = vld [vmem:[#allocation2 + $0x8c] sm:$0xf]
    %v3879 = vld [vmem:[#allocation2 + $0x90] sm:$0xf]
    %v3880 = vld [vmem:[#allocation2 + $0x94] sm:$0xf]
    %v3881 = vld [vmem:[#allocation2 + $0x98] sm:$0xf]
    %v3882 = vld [vmem:[#allocation2 + $0x9c] sm:$0xf]
    %v3883 = vld [vmem:[#allocation2 + $0xa0] sm:$0xf]
    %v3884 = vld [vmem:[#allocation2 + $0xa4] sm:$0x1]
    %s3885 = scalar_lea.vmem [#allocation6], 512
    %v3886 = vld [vmem:[%s3885] sm:$0xf]
    %v3887 = vld [vmem:[%s3885 + $0x4] sm:$0xf]
    %v3888 = vld [vmem:[%s3885 + $0x8] sm:$0xf]
    %v3889 = vld [vmem:[%s3885 + $0xc] sm:$0xf]
    %v3890 = vld [vmem:[%s3885 + $0x10] sm:$0xf]
    %v3891 = vld [vmem:[%s3885 + $0x14] sm:$0xf]
    %v3892 = vld [vmem:[%s3885 + $0x18] sm:$0xf]
    %v3893 = vld [vmem:[%s3885 + $0x1c] sm:$0xf]
    %v3894 = vld [vmem:[%s3885 + $0x20] sm:$0xf]
    %v3895 = vld [vmem:[%s3885 + $0x24] sm:$0xf]
    %v3896 = vld [vmem:[%s3885 + $0x28] sm:$0xf]
    %v3897 = vld [vmem:[%s3885 + $0x2c] sm:$0xf]
    %v3898 = vld [vmem:[%s3885 + $0x30] sm:$0xf]
    %v3899 = vld [vmem:[%s3885 + $0x34] sm:$0xf]
    %v3900 = vld [vmem:[%s3885 + $0x38] sm:$0xf]
    %v3901 = vld [vmem:[%s3885 + $0x3c] sm:$0xf]
    %v3941 = vunpack.c.l.b16 %v3846
    %v3942 = vunpack.c.l.b16 %v3847
    %v3943 = vunpack.c.l.b16 %v3848
    %v3944 = vunpack.c.l.b16 %v3849
    %v3945 = vunpack.c.l.b16 %v3850
    %v3946 = vunpack.c.l.b16 %v3851
    %v3947 = vunpack.c.l.b16 %v3852
    %v3948 = vunpack.c.l.b16 %v3853
    %v3949 = vunpack.c.l.b16 %v3854
    %v3950 = vunpack.c.l.b16 %v3855
    %v3951 = vunpack.c.l.b16 %v3856
    %v3952 = vunpack.c.l.b16 %v3857
    %v3953 = vunpack.c.l.b16 %v3858
    %v3954 = vunpack.c.l.b16 %v3859
    %v3955 = vunpack.c.l.b16 %v3860
    %v3956 = vunpack.c.l.b16 %v3861
    %v3957 = vunpack.c.l.b16 %v3862
    %v3958 = vunpack.c.l.b16 %v3863
    %v3959 = vunpack.c.l.b16 %v3864
    %v3960 = vunpack.c.l.b16 %v3865
    %v3961 = vunpack.c.l.b16 %v3866
    %v3962 = vunpack.c.l.b16 %v3867
    %v3963 = vunpack.c.l.b16 %v3868
    %v3964 = vunpack.c.l.b16 %v3869
    %v3965 = vunpack.c.l.b16 %v3870
    %v3966 = vunpack.c.l.b16 %v3871
    %v3967 = vunpack.c.l.b16 %v3872
    %v3968 = vunpack.c.l.b16 %v3873
    %v3969 = vunpack.c.l.b16 %v3874
    %v3970 = vunpack.c.l.b16 %v3875
    %v3971 = vunpack.c.l.b16 %v3876
    %v3972 = vunpack.c.l.b16 %v3877
    %v3973 = vunpack.c.l.b16 %v3878
    %v3974 = vunpack.c.l.b16 %v3879
    %v3975 = vunpack.c.l.b16 %v3880
    %v3976 = vunpack.c.l.b16 %v3881
    %v3977 = vunpack.c.l.b16 %v3882
    %v3978 = vunpack.c.l.b16 %v3883
    %v3979 = vunpack.c.l.b16 %v3884
    %v3980 = vpack.c.b16 %v3942, %v3941
    %v3981 = vpack.c.b16 %v3944, %v3943
    %v3982 = vpack.c.b16 %v3946, %v3945
    %v3983 = vpack.c.b16 %v3948, %v3947
    %v3984 = vpack.c.b16 %v3950, %v3949
    %v3985 = vpack.c.b16 %v3952, %v3951
    %v3986 = vpack.c.b16 %v3954, %v3953
    %v3987 = vpack.c.b16 %v3956, %v3955
    %v3988 = vpack.c.b16 %v3958, %v3957
    %v3989 = vpack.c.b16 %v3960, %v3959
    %v3990 = vpack.c.b16 %v3962, %v3961
    %v3991 = vpack.c.b16 %v3964, %v3963
    %v3992 = vpack.c.b16 %v3966, %v3965
    %v3993 = vpack.c.b16 %v3968, %v3967
    %v3994 = vpack.c.b16 %v3970, %v3969
    %v3995 = vpack.c.b16 %v3972, %v3971
    %v3996 = vpack.c.b16 %v3974, %v3973
    %v3997 = vpack.c.b16 %v3976, %v3975
    %v3998 = vpack.c.b16 %v3978, %v3977
    %v3999 = vpack.c.b16 %v3979, %v3979
    %v4001 = vshrl.u32 %v3980, 16
    %v4003 = vshll.u32 %v3980, 16
    %v4005 = vrot.slane %v4003, 1
    %v4006 = vor.u32 %v4001, %v4005
    %v4008 = vshll.u32 %v3981, 16
    %v4010 = vrot.slane %v4008, 1
    %v4011 = vsel %vm3215, %v4006, %v4010
    %v4012 = vshrl.u32 %v3981, 16
    %v4014 = vor.u32 %v4012, %v4010
    %v4016 = vshll.u32 %v3982, 16
    %v4018 = vrot.slane %v4016, 1
    %v4019 = vsel %vm3215, %v4014, %v4018
    %v4020 = vshrl.u32 %v3982, 16
    %v4022 = vor.u32 %v4020, %v4018
    %v4024 = vshll.u32 %v3983, 16
    %v4026 = vrot.slane %v4024, 1
    %v4027 = vsel %vm3215, %v4022, %v4026
    %v4028 = vshrl.u32 %v3983, 16
    %v4030 = vor.u32 %v4028, %v4026
    %v4032 = vshll.u32 %v3984, 16
    %v4034 = vrot.slane %v4032, 1
    %v4035 = vsel %vm3215, %v4030, %v4034
    %v4036 = vshrl.u32 %v3984, 16
    %v4038 = vor.u32 %v4036, %v4034
    %v4040 = vshll.u32 %v3985, 16
    %v4042 = vrot.slane %v4040, 1
    %v4043 = vsel %vm3215, %v4038, %v4042
    %v4044 = vshrl.u32 %v3985, 16
    %v4046 = vor.u32 %v4044, %v4042
    %v4048 = vshll.u32 %v3986, 16
    %v4050 = vrot.slane %v4048, 1
    %v4051 = vsel %vm3215, %v4046, %v4050
    %v4052 = vshrl.u32 %v3986, 16
    %v4054 = vor.u32 %v4052, %v4050
    %v4056 = vshll.u32 %v3987, 16
    %v4058 = vrot.slane %v4056, 1
    %v4059 = vsel %vm3215, %v4054, %v4058
    %v4060 = vshrl.u32 %v3987, 16
    %v4062 = vor.u32 %v4060, %v4058
    %v4064 = vshll.u32 %v3988, 16
    %v4066 = vrot.slane %v4064, 1
    %v4067 = vsel %vm3215, %v4062, %v4066
    %v4068 = vshrl.u32 %v3988, 16
    %v4070 = vor.u32 %v4068, %v4066
    %v4072 = vshll.u32 %v3989, 16
    %v4074 = vrot.slane %v4072, 1
    %v4075 = vsel %vm3215, %v4070, %v4074
    %v4076 = vshrl.u32 %v3989, 16
    %v4078 = vor.u32 %v4076, %v4074
    %v4080 = vshll.u32 %v3990, 16
    %v4082 = vrot.slane %v4080, 1
    %v4083 = vsel %vm3215, %v4078, %v4082
    %v4084 = vshrl.u32 %v3990, 16
    %v4086 = vor.u32 %v4084, %v4082
    %v4088 = vshll.u32 %v3991, 16
    %v4090 = vrot.slane %v4088, 1
    %v4091 = vsel %vm3215, %v4086, %v4090
    %v4092 = vshrl.u32 %v3991, 16
    %v4094 = vor.u32 %v4092, %v4090
    %v4096 = vshll.u32 %v3992, 16
    %v4098 = vrot.slane %v4096, 1
    %v4099 = vsel %vm3215, %v4094, %v4098
    %v4100 = vshrl.u32 %v3992, 16
    %v4102 = vor.u32 %v4100, %v4098
    %v4104 = vshll.u32 %v3993, 16
    %v4106 = vrot.slane %v4104, 1
    %v4107 = vsel %vm3215, %v4102, %v4106
    %v4108 = vshrl.u32 %v3993, 16
    %v4110 = vor.u32 %v4108, %v4106
    %v4112 = vshll.u32 %v3994, 16
    %v4114 = vrot.slane %v4112, 1
    %v4115 = vsel %vm3215, %v4110, %v4114
    %v4116 = vshrl.u32 %v3994, 16
    %v4118 = vor.u32 %v4116, %v4114
    %v4120 = vshll.u32 %v3995, 16
    %v4122 = vrot.slane %v4120, 1
    %v4123 = vsel %vm3215, %v4118, %v4122
    %v4124 = vshrl.u32 %v3995, 16
    %v4126 = vor.u32 %v4124, %v4122
    %v4128 = vshll.u32 %v3996, 16
    %v4130 = vrot.slane %v4128, 1
    %v4131 = vsel %vm3215, %v4126, %v4130
    %v4132 = vshrl.u32 %v3996, 16
    %v4134 = vor.u32 %v4132, %v4130
    %v4136 = vshll.u32 %v3997, 16
    %v4138 = vrot.slane %v4136, 1
    %v4139 = vsel %vm3215, %v4134, %v4138
    %v4140 = vshrl.u32 %v3997, 16
    %v4142 = vor.u32 %v4140, %v4138
    %v4144 = vshll.u32 %v3998, 16
    %v4146 = vrot.slane %v4144, 1
    %v4147 = vsel %vm3215, %v4142, %v4146
    %v4148 = vshrl.u32 %v3998, 16
    %v4150 = vor.u32 %v4148, %v4146
    %v4152 = vshll.u32 %v3999, 16
    %v4154 = vrot.slane %v4152, 1
    %v4155 = vsel %vm3215, %v4150, %v4154
    %v4191 = vunpack.c.l.b16 %v3886
    %v4192 = vunpack.c.l.b16 %v3887
    %v4193 = vunpack.c.l.b16 %v3888
    %v4194 = vunpack.c.l.b16 %v3889
    %v4195 = vunpack.c.l.b16 %v3890
    %v4196 = vunpack.c.l.b16 %v3891
    %v4197 = vunpack.c.l.b16 %v3892
    %v4198 = vunpack.c.l.b16 %v3893
    %v4199 = vunpack.c.l.b16 %v3894
    %v4200 = vunpack.c.l.b16 %v3895
    %v4201 = vunpack.c.l.b16 %v3896
    %v4202 = vunpack.c.l.b16 %v3897
    %v4203 = vunpack.c.l.b16 %v3898
    %v4204 = vunpack.c.l.b16 %v3899
    %v4205 = vunpack.c.l.b16 %v3900
    %v4206 = vunpack.c.l.b16 %v3901
    %v4207 = vpack.c.b16 %v4192, %v4191
    %v4208 = vpack.c.b16 %v4194, %v4193
    %v4209 = vpack.c.b16 %v4196, %v4195
    %v4210 = vpack.c.b16 %v4198, %v4197
    %v4211 = vpack.c.b16 %v4200, %v4199
    %v4212 = vpack.c.b16 %v4202, %v4201
    %v4213 = vpack.c.b16 %v4204, %v4203
    %v4214 = vpack.c.b16 %v4206, %v4205
    %4223 = vmatprep.subr.bf16.mxu0 0
    %4224 = vmatpush1.bf16.msra.mxu0 %v4214
    %4225 = vmatprep.subr.bf16.mxu0 0
    %4226 = vmatpush1.bf16.msra.mxu0 %v4213
    %4227 = vmatprep.subr.bf16.mxu0 0
    %4228 = vmatpush1.bf16.msra.mxu0 %v4212
    %4229 = vmatprep.subr.bf16.mxu0 0
    %4230 = vmatpush1.bf16.msra.mxu0 %v4211
    %4231 = vmatprep.subr.bf16.mxu0 0
    %4232 = vmatpush1.bf16.msra.mxu0 %v4210
    %4233 = vmatprep.subr.bf16.mxu0 0
    %4234 = vmatpush1.bf16.msra.mxu0 %v4209
    %4235 = vmatprep.subr.bf16.mxu0 0
    %4236 = vmatpush1.bf16.msra.mxu0 %v4208
    %4237 = vmatprep.subr.bf16.mxu0 0
    %4238 = vmatpush1.bf16.msra.mxu0 %v4207
    %4239 = vmatprep.subr.bf16.mxu0 0
    %4240 = vmatpush2.bf16.msra.mxu0 0
    %4241 = vmatprep.subr.bf16.mxu0 0
    %4242 = vmatpush2.bf16.msra.mxu0 0
    %4243 = vmatprep.subr.bf16.mxu0 0
    %4244 = vmatpush2.bf16.msra.mxu0 0
    %4245 = vmatprep.subr.bf16.mxu0 0
    %4246 = vmatpush2.bf16.msra.mxu0 0
    %4247 = vmatprep.subr.bf16.mxu0 0
    %4248 = vmatpush2.bf16.msra.mxu0 0
    %4249 = vmatprep.subr.bf16.mxu0 0
    %4250 = vmatpush2.bf16.msra.mxu0 0
    %4251 = vmatprep.subr.bf16.mxu0 0
    %4252 = vmatpush2.bf16.msra.mxu0 0
    %4253 = vmatprep.subr.bf16.mxu0 0
    %4254 = vmatpush2.bf16.msra.mxu0 0
    %4255 = vmatprep.mubr.bf16.mxu0 0
    %4256 = vmatmul.mubr.bf16.gmra.mxu0 %v4011
    %v4257 = vpop.f32.mrf.mxu0
    %v4258 = vadd.f32 0.0, %v4257
    %v4259 = vpop.f32.mrf.mxu0
    %v4260 = vpop.f32.mrf.mxu0
    %v4261 = vadd.f32 0.0, %v4260
    %v4262 = vpop.f32.mrf.mxu0
    %4263 = vmatprep.mubr.bf16.mxu0 0
    %4264 = vmatmul.mubr.bf16.gmra.mxu0 %v4019
    %v4265 = vpop.f32.mrf.mxu0
    %v4266 = vadd.f32 0.0, %v4265
    %v4267 = vpop.f32.mrf.mxu0
    %v4268 = vpop.f32.mrf.mxu0
    %v4269 = vadd.f32 0.0, %v4268
    %v4270 = vpop.f32.mrf.mxu0
    %4271 = vmatprep.mubr.bf16.mxu0 0
    %4272 = vmatmul.mubr.bf16.gmra.mxu0 %v4027
    %v4273 = vpop.f32.mrf.mxu0
    %v4274 = vadd.f32 0.0, %v4273
    %v4275 = vpop.f32.mrf.mxu0
    %v4276 = vpop.f32.mrf.mxu0
    %v4277 = vadd.f32 0.0, %v4276
    %v4278 = vpop.f32.mrf.mxu0
    %4279 = vmatprep.mubr.bf16.mxu0 0
    %4280 = vmatmul.mubr.bf16.gmra.mxu0 %v4035
    %v4281 = vpop.f32.mrf.mxu0
    %v4282 = vadd.f32 0.0, %v4281
    %v4283 = vpop.f32.mrf.mxu0
    %v4284 = vpop.f32.mrf.mxu0
    %v4285 = vadd.f32 0.0, %v4284
    %v4286 = vpop.f32.mrf.mxu0
    %4287 = vmatprep.mubr.bf16.mxu0 0
    %4288 = vmatmul.mubr.bf16.gmra.mxu0 %v4043
    %v4289 = vpop.f32.mrf.mxu0
    %v4290 = vpop.f32.mrf.mxu0
    %v4291 = vpop.f32.mrf.mxu0
    %v4292 = vpop.f32.mrf.mxu0
    %4293 = vmatprep.mubr.bf16.mxu0 0
    %4294 = vmatmul.mubr.bf16.gmra.mxu0 %v4051
    %v4295 = vpop.f32.mrf.mxu0
    %v4296 = vadd.f32 0.0, %v4295
    %v4297 = vpop.f32.mrf.mxu0
    %v4298 = vpop.f32.mrf.mxu0
    %v4299 = vadd.f32 0.0, %v4298
    %v4300 = vpop.f32.mrf.mxu0
    %4301 = vmatprep.mubr.bf16.mxu0 0
    %4302 = vmatmul.mubr.bf16.gmra.mxu0 %v4059
    %v4303 = vpop.f32.mrf.mxu0
    %v4304 = vadd.f32 0.0, %v4303
    %v4305 = vpop.f32.mrf.mxu0
    %v4306 = vpop.f32.mrf.mxu0
    %v4307 = vadd.f32 0.0, %v4306
    %v4308 = vpop.f32.mrf.mxu0
    %4309 = vmatprep.mubr.bf16.mxu0 0
    %4310 = vmatmul.mubr.bf16.gmra.mxu0 %v4067
    %v4311 = vpop.f32.mrf.mxu0
    %v4312 = vadd.f32 0.0, %v4311
    %v4313 = vpop.f32.mrf.mxu0
    %v4314 = vpop.f32.mrf.mxu0
    %v4315 = vadd.f32 0.0, %v4314
    %v4316 = vpop.f32.mrf.mxu0
    %4317 = vmatprep.mubr.bf16.mxu0 0
    %4318 = vmatmul.mubr.bf16.gmra.mxu0 %v4075
    %v4319 = vpop.f32.mrf.mxu0
    %v4320 = vadd.f32 0.0, %v4319
    %v4321 = vpop.f32.mrf.mxu0
    %v4322 = vpop.f32.mrf.mxu0
    %v4323 = vadd.f32 0.0, %v4322
    %v4324 = vpop.f32.mrf.mxu0
    %4325 = vmatprep.mubr.bf16.mxu0 0
    %4326 = vmatmul.mubr.bf16.gmra.mxu0 %v4083
    %v4327 = vpop.f32.mrf.mxu0
    %v4328 = vpop.f32.mrf.mxu0
    %v4329 = vpop.f32.mrf.mxu0
    %v4330 = vpop.f32.mrf.mxu0
    %4331 = vmatprep.mubr.bf16.mxu0 0
    %4332 = vmatmul.mubr.bf16.gmra.mxu0 %v4091
    %v4333 = vpop.f32.mrf.mxu0
    %v4334 = vadd.f32 0.0, %v4333
    %v4335 = vpop.f32.mrf.mxu0
    %v4336 = vpop.f32.mrf.mxu0
    %v4337 = vadd.f32 0.0, %v4336
    %v4338 = vpop.f32.mrf.mxu0
    %4339 = vmatprep.mubr.bf16.mxu0 0
    %4340 = vmatmul.mubr.bf16.gmra.mxu0 %v4099
    %v4341 = vpop.f32.mrf.mxu0
    %v4342 = vadd.f32 0.0, %v4341
    %v4343 = vpop.f32.mrf.mxu0
    %v4344 = vpop.f32.mrf.mxu0
    %v4345 = vadd.f32 0.0, %v4344
    %v4346 = vpop.f32.mrf.mxu0
    %4347 = vmatprep.mubr.bf16.mxu0 0
    %4348 = vmatmul.mubr.bf16.gmra.mxu0 %v4107
    %v4349 = vpop.f32.mrf.mxu0
    %v4350 = vadd.f32 0.0, %v4349
    %v4351 = vpop.f32.mrf.mxu0
    %v4352 = vpop.f32.mrf.mxu0
    %v4353 = vadd.f32 0.0, %v4352
    %v4354 = vpop.f32.mrf.mxu0
    %4355 = vmatprep.mubr.bf16.mxu0 0
    %4356 = vmatmul.mubr.bf16.gmra.mxu0 %v4115
    %v4357 = vpop.f32.mrf.mxu0
    %v4358 = vadd.f32 0.0, %v4357
    %v4359 = vpop.f32.mrf.mxu0
    %v4360 = vpop.f32.mrf.mxu0
    %v4361 = vadd.f32 0.0, %v4360
    %v4362 = vpop.f32.mrf.mxu0
    %4363 = vmatprep.mubr.bf16.mxu0 0
    %4364 = vmatmul.mubr.bf16.gmra.mxu0 %v4123
    %v4365 = vpop.f32.mrf.mxu0
    %v4366 = vpop.f32.mrf.mxu0
    %v4367 = vpop.f32.mrf.mxu0
    %v4368 = vpop.f32.mrf.mxu0
    %4369 = vmatprep.mubr.bf16.mxu0 0
    %4370 = vmatmul.mubr.bf16.gmra.mxu0 %v4131
    %v4371 = vpop.f32.mrf.mxu0
    %v4372 = vadd.f32 0.0, %v4371
    %v4373 = vpop.f32.mrf.mxu0
    %v4374 = vpop.f32.mrf.mxu0
    %v4375 = vadd.f32 0.0, %v4374
    %v4376 = vpop.f32.mrf.mxu0
    %4377 = vmatprep.mubr.bf16.mxu0 0
    %4378 = vmatmul.mubr.bf16.gmra.mxu0 %v4139
    %v4379 = vpop.f32.mrf.mxu0
    %v4380 = vadd.f32 0.0, %v4379
    %v4381 = vpop.f32.mrf.mxu0
    %v4382 = vpop.f32.mrf.mxu0
    %v4383 = vadd.f32 0.0, %v4382
    %v4384 = vpop.f32.mrf.mxu0
    %4385 = vmatprep.mubr.bf16.mxu0 0
    %4386 = vmatmul.mubr.bf16.gmra.mxu0 %v4147
    %v4387 = vpop.f32.mrf.mxu0
    %v4388 = vadd.f32 0.0, %v4387
    %v4389 = vpop.f32.mrf.mxu0
    %v4390 = vpop.f32.mrf.mxu0
    %v4391 = vadd.f32 0.0, %v4390
    %v4392 = vpop.f32.mrf.mxu0
    %4393 = vmatprep.mubr.bf16.mxu0 0
    %4394 = vmatmul.mubr.bf16.gmra.mxu0 %v4155
    %v4395 = vpop.f32.mrf.mxu0
    %v4396 = vadd.f32 0.0, %v4395
    %v4397 = vpop.f32.mrf.mxu0
    %v4398 = vpop.f32.mrf.mxu0
    %v4399 = vadd.f32 0.0, %v4398
    %v4400 = vpop.f32.mrf.mxu0
    %4401 = vdwg.mxu0
    %v4402 = vadd.f32 %v3702, %v4258
    %v4403 = vadd.f32 %v3705, %v4261
    %v4404 = vadd.f32 %v3710, %v4266
    %v4405 = vadd.f32 %v3713, %v4269
    %v4406 = vadd.f32 %v3718, %v4274
    %v4407 = vadd.f32 %v3721, %v4277
    %v4408 = vadd.f32 %v3726, %v4282
    %v4409 = vadd.f32 %v3729, %v4285
    %v4410 = vadd.f32 %v3740, %v4296
    %v4411 = vadd.f32 %v3743, %v4299
    %v4412 = vadd.f32 %v3748, %v4304
    %v4413 = vadd.f32 %v3751, %v4307
    %v4414 = vadd.f32 %v3756, %v4312
    %v4415 = vadd.f32 %v3759, %v4315
    %v4416 = vadd.f32 %v3764, %v4320
    %v4417 = vadd.f32 %v3767, %v4323
    %v4418 = vadd.f32 %v3778, %v4334
    %v4419 = vadd.f32 %v3781, %v4337
    %v4420 = vadd.f32 %v3786, %v4342
    %v4421 = vadd.f32 %v3789, %v4345
    %v4422 = vadd.f32 %v3794, %v4350
    %v4423 = vadd.f32 %v3797, %v4353
    %v4424 = vadd.f32 %v3802, %v4358
    %v4425 = vadd.f32 %v3805, %v4361
    %v4426 = vadd.f32 %v3816, %v4372
    %v4427 = vadd.f32 %v3819, %v4375
    %v4428 = vadd.f32 %v3824, %v4380
    %v4429 = vadd.f32 %v3827, %v4383
    %v4430 = vadd.f32 %v3832, %v4388
    %v4431 = vadd.f32 %v3835, %v4391
    %v4432 = vadd.f32 %v3840, %v4396
    %v4433 = vadd.f32 %v3843, %v4399
    %v4434 = vsel %vm3139, 0.0, %v4402
    %v4435 = vsel %vm3140, 0.0, %v4403
    %v4436 = vsel %vm3141, 0.0, %v4404
    %v4437 = vsel %vm3142, 0.0, %v4405
    %v4438 = vsel %vm3143, 0.0, %v4406
    %v4439 = vsel %vm3144, 0.0, %v4407
    %v4440 = vsel %vm3145, 0.0, %v4408
    %v4441 = vsel %vm3146, 0.0, %v4409
    %v4442 = vsel %vm3147, 0.0, %v4410
    %v4443 = vsel %vm3148, 0.0, %v4411
    %v4444 = vsel %vm3149, 0.0, %v4412
    %v4445 = vsel %vm3150, 0.0, %v4413
    %v4446 = vsel %vm3151, 0.0, %v4414
    %v4447 = vsel %vm3152, 0.0, %v4415
    %v4448 = vsel %vm3153, 0.0, %v4416
    %v4449 = vsel %vm3154, 0.0, %v4417
    %v4450 = vsel %vm3155, 0.0, %v4418
    %v4451 = vsel %vm3156, 0.0, %v4419
    %v4452 = vsel %vm3157, 0.0, %v4420
    %v4453 = vsel %vm3158, 0.0, %v4421
    %v4454 = vsel %vm3159, 0.0, %v4422
    %v4455 = vsel %vm3160, 0.0, %v4423
    %v4456 = vsel %vm3161, 0.0, %v4424
    %v4457 = vsel %vm3162, 0.0, %v4425
    %v4458 = vsel %vm3163, 0.0, %v4426
    %v4459 = vsel %vm3164, 0.0, %v4427
    %v4460 = vsel %vm3165, 0.0, %v4428
    %v4461 = vsel %vm3166, 0.0, %v4429
    %v4462 = vsel %vm3167, 0.0, %v4430
    %v4463 = vsel %vm3168, 0.0, %v4431
    %v4464 = vsel %vm3169, 0.0, %v4432
    %v4465 = vsel %vm3170, 0.0, %v4433
    %v4466 = vadd.f32 %v3107, %v4434
    %v4467 = vadd.f32 %v3108, %v4435
    %v4468 = vadd.f32 %v3109, %v4436
    %v4469 = vadd.f32 %v3110, %v4437
    %v4470 = vadd.f32 %v3111, %v4438
    %v4471 = vadd.f32 %v3112, %v4439
    %v4472 = vadd.f32 %v3113, %v4440
    %v4473 = vadd.f32 %v3114, %v4441
    %v4474 = vadd.f32 %v3115, %v4442
    %v4475 = vadd.f32 %v3116, %v4443
    %v4476 = vadd.f32 %v3117, %v4444
    %v4477 = vadd.f32 %v3118, %v4445
    %v4478 = vadd.f32 %v3119, %v4446
    %v4479 = vadd.f32 %v3120, %v4447
    %v4480 = vadd.f32 %v3121, %v4448
    %v4481 = vadd.f32 %v3122, %v4449
    %v4482 = vadd.f32 %v3123, %v4450
    %v4483 = vadd.f32 %v3124, %v4451
    %v4484 = vadd.f32 %v3125, %v4452
    %v4485 = vadd.f32 %v3126, %v4453
    %v4486 = vadd.f32 %v3127, %v4454
    %v4487 = vadd.f32 %v3128, %v4455
    %v4488 = vadd.f32 %v3129, %v4456
    %v4489 = vadd.f32 %v3130, %v4457
    %v4490 = vadd.f32 %v3131, %v4458
    %v4491 = vadd.f32 %v3132, %v4459
    %v4492 = vadd.f32 %v3133, %v4460
    %v4493 = vadd.f32 %v3134, %v4461
    %v4494 = vadd.f32 %v3135, %v4462
    %v4495 = vadd.f32 %v3136, %v4463
    %v4496 = vadd.f32 %v3137, %v4464
    %v4497 = vadd.f32 %v3138, %v4465
    %s4498 = scalar_lea.vmem [#allocation6], 256
    %v4499 = vld [vmem:[%s4498] sm:$0xf]
    %v4500 = vld [vmem:[%s4498 + $0x4] sm:$0xf]
    %v4501 = vld [vmem:[%s4498 + $0x8] sm:$0xf]
    %v4502 = vld [vmem:[%s4498 + $0xc] sm:$0xf]
    %v4503 = vld [vmem:[%s4498 + $0x10] sm:$0xf]
    %v4504 = vld [vmem:[%s4498 + $0x14] sm:$0xf]
    %v4505 = vld [vmem:[%s4498 + $0x18] sm:$0xf]
    %v4506 = vld [vmem:[%s4498 + $0x1c] sm:$0xf]
    %v4507 = vld [vmem:[%s4498 + $0x20] sm:$0xf]
    %v4508 = vld [vmem:[%s4498 + $0x24] sm:$0xf]
    %v4509 = vld [vmem:[%s4498 + $0x28] sm:$0xf]
    %v4510 = vld [vmem:[%s4498 + $0x2c] sm:$0xf]
    %v4511 = vld [vmem:[%s4498 + $0x30] sm:$0xf]
    %v4512 = vld [vmem:[%s4498 + $0x34] sm:$0xf]
    %v4513 = vld [vmem:[%s4498 + $0x38] sm:$0xf]
    %v4514 = vld [vmem:[%s4498 + $0x3c] sm:$0xf]
    %v4531 = vunpack.c.l.b16 %v4499
    %v4532 = vunpack.c.l.b16 %v4500
    %v4533 = vunpack.c.l.b16 %v4501
    %v4534 = vunpack.c.l.b16 %v4502
    %v4535 = vunpack.c.l.b16 %v4503
    %v4536 = vunpack.c.l.b16 %v4504
    %v4537 = vunpack.c.l.b16 %v4505
    %v4538 = vunpack.c.l.b16 %v4506
    %v4539 = vunpack.c.l.b16 %v4507
    %v4540 = vunpack.c.l.b16 %v4508
    %v4541 = vunpack.c.l.b16 %v4509
    %v4542 = vunpack.c.l.b16 %v4510
    %v4543 = vunpack.c.l.b16 %v4511
    %v4544 = vunpack.c.l.b16 %v4512
    %v4545 = vunpack.c.l.b16 %v4513
    %v4546 = vunpack.c.l.b16 %v4514
    %v4547 = vpack.c.b16 %v4532, %v4531
    %v4548 = vpack.c.b16 %v4534, %v4533
    %v4549 = vpack.c.b16 %v4536, %v4535
    %v4550 = vpack.c.b16 %v4538, %v4537
    %v4551 = vpack.c.b16 %v4540, %v4539
    %v4552 = vpack.c.b16 %v4542, %v4541
    %v4553 = vpack.c.b16 %v4544, %v4543
    %v4554 = vpack.c.b16 %v4546, %v4545
    %4563 = vmatprep.subr.bf16.mxu0 0
    %4564 = vmatpush1.bf16.msra.mxu0 %v4554
    %4565 = vmatprep.subr.bf16.mxu0 0
    %4566 = vmatpush1.bf16.msra.mxu0 %v4553
    %4567 = vmatprep.subr.bf16.mxu0 0
    %4568 = vmatpush1.bf16.msra.mxu0 %v4552
    %4569 = vmatprep.subr.bf16.mxu0 0
    %4570 = vmatpush1.bf16.msra.mxu0 %v4551
    %4571 = vmatprep.subr.bf16.mxu0 0
    %4572 = vmatpush1.bf16.msra.mxu0 %v4550
    %4573 = vmatprep.subr.bf16.mxu0 0
    %4574 = vmatpush1.bf16.msra.mxu0 %v4549
    %4575 = vmatprep.subr.bf16.mxu0 0
    %4576 = vmatpush1.bf16.msra.mxu0 %v4548
    %4577 = vmatprep.subr.bf16.mxu0 0
    %4578 = vmatpush1.bf16.msra.mxu0 %v4547
    %4579 = vmatprep.subr.bf16.mxu0 0
    %4580 = vmatpush2.bf16.msra.mxu0 0
    %4581 = vmatprep.subr.bf16.mxu0 0
    %4582 = vmatpush2.bf16.msra.mxu0 0
    %4583 = vmatprep.subr.bf16.mxu0 0
    %4584 = vmatpush2.bf16.msra.mxu0 0
    %4585 = vmatprep.subr.bf16.mxu0 0
    %4586 = vmatpush2.bf16.msra.mxu0 0
    %4587 = vmatprep.subr.bf16.mxu0 0
    %4588 = vmatpush2.bf16.msra.mxu0 0
    %4589 = vmatprep.subr.bf16.mxu0 0
    %4590 = vmatpush2.bf16.msra.mxu0 0
    %4591 = vmatprep.subr.bf16.mxu0 0
    %4592 = vmatpush2.bf16.msra.mxu0 0
    %4593 = vmatprep.subr.bf16.mxu0 0
    %4594 = vmatpush2.bf16.msra.mxu0 0
    %4595 = vmatprep.mubr.bf16.mxu0 0
    %4596 = vmatmul.mubr.bf16.gmra.mxu0 %v452
    %v4597 = vpop.f32.mrf.mxu0
    %v4598 = vadd.f32 0.0, %v4597
    %v4599 = vpop.f32.mrf.mxu0
    %v4600 = vpop.f32.mrf.mxu0
    %v4601 = vadd.f32 0.0, %v4600
    %v4602 = vpop.f32.mrf.mxu0
    %4603 = vmatprep.mubr.bf16.mxu0 0
    %4604 = vmatmul.mubr.bf16.gmra.mxu0 %v453
    %v4605 = vpop.f32.mrf.mxu0
    %v4606 = vadd.f32 0.0, %v4605
    %v4607 = vpop.f32.mrf.mxu0
    %v4608 = vpop.f32.mrf.mxu0
    %v4609 = vadd.f32 0.0, %v4608
    %v4610 = vpop.f32.mrf.mxu0
    %4611 = vmatprep.mubr.bf16.mxu0 0
    %4612 = vmatmul.mubr.bf16.gmra.mxu0 %v454
    %v4613 = vpop.f32.mrf.mxu0
    %v4614 = vadd.f32 0.0, %v4613
    %v4615 = vpop.f32.mrf.mxu0
    %v4616 = vpop.f32.mrf.mxu0
    %v4617 = vadd.f32 0.0, %v4616
    %v4618 = vpop.f32.mrf.mxu0
    %4619 = vmatprep.mubr.bf16.mxu0 0
    %4620 = vmatmul.mubr.bf16.gmra.mxu0 %v455
    %v4621 = vpop.f32.mrf.mxu0
    %v4622 = vadd.f32 0.0, %v4621
    %v4623 = vpop.f32.mrf.mxu0
    %v4624 = vpop.f32.mrf.mxu0
    %v4625 = vadd.f32 0.0, %v4624
    %v4626 = vpop.f32.mrf.mxu0
    %4627 = vmatprep.mubr.bf16.mxu0 0
    %4628 = vmatmul.mubr.bf16.gmra.mxu0 %v456
    %v4629 = vpop.f32.mrf.mxu0
    %v4630 = vadd.f32 0.0, %v4629
    %v4631 = vpop.f32.mrf.mxu0
    %v4632 = vpop.f32.mrf.mxu0
    %v4633 = vadd.f32 0.0, %v4632
    %v4634 = vpop.f32.mrf.mxu0
    %4635 = vmatprep.mubr.bf16.mxu0 0
    %4636 = vmatmul.mubr.bf16.gmra.mxu0 %v457
    %v4637 = vpop.f32.mrf.mxu0
    %v4638 = vadd.f32 0.0, %v4637
    %v4639 = vpop.f32.mrf.mxu0
    %v4640 = vpop.f32.mrf.mxu0
    %v4641 = vadd.f32 0.0, %v4640
    %v4642 = vpop.f32.mrf.mxu0
    %4643 = vmatprep.mubr.bf16.mxu0 0
    %4644 = vmatmul.mubr.bf16.gmra.mxu0 %v458
    %v4645 = vpop.f32.mrf.mxu0
    %v4646 = vadd.f32 0.0, %v4645
    %v4647 = vpop.f32.mrf.mxu0
    %v4648 = vpop.f32.mrf.mxu0
    %v4649 = vadd.f32 0.0, %v4648
    %v4650 = vpop.f32.mrf.mxu0
    %4651 = vmatprep.mubr.bf16.mxu0 0
    %4652 = vmatmul.mubr.bf16.gmra.mxu0 %v459
    %v4653 = vpop.f32.mrf.mxu0
    %v4654 = vadd.f32 0.0, %v4653
    %v4655 = vpop.f32.mrf.mxu0
    %v4656 = vpop.f32.mrf.mxu0
    %v4657 = vadd.f32 0.0, %v4656
    %v4658 = vpop.f32.mrf.mxu0
    %4659 = vmatprep.mubr.bf16.mxu0 0
    %4660 = vmatmul.mubr.bf16.gmra.mxu0 %v460
    %v4661 = vpop.f32.mrf.mxu0
    %v4662 = vadd.f32 0.0, %v4661
    %v4663 = vpop.f32.mrf.mxu0
    %v4664 = vpop.f32.mrf.mxu0
    %v4665 = vadd.f32 0.0, %v4664
    %v4666 = vpop.f32.mrf.mxu0
    %4667 = vmatprep.mubr.bf16.mxu0 0
    %4668 = vmatmul.mubr.bf16.gmra.mxu0 %v461
    %v4669 = vpop.f32.mrf.mxu0
    %v4670 = vadd.f32 0.0, %v4669
    %v4671 = vpop.f32.mrf.mxu0
    %v4672 = vpop.f32.mrf.mxu0
    %v4673 = vadd.f32 0.0, %v4672
    %v4674 = vpop.f32.mrf.mxu0
    %4675 = vmatprep.mubr.bf16.mxu0 0
    %4676 = vmatmul.mubr.bf16.gmra.mxu0 %v462
    %v4677 = vpop.f32.mrf.mxu0
    %v4678 = vadd.f32 0.0, %v4677
    %v4679 = vpop.f32.mrf.mxu0
    %v4680 = vpop.f32.mrf.mxu0
    %v4681 = vadd.f32 0.0, %v4680
    %v4682 = vpop.f32.mrf.mxu0
    %4683 = vmatprep.mubr.bf16.mxu0 0
    %4684 = vmatmul.mubr.bf16.gmra.mxu0 %v463
    %v4685 = vpop.f32.mrf.mxu0
    %v4686 = vadd.f32 0.0, %v4685
    %v4687 = vpop.f32.mrf.mxu0
    %v4688 = vpop.f32.mrf.mxu0
    %v4689 = vadd.f32 0.0, %v4688
    %v4690 = vpop.f32.mrf.mxu0
    %4691 = vmatprep.mubr.bf16.mxu0 0
    %4692 = vmatmul.mubr.bf16.gmra.mxu0 %v464
    %v4693 = vpop.f32.mrf.mxu0
    %v4694 = vadd.f32 0.0, %v4693
    %v4695 = vpop.f32.mrf.mxu0
    %v4696 = vpop.f32.mrf.mxu0
    %v4697 = vadd.f32 0.0, %v4696
    %v4698 = vpop.f32.mrf.mxu0
    %4699 = vmatprep.mubr.bf16.mxu0 0
    %4700 = vmatmul.mubr.bf16.gmra.mxu0 %v465
    %v4701 = vpop.f32.mrf.mxu0
    %v4702 = vadd.f32 0.0, %v4701
    %v4703 = vpop.f32.mrf.mxu0
    %v4704 = vpop.f32.mrf.mxu0
    %v4705 = vadd.f32 0.0, %v4704
    %v4706 = vpop.f32.mrf.mxu0
    %4707 = vmatprep.mubr.bf16.mxu0 0
    %4708 = vmatmul.mubr.bf16.gmra.mxu0 %v466
    %v4709 = vpop.f32.mrf.mxu0
    %v4710 = vadd.f32 0.0, %v4709
    %v4711 = vpop.f32.mrf.mxu0
    %v4712 = vpop.f32.mrf.mxu0
    %v4713 = vadd.f32 0.0, %v4712
    %v4714 = vpop.f32.mrf.mxu0
    %4715 = vmatprep.mubr.bf16.mxu0 0
    %4716 = vmatmul.mubr.bf16.gmra.mxu0 %v467
    %v4717 = vpop.f32.mrf.mxu0
    %v4718 = vadd.f32 0.0, %v4717
    %v4719 = vpop.f32.mrf.mxu0
    %v4720 = vpop.f32.mrf.mxu0
    %v4721 = vadd.f32 0.0, %v4720
    %v4722 = vpop.f32.mrf.mxu0
    %4723 = vdwg.mxu0
    %v4724 = vadd.f32 %v4466, %v4598
    %v4725 = vadd.f32 %v4467, %v4601
    %v4726 = vadd.f32 %v4468, %v4606
    %v4727 = vadd.f32 %v4469, %v4609
    %v4728 = vadd.f32 %v4470, %v4614
    %v4729 = vadd.f32 %v4471, %v4617
    %v4730 = vadd.f32 %v4472, %v4622
    %v4731 = vadd.f32 %v4473, %v4625
    %v4732 = vadd.f32 %v4474, %v4630
    %v4733 = vadd.f32 %v4475, %v4633
    %v4734 = vadd.f32 %v4476, %v4638
    %v4735 = vadd.f32 %v4477, %v4641
    %v4736 = vadd.f32 %v4478, %v4646
    %v4737 = vadd.f32 %v4479, %v4649
    %v4738 = vadd.f32 %v4480, %v4654
    %v4739 = vadd.f32 %v4481, %v4657
    %v4740 = vadd.f32 %v4482, %v4662
    %v4741 = vadd.f32 %v4483, %v4665
    %v4742 = vadd.f32 %v4484, %v4670
    %v4743 = vadd.f32 %v4485, %v4673
    %v4744 = vadd.f32 %v4486, %v4678
    %v4745 = vadd.f32 %v4487, %v4681
    %v4746 = vadd.f32 %v4488, %v4686
    %v4747 = vadd.f32 %v4489, %v4689
    %v4748 = vadd.f32 %v4490, %v4694
    %v4749 = vadd.f32 %v4491, %v4697
    %v4750 = vadd.f32 %v4492, %v4702
    %v4751 = vadd.f32 %v4493, %v4705
    %v4752 = vadd.f32 %v4494, %v4710
    %v4753 = vadd.f32 %v4495, %v4713
    %v4754 = vadd.f32 %v4496, %v4718
    %v4755 = vadd.f32 %v4497, %v4721
    %v4756 = vld [vmem:[%s4] sm:$0x1]
    %v4758 = vlaneseq
    %v4759 = vshrl.u32 %v4758, 7
    %v4760 = vsub.s32 0, %v4759
    %v4761 = vrot.slane %v4756, %v4760
    %v4763 = vadd.f32 %v4724, %v4761
    %v4764 = vadd.f32 %v4725, %v4761
    %v4765 = vadd.f32 %v4726, %v4761
    %v4766 = vadd.f32 %v4727, %v4761
    %v4767 = vadd.f32 %v4728, %v4761
    %v4768 = vadd.f32 %v4729, %v4761
    %v4769 = vadd.f32 %v4730, %v4761
    %v4770 = vadd.f32 %v4731, %v4761
    %v4771 = vadd.f32 %v4732, %v4761
    %v4772 = vadd.f32 %v4733, %v4761
    %v4773 = vadd.f32 %v4734, %v4761
    %v4774 = vadd.f32 %v4735, %v4761
    %v4775 = vadd.f32 %v4736, %v4761
    %v4776 = vadd.f32 %v4737, %v4761
    %v4777 = vadd.f32 %v4738, %v4761
    %v4778 = vadd.f32 %v4739, %v4761
    %v4779 = vadd.f32 %v4740, %v4761
    %v4780 = vadd.f32 %v4741, %v4761
    %v4781 = vadd.f32 %v4742, %v4761
    %v4782 = vadd.f32 %v4743, %v4761
    %v4783 = vadd.f32 %v4744, %v4761
    %v4784 = vadd.f32 %v4745, %v4761
    %v4785 = vadd.f32 %v4746, %v4761
    %v4786 = vadd.f32 %v4747, %v4761
    %v4787 = vadd.f32 %v4748, %v4761
    %v4788 = vadd.f32 %v4749, %v4761
    %v4789 = vadd.f32 %v4750, %v4761
    %v4790 = vadd.f32 %v4751, %v4761
    %v4791 = vadd.f32 %v4752, %v4761
    %v4792 = vadd.f32 %v4753, %v4761
    %v4793 = vadd.f32 %v4754, %v4761
    %v4794 = vadd.f32 %v4755, %v4761
    %v4795 = vmax.f32 %v4763, 0.0
    %v4796 = vmax.f32 %v4764, 0.0
    %v4797 = vmax.f32 %v4765, 0.0
    %v4798 = vmax.f32 %v4766, 0.0
    %v4799 = vmax.f32 %v4767, 0.0
    %v4800 = vmax.f32 %v4768, 0.0
    %v4801 = vmax.f32 %v4769, 0.0
    %v4802 = vmax.f32 %v4770, 0.0
    %v4803 = vmax.f32 %v4771, 0.0
    %v4804 = vmax.f32 %v4772, 0.0
    %v4805 = vmax.f32 %v4773, 0.0
    %v4806 = vmax.f32 %v4774, 0.0
    %v4807 = vmax.f32 %v4775, 0.0
    %v4808 = vmax.f32 %v4776, 0.0
    %v4809 = vmax.f32 %v4777, 0.0
    %v4810 = vmax.f32 %v4778, 0.0
    %v4811 = vmax.f32 %v4779, 0.0
    %v4812 = vmax.f32 %v4780, 0.0
    %v4813 = vmax.f32 %v4781, 0.0
    %v4814 = vmax.f32 %v4782, 0.0
    %v4815 = vmax.f32 %v4783, 0.0
    %v4816 = vmax.f32 %v4784, 0.0
    %v4817 = vmax.f32 %v4785, 0.0
    %v4818 = vmax.f32 %v4786, 0.0
    %v4819 = vmax.f32 %v4787, 0.0
    %v4820 = vmax.f32 %v4788, 0.0
    %v4821 = vmax.f32 %v4789, 0.0
    %v4822 = vmax.f32 %v4790, 0.0
    %v4823 = vmax.f32 %v4791, 0.0
    %v4824 = vmax.f32 %v4792, 0.0
    %v4825 = vmax.f32 %v4793, 0.0
    %v4826 = vmax.f32 %v4794, 0.0
    %v4827 = vpack.c.bf16 %v4796, %v4795
    %v4828 = vpack.c.bf16 %v4798, %v4797
    %v4829 = vpack.c.bf16 %v4800, %v4799
    %v4830 = vpack.c.bf16 %v4802, %v4801
    %v4831 = vpack.c.bf16 %v4804, %v4803
    %v4832 = vpack.c.bf16 %v4806, %v4805
    %v4833 = vpack.c.bf16 %v4808, %v4807
    %v4834 = vpack.c.bf16 %v4810, %v4809
    %v4835 = vpack.c.bf16 %v4812, %v4811
    %v4836 = vpack.c.bf16 %v4814, %v4813
    %v4837 = vpack.c.bf16 %v4816, %v4815
    %v4838 = vpack.c.bf16 %v4818, %v4817
    %v4839 = vpack.c.bf16 %v4820, %v4819
    %v4840 = vpack.c.bf16 %v4822, %v4821
    %v4841 = vpack.c.bf16 %v4824, %v4823
    %v4842 = vpack.c.bf16 %v4826, %v4825
    %v4843 = vld [vmem:[%s5] sm:$0xff]
    %v4844 = vld [vmem:[%s5 + $0x8] sm:$0xff]
    %v4845 = vld [vmem:[%s5 + $0x10] sm:$0xff]
    %v4846 = vld [vmem:[%s5 + $0x18] sm:$0xff]
    %v4847 = vld [vmem:[%s5 + $0x20] sm:$0xff]
    %v4848 = vld [vmem:[%s5 + $0x28] sm:$0xff]
    %v4849 = vld [vmem:[%s5 + $0x30] sm:$0xff]
    %v4850 = vld [vmem:[%s5 + $0x38] sm:$0xff]
    %v4851 = vld [vmem:[%s5 + $0x40] sm:$0xff]
    %v4852 = vld [vmem:[%s5 + $0x48] sm:$0xff]
    %v4853 = vld [vmem:[%s5 + $0x50] sm:$0xff]
    %v4854 = vld [vmem:[%s5 + $0x58] sm:$0xff]
    %v4855 = vld [vmem:[%s5 + $0x60] sm:$0xff]
    %v4856 = vld [vmem:[%s5 + $0x68] sm:$0xff]
    %v4857 = vld [vmem:[%s5 + $0x70] sm:$0xff]
    %v4858 = vld [vmem:[%s5 + $0x78] sm:$0xff]
    %v4859 = vld [vmem:[%s6] sm:$0xff]
    %v4860 = vld [vmem:[%s6 + $0x8] sm:$0xff]
    %v4861 = vld [vmem:[%s6 + $0x10] sm:$0xff]
    %v4862 = vld [vmem:[%s6 + $0x18] sm:$0xff]
    %v4863 = vld [vmem:[%s6 + $0x20] sm:$0xff]
    %v4864 = vld [vmem:[%s6 + $0x28] sm:$0xff]
    %v4865 = vld [vmem:[%s6 + $0x30] sm:$0xff]
    %v4866 = vld [vmem:[%s6 + $0x38] sm:$0xff]
    %v4875 = vunpack.c.l.b16 %v4859
    %v4876 = vunpack.c.h.b16 %v4859
    %v4877 = vunpack.c.l.b16 %v4860
    %v4878 = vunpack.c.h.b16 %v4860
    %v4879 = vunpack.c.l.b16 %v4861
    %v4880 = vunpack.c.h.b16 %v4861
    %v4881 = vunpack.c.l.b16 %v4862
    %v4882 = vunpack.c.h.b16 %v4862
    %v4883 = vunpack.c.l.b16 %v4863
    %v4884 = vunpack.c.h.b16 %v4863
    %v4885 = vunpack.c.l.b16 %v4864
    %v4886 = vunpack.c.h.b16 %v4864
    %v4887 = vunpack.c.l.b16 %v4865
    %v4888 = vunpack.c.h.b16 %v4865
    %v4889 = vunpack.c.l.b16 %v4866
    %v4890 = vunpack.c.h.b16 %v4866
    %v4891 = vpack.c.b16 %v4877, %v4875
    %v4892 = vpack.c.b16 %v4878, %v4876
    %v4893 = vpack.c.b16 %v4881, %v4879
    %v4894 = vpack.c.b16 %v4882, %v4880
    %v4895 = vpack.c.b16 %v4885, %v4883
    %v4896 = vpack.c.b16 %v4886, %v4884
    %v4897 = vpack.c.b16 %v4889, %v4887
    %v4898 = vpack.c.b16 %v4890, %v4888
    %4907 = vmatprep.subr.bf16.mxu0 0
    %4908 = vmatpush1.bf16.msra.mxu0 0
    %4909 = vmatprep.subr.bf16.mxu0 0
    %4910 = vmatpush1.bf16.msra.mxu0 0
    %4911 = vmatprep.subr.bf16.mxu0 0
    %4912 = vmatpush1.bf16.msra.mxu0 0
    %4913 = vmatprep.subr.bf16.mxu0 0
    %4914 = vmatpush1.bf16.msra.mxu0 0
    %4915 = vmatprep.subr.bf16.mxu0 %v4898
    %4916 = vmatpush1.bf16.msra.mxu0 %v4897
    %4917 = vmatprep.subr.bf16.mxu0 %v4896
    %4918 = vmatpush1.bf16.msra.mxu0 %v4895
    %4919 = vmatprep.subr.bf16.mxu0 %v4894
    %4920 = vmatpush1.bf16.msra.mxu0 %v4893
    %4921 = vmatprep.subr.bf16.mxu0 %v4892
    %4922 = vmatpush1.bf16.msra.mxu0 %v4891
    %4923 = vmatprep.subr.bf16.mxu0 0
    %4924 = vmatpush2.bf16.msra.mxu0 0
    %4925 = vmatprep.subr.bf16.mxu0 0
    %4926 = vmatpush2.bf16.msra.mxu0 0
    %4927 = vmatprep.subr.bf16.mxu0 0
    %4928 = vmatpush2.bf16.msra.mxu0 0
    %4929 = vmatprep.subr.bf16.mxu0 0
    %4930 = vmatpush2.bf16.msra.mxu0 0
    %4931 = vmatprep.subr.bf16.mxu0 0
    %4932 = vmatpush2.bf16.msra.mxu0 0
    %4933 = vmatprep.subr.bf16.mxu0 0
    %4934 = vmatpush2.bf16.msra.mxu0 0
    %4935 = vmatprep.subr.bf16.mxu0 0
    %4936 = vmatpush2.bf16.msra.mxu0 0
    %4937 = vmatprep.subr.bf16.mxu0 0
    %4938 = vmatpush2.bf16.msra.mxu0 0
    %4939 = vmatprep.mubr.bf16.mxu0 0
    %4940 = vmatmul.mubr.bf16.gmra.mxu0 %v212
    %v4941 = vpop.f32.mrf.mxu0
    %v4942 = vadd.f32 0.0, %v4941
    %v4943 = vpop.f32.mrf.mxu0
    %v4944 = vadd.f32 0.0, %v4943
    %v4945 = vpop.f32.mrf.mxu0
    %v4946 = vadd.f32 0.0, %v4945
    %v4947 = vpop.f32.mrf.mxu0
    %v4948 = vadd.f32 0.0, %v4947
    %4949 = vmatprep.mubr.bf16.mxu0 0
    %4950 = vmatmul.mubr.bf16.gmra.mxu0 %v215
    %v4951 = vpop.f32.mrf.mxu0
    %v4952 = vadd.f32 0.0, %v4951
    %v4953 = vpop.f32.mrf.mxu0
    %v4954 = vadd.f32 0.0, %v4953
    %v4955 = vpop.f32.mrf.mxu0
    %v4956 = vadd.f32 0.0, %v4955
    %v4957 = vpop.f32.mrf.mxu0
    %v4958 = vadd.f32 0.0, %v4957
    %4959 = vmatprep.mubr.bf16.mxu0 0
    %4960 = vmatmul.mubr.bf16.gmra.mxu0 %v218
    %v4961 = vpop.f32.mrf.mxu0
    %v4962 = vadd.f32 0.0, %v4961
    %v4963 = vpop.f32.mrf.mxu0
    %v4964 = vadd.f32 0.0, %v4963
    %v4965 = vpop.f32.mrf.mxu0
    %v4966 = vadd.f32 0.0, %v4965
    %v4967 = vpop.f32.mrf.mxu0
    %v4968 = vadd.f32 0.0, %v4967
    %4969 = vmatprep.mubr.bf16.mxu0 0
    %4970 = vmatmul.mubr.bf16.gmra.mxu0 %v221
    %v4971 = vpop.f32.mrf.mxu0
    %v4972 = vadd.f32 0.0, %v4971
    %v4973 = vpop.f32.mrf.mxu0
    %v4974 = vadd.f32 0.0, %v4973
    %v4975 = vpop.f32.mrf.mxu0
    %v4976 = vadd.f32 0.0, %v4975
    %v4977 = vpop.f32.mrf.mxu0
    %v4978 = vadd.f32 0.0, %v4977
    %4979 = vmatprep.mubr.bf16.mxu0 0
    %4980 = vmatmul.mubr.bf16.gmra.mxu0 %v224
    %v4981 = vpop.f32.mrf.mxu0
    %v4982 = vadd.f32 0.0, %v4981
    %v4983 = vpop.f32.mrf.mxu0
    %v4984 = vadd.f32 0.0, %v4983
    %v4985 = vpop.f32.mrf.mxu0
    %v4986 = vadd.f32 0.0, %v4985
    %v4987 = vpop.f32.mrf.mxu0
    %v4988 = vadd.f32 0.0, %v4987
    %4989 = vmatprep.mubr.bf16.mxu0 0
    %4990 = vmatmul.mubr.bf16.gmra.mxu0 %v227
    %v4991 = vpop.f32.mrf.mxu0
    %v4992 = vadd.f32 0.0, %v4991
    %v4993 = vpop.f32.mrf.mxu0
    %v4994 = vadd.f32 0.0, %v4993
    %v4995 = vpop.f32.mrf.mxu0
    %v4996 = vadd.f32 0.0, %v4995
    %v4997 = vpop.f32.mrf.mxu0
    %v4998 = vadd.f32 0.0, %v4997
    %4999 = vmatprep.mubr.bf16.mxu0 0
    %5000 = vmatmul.mubr.bf16.gmra.mxu0 %v230
    %v5001 = vpop.f32.mrf.mxu0
    %v5002 = vadd.f32 0.0, %v5001
    %v5003 = vpop.f32.mrf.mxu0
    %v5004 = vadd.f32 0.0, %v5003
    %v5005 = vpop.f32.mrf.mxu0
    %v5006 = vadd.f32 0.0, %v5005
    %v5007 = vpop.f32.mrf.mxu0
    %v5008 = vadd.f32 0.0, %v5007
    %5009 = vmatprep.mubr.bf16.mxu0 0
    %5010 = vmatmul.mubr.bf16.gmra.mxu0 %v233
    %v5011 = vpop.f32.mrf.mxu0
    %v5012 = vadd.f32 0.0, %v5011
    %v5013 = vpop.f32.mrf.mxu0
    %v5014 = vadd.f32 0.0, %v5013
    %v5015 = vpop.f32.mrf.mxu0
    %v5016 = vadd.f32 0.0, %v5015
    %v5017 = vpop.f32.mrf.mxu0
    %v5018 = vadd.f32 0.0, %v5017
    %5019 = vmatprep.mubr.bf16.mxu0 0
    %5020 = vmatmul.mubr.bf16.gmra.mxu0 %v236
    %v5021 = vpop.f32.mrf.mxu0
    %v5022 = vadd.f32 0.0, %v5021
    %v5023 = vpop.f32.mrf.mxu0
    %v5024 = vadd.f32 0.0, %v5023
    %v5025 = vpop.f32.mrf.mxu0
    %v5026 = vadd.f32 0.0, %v5025
    %v5027 = vpop.f32.mrf.mxu0
    %v5028 = vadd.f32 0.0, %v5027
    %5029 = vmatprep.mubr.bf16.mxu0 0
    %5030 = vmatmul.mubr.bf16.gmra.mxu0 %v239
    %v5031 = vpop.f32.mrf.mxu0
    %v5032 = vadd.f32 0.0, %v5031
    %v5033 = vpop.f32.mrf.mxu0
    %v5034 = vadd.f32 0.0, %v5033
    %v5035 = vpop.f32.mrf.mxu0
    %v5036 = vadd.f32 0.0, %v5035
    %v5037 = vpop.f32.mrf.mxu0
    %v5038 = vadd.f32 0.0, %v5037
    %5039 = vmatprep.mubr.bf16.mxu0 0
    %5040 = vmatmul.mubr.bf16.gmra.mxu0 %v242
    %v5041 = vpop.f32.mrf.mxu0
    %v5042 = vadd.f32 0.0, %v5041
    %v5043 = vpop.f32.mrf.mxu0
    %v5044 = vadd.f32 0.0, %v5043
    %v5045 = vpop.f32.mrf.mxu0
    %v5046 = vadd.f32 0.0, %v5045
    %v5047 = vpop.f32.mrf.mxu0
    %v5048 = vadd.f32 0.0, %v5047
    %5049 = vmatprep.mubr.bf16.mxu0 0
    %5050 = vmatmul.mubr.bf16.gmra.mxu0 %v245
    %v5051 = vpop.f32.mrf.mxu0
    %v5052 = vadd.f32 0.0, %v5051
    %v5053 = vpop.f32.mrf.mxu0
    %v5054 = vadd.f32 0.0, %v5053
    %v5055 = vpop.f32.mrf.mxu0
    %v5056 = vadd.f32 0.0, %v5055
    %v5057 = vpop.f32.mrf.mxu0
    %v5058 = vadd.f32 0.0, %v5057
    %5059 = vmatprep.mubr.bf16.mxu0 0
    %5060 = vmatmul.mubr.bf16.gmra.mxu0 %v248
    %v5061 = vpop.f32.mrf.mxu0
    %v5062 = vadd.f32 0.0, %v5061
    %v5063 = vpop.f32.mrf.mxu0
    %v5064 = vadd.f32 0.0, %v5063
    %v5065 = vpop.f32.mrf.mxu0
    %v5066 = vadd.f32 0.0, %v5065
    %v5067 = vpop.f32.mrf.mxu0
    %v5068 = vadd.f32 0.0, %v5067
    %5069 = vmatprep.mubr.bf16.mxu0 0
    %5070 = vmatmul.mubr.bf16.gmra.mxu0 %v251
    %v5071 = vpop.f32.mrf.mxu0
    %v5072 = vadd.f32 0.0, %v5071
    %v5073 = vpop.f32.mrf.mxu0
    %v5074 = vadd.f32 0.0, %v5073
    %v5075 = vpop.f32.mrf.mxu0
    %v5076 = vadd.f32 0.0, %v5075
    %v5077 = vpop.f32.mrf.mxu0
    %v5078 = vadd.f32 0.0, %v5077
    %5079 = vmatprep.mubr.bf16.mxu0 0
    %5080 = vmatmul.mubr.bf16.gmra.mxu0 %v254
    %v5081 = vpop.f32.mrf.mxu0
    %v5082 = vadd.f32 0.0, %v5081
    %v5083 = vpop.f32.mrf.mxu0
    %v5084 = vadd.f32 0.0, %v5083
    %v5085 = vpop.f32.mrf.mxu0
    %v5086 = vadd.f32 0.0, %v5085
    %v5087 = vpop.f32.mrf.mxu0
    %v5088 = vadd.f32 0.0, %v5087
    %5089 = vmatprep.mubr.bf16.mxu0 0
    %5090 = vmatmul.mubr.bf16.gmra.mxu0 %v257
    %v5091 = vpop.f32.mrf.mxu0
    %v5092 = vadd.f32 0.0, %v5091
    %v5093 = vpop.f32.mrf.mxu0
    %v5094 = vadd.f32 0.0, %v5093
    %v5095 = vpop.f32.mrf.mxu0
    %v5096 = vadd.f32 0.0, %v5095
    %v5097 = vpop.f32.mrf.mxu0
    %v5098 = vadd.f32 0.0, %v5097
    %5099 = vdwg.mxu0
    %v5116 = vunpack.c.l.b16 %v4843
    %v5117 = vunpack.c.h.b16 %v4843
    %v5118 = vunpack.c.l.b16 %v4844
    %v5119 = vunpack.c.h.b16 %v4844
    %v5120 = vunpack.c.l.b16 %v4845
    %v5121 = vunpack.c.h.b16 %v4845
    %v5122 = vunpack.c.l.b16 %v4846
    %v5123 = vunpack.c.h.b16 %v4846
    %v5124 = vunpack.c.l.b16 %v4847
    %v5125 = vunpack.c.h.b16 %v4847
    %v5126 = vunpack.c.l.b16 %v4848
    %v5127 = vunpack.c.h.b16 %v4848
    %v5128 = vunpack.c.l.b16 %v4849
    %v5129 = vunpack.c.h.b16 %v4849
    %v5130 = vunpack.c.l.b16 %v4850
    %v5131 = vunpack.c.h.b16 %v4850
    %v5132 = vunpack.c.l.b16 %v4851
    %v5133 = vunpack.c.h.b16 %v4851
    %v5134 = vunpack.c.l.b16 %v4852
    %v5135 = vunpack.c.h.b16 %v4852
    %v5136 = vunpack.c.l.b16 %v4853
    %v5137 = vunpack.c.h.b16 %v4853
    %v5138 = vunpack.c.l.b16 %v4854
    %v5139 = vunpack.c.h.b16 %v4854
    %v5140 = vunpack.c.l.b16 %v4855
    %v5141 = vunpack.c.h.b16 %v4855
    %v5142 = vunpack.c.l.b16 %v4856
    %v5143 = vunpack.c.h.b16 %v4856
    %v5144 = vunpack.c.l.b16 %v4857
    %v5145 = vunpack.c.h.b16 %v4857
    %v5146 = vunpack.c.l.b16 %v4858
    %v5147 = vunpack.c.h.b16 %v4858
    %v5148 = vpack.c.b16 %v5118, %v5116
    %v5149 = vpack.c.b16 %v5119, %v5117
    %v5150 = vpack.c.b16 %v5122, %v5120
    %v5151 = vpack.c.b16 %v5123, %v5121
    %v5152 = vpack.c.b16 %v5126, %v5124
    %v5153 = vpack.c.b16 %v5127, %v5125
    %v5154 = vpack.c.b16 %v5130, %v5128
    %v5155 = vpack.c.b16 %v5131, %v5129
    %v5156 = vpack.c.b16 %v5134, %v5132
    %v5157 = vpack.c.b16 %v5135, %v5133
    %v5158 = vpack.c.b16 %v5138, %v5136
    %v5159 = vpack.c.b16 %v5139, %v5137
    %v5160 = vpack.c.b16 %v5142, %v5140
    %v5161 = vpack.c.b16 %v5143, %v5141
    %v5162 = vpack.c.b16 %v5146, %v5144
    %v5163 = vpack.c.b16 %v5147, %v5145
    %5180 = vmatprep.subr.bf16.mxu0 %v5163
    %5181 = vmatpush1.bf16.msra.mxu0 %v5162
    %5182 = vmatprep.subr.bf16.mxu0 %v5161
    %5183 = vmatpush1.bf16.msra.mxu0 %v5160
    %5184 = vmatprep.subr.bf16.mxu0 %v5159
    %5185 = vmatpush1.bf16.msra.mxu0 %v5158
    %5186 = vmatprep.subr.bf16.mxu0 %v5157
    %5187 = vmatpush1.bf16.msra.mxu0 %v5156
    %5188 = vmatprep.subr.bf16.mxu0 %v5155
    %5189 = vmatpush1.bf16.msra.mxu0 %v5154
    %5190 = vmatprep.subr.bf16.mxu0 %v5153
    %5191 = vmatpush1.bf16.msra.mxu0 %v5152
    %5192 = vmatprep.subr.bf16.mxu0 %v5151
    %5193 = vmatpush1.bf16.msra.mxu0 %v5150
    %5194 = vmatprep.subr.bf16.mxu0 %v5149
    %5195 = vmatpush1.bf16.msra.mxu0 %v5148
    %5196 = vmatprep.subr.bf16.mxu0 0
    %5197 = vmatpush2.bf16.msra.mxu0 0
    %5198 = vmatprep.subr.bf16.mxu0 0
    %5199 = vmatpush2.bf16.msra.mxu0 0
    %5200 = vmatprep.subr.bf16.mxu0 0
    %5201 = vmatpush2.bf16.msra.mxu0 0
    %5202 = vmatprep.subr.bf16.mxu0 0
    %5203 = vmatpush2.bf16.msra.mxu0 0
    %5204 = vmatprep.subr.bf16.mxu0 0
    %5205 = vmatpush2.bf16.msra.mxu0 0
    %5206 = vmatprep.subr.bf16.mxu0 0
    %5207 = vmatpush2.bf16.msra.mxu0 0
    %5208 = vmatprep.subr.bf16.mxu0 0
    %5209 = vmatpush2.bf16.msra.mxu0 0
    %5210 = vmatprep.subr.bf16.mxu0 0
    %5211 = vmatpush2.bf16.msra.mxu0 0
    %5212 = vmatprep.mubr.bf16.mxu0 0
    %5213 = vmatmul.mubr.bf16.gmra.mxu0 %v4827
    %v5214 = vpop.f32.mrf.mxu0
    %v5215 = vadd.f32 %v4942, %v5214
    %v5216 = vpop.f32.mrf.mxu0
    %v5217 = vadd.f32 %v4944, %v5216
    %v5218 = vpop.f32.mrf.mxu0
    %v5219 = vadd.f32 %v4946, %v5218
    %v5220 = vpop.f32.mrf.mxu0
    %v5221 = vadd.f32 %v4948, %v5220
    %5222 = vmatprep.mubr.bf16.mxu0 0
    %5223 = vmatmul.mubr.bf16.gmra.mxu0 %v4828
    %v5224 = vpop.f32.mrf.mxu0
    %v5225 = vadd.f32 %v4952, %v5224
    %v5226 = vpop.f32.mrf.mxu0
    %v5227 = vadd.f32 %v4954, %v5226
    %v5228 = vpop.f32.mrf.mxu0
    %v5229 = vadd.f32 %v4956, %v5228
    %v5230 = vpop.f32.mrf.mxu0
    %v5231 = vadd.f32 %v4958, %v5230
    %5232 = vmatprep.mubr.bf16.mxu0 0
    %5233 = vmatmul.mubr.bf16.gmra.mxu0 %v4829
    %v5234 = vpop.f32.mrf.mxu0
    %v5235 = vadd.f32 %v4962, %v5234
    %v5236 = vpop.f32.mrf.mxu0
    %v5237 = vadd.f32 %v4964, %v5236
    %v5238 = vpop.f32.mrf.mxu0
    %v5239 = vadd.f32 %v4966, %v5238
    %v5240 = vpop.f32.mrf.mxu0
    %v5241 = vadd.f32 %v4968, %v5240
    %5242 = vmatprep.mubr.bf16.mxu0 0
    %5243 = vmatmul.mubr.bf16.gmra.mxu0 %v4830
    %v5244 = vpop.f32.mrf.mxu0
    %v5245 = vadd.f32 %v4972, %v5244
    %v5246 = vpop.f32.mrf.mxu0
    %v5247 = vadd.f32 %v4974, %v5246
    %v5248 = vpop.f32.mrf.mxu0
    %v5249 = vadd.f32 %v4976, %v5248
    %v5250 = vpop.f32.mrf.mxu0
    %v5251 = vadd.f32 %v4978, %v5250
    %5252 = vmatprep.mubr.bf16.mxu0 0
    %5253 = vmatmul.mubr.bf16.gmra.mxu0 %v4831
    %v5254 = vpop.f32.mrf.mxu0
    %v5255 = vadd.f32 %v4982, %v5254
    %v5256 = vpop.f32.mrf.mxu0
    %v5257 = vadd.f32 %v4984, %v5256
    %v5258 = vpop.f32.mrf.mxu0
    %v5259 = vadd.f32 %v4986, %v5258
    %v5260 = vpop.f32.mrf.mxu0
    %v5261 = vadd.f32 %v4988, %v5260
    %5262 = vmatprep.mubr.bf16.mxu0 0
    %5263 = vmatmul.mubr.bf16.gmra.mxu0 %v4832
    %v5264 = vpop.f32.mrf.mxu0
    %v5265 = vadd.f32 %v4992, %v5264
    %v5266 = vpop.f32.mrf.mxu0
    %v5267 = vadd.f32 %v4994, %v5266
    %v5268 = vpop.f32.mrf.mxu0
    %v5269 = vadd.f32 %v4996, %v5268
    %v5270 = vpop.f32.mrf.mxu0
    %v5271 = vadd.f32 %v4998, %v5270
    %5272 = vmatprep.mubr.bf16.mxu0 0
    %5273 = vmatmul.mubr.bf16.gmra.mxu0 %v4833
    %v5274 = vpop.f32.mrf.mxu0
    %v5275 = vadd.f32 %v5002, %v5274
    %v5276 = vpop.f32.mrf.mxu0
    %v5277 = vadd.f32 %v5004, %v5276
    %v5278 = vpop.f32.mrf.mxu0
    %v5279 = vadd.f32 %v5006, %v5278
    %v5280 = vpop.f32.mrf.mxu0
    %v5281 = vadd.f32 %v5008, %v5280
    %5282 = vmatprep.mubr.bf16.mxu0 0
    %5283 = vmatmul.mubr.bf16.gmra.mxu0 %v4834
    %v5284 = vpop.f32.mrf.mxu0
    %v5285 = vadd.f32 %v5012, %v5284
    %v5286 = vpop.f32.mrf.mxu0
    %v5287 = vadd.f32 %v5014, %v5286
    %v5288 = vpop.f32.mrf.mxu0
    %v5289 = vadd.f32 %v5016, %v5288
    %v5290 = vpop.f32.mrf.mxu0
    %v5291 = vadd.f32 %v5018, %v5290
    %5292 = vmatprep.mubr.bf16.mxu0 0
    %5293 = vmatmul.mubr.bf16.gmra.mxu0 %v4835
    %v5294 = vpop.f32.mrf.mxu0
    %v5295 = vadd.f32 %v5022, %v5294
    %v5296 = vpop.f32.mrf.mxu0
    %v5297 = vadd.f32 %v5024, %v5296
    %v5298 = vpop.f32.mrf.mxu0
    %v5299 = vadd.f32 %v5026, %v5298
    %v5300 = vpop.f32.mrf.mxu0
    %v5301 = vadd.f32 %v5028, %v5300
    %5302 = vmatprep.mubr.bf16.mxu0 0
    %5303 = vmatmul.mubr.bf16.gmra.mxu0 %v4836
    %v5304 = vpop.f32.mrf.mxu0
    %v5305 = vadd.f32 %v5032, %v5304
    %v5306 = vpop.f32.mrf.mxu0
    %v5307 = vadd.f32 %v5034, %v5306
    %v5308 = vpop.f32.mrf.mxu0
    %v5309 = vadd.f32 %v5036, %v5308
    %v5310 = vpop.f32.mrf.mxu0
    %v5311 = vadd.f32 %v5038, %v5310
    %5312 = vmatprep.mubr.bf16.mxu0 0
    %5313 = vmatmul.mubr.bf16.gmra.mxu0 %v4837
    %v5314 = vpop.f32.mrf.mxu0
    %v5315 = vadd.f32 %v5042, %v5314
    %v5316 = vpop.f32.mrf.mxu0
    %v5317 = vadd.f32 %v5044, %v5316
    %v5318 = vpop.f32.mrf.mxu0
    %v5319 = vadd.f32 %v5046, %v5318
    %v5320 = vpop.f32.mrf.mxu0
    %v5321 = vadd.f32 %v5048, %v5320
    %5322 = vmatprep.mubr.bf16.mxu0 0
    %5323 = vmatmul.mubr.bf16.gmra.mxu0 %v4838
    %v5324 = vpop.f32.mrf.mxu0
    %v5325 = vadd.f32 %v5052, %v5324
    %v5326 = vpop.f32.mrf.mxu0
    %v5327 = vadd.f32 %v5054, %v5326
    %v5328 = vpop.f32.mrf.mxu0
    %v5329 = vadd.f32 %v5056, %v5328
    %v5330 = vpop.f32.mrf.mxu0
    %v5331 = vadd.f32 %v5058, %v5330
    %5332 = vmatprep.mubr.bf16.mxu0 0
    %5333 = vmatmul.mubr.bf16.gmra.mxu0 %v4839
    %v5334 = vpop.f32.mrf.mxu0
    %v5335 = vadd.f32 %v5062, %v5334
    %v5336 = vpop.f32.mrf.mxu0
    %v5337 = vadd.f32 %v5064, %v5336
    %v5338 = vpop.f32.mrf.mxu0
    %v5339 = vadd.f32 %v5066, %v5338
    %v5340 = vpop.f32.mrf.mxu0
    %v5341 = vadd.f32 %v5068, %v5340
    %5342 = vmatprep.mubr.bf16.mxu0 0
    %5343 = vmatmul.mubr.bf16.gmra.mxu0 %v4840
    %v5344 = vpop.f32.mrf.mxu0
    %v5345 = vadd.f32 %v5072, %v5344
    %v5346 = vpop.f32.mrf.mxu0
    %v5347 = vadd.f32 %v5074, %v5346
    %v5348 = vpop.f32.mrf.mxu0
    %v5349 = vadd.f32 %v5076, %v5348
    %v5350 = vpop.f32.mrf.mxu0
    %v5351 = vadd.f32 %v5078, %v5350
    %5352 = vmatprep.mubr.bf16.mxu0 0
    %5353 = vmatmul.mubr.bf16.gmra.mxu0 %v4841
    %v5354 = vpop.f32.mrf.mxu0
    %v5355 = vadd.f32 %v5082, %v5354
    %v5356 = vpop.f32.mrf.mxu0
    %v5357 = vadd.f32 %v5084, %v5356
    %v5358 = vpop.f32.mrf.mxu0
    %v5359 = vadd.f32 %v5086, %v5358
    %v5360 = vpop.f32.mrf.mxu0
    %v5361 = vadd.f32 %v5088, %v5360
    %5362 = vmatprep.mubr.bf16.mxu0 0
    %5363 = vmatmul.mubr.bf16.gmra.mxu0 %v4842
    %v5364 = vpop.f32.mrf.mxu0
    %v5365 = vadd.f32 %v5092, %v5364
    %v5366 = vpop.f32.mrf.mxu0
    %v5367 = vadd.f32 %v5094, %v5366
    %v5368 = vpop.f32.mrf.mxu0
    %v5369 = vadd.f32 %v5096, %v5368
    %v5370 = vpop.f32.mrf.mxu0
    %v5371 = vadd.f32 %v5098, %v5370
    %5372 = vdwg.mxu0
    %v5373 = vld [vmem:[%s7] sm:$0x3]
    %v5375 = vlaneseq
    %v5376 = vshrl.u32 %v5375, 7
    %v5377 = vsub.s32 0, %v5376
    %v5378 = vrot.slane %v5373, %v5377
    %v5379 = vlaneseq
    %v5380 = vshrl.u32 %v5379, 7
    %v5381 = vsub.s32 1, %v5380
    %v5382 = vrot.slane %v5373, %v5381
    %v5385 = vadd.f32 %v5215, %v5378
    %v5386 = vadd.f32 %v5217, %v5382
    %v5387 = vadd.f32 %v5219, %v5378
    %v5388 = vadd.f32 %v5221, %v5382
    %v5389 = vadd.f32 %v5225, %v5378
    %v5390 = vadd.f32 %v5227, %v5382
    %v5391 = vadd.f32 %v5229, %v5378
    %v5392 = vadd.f32 %v5231, %v5382
    %v5393 = vadd.f32 %v5235, %v5378
    %v5394 = vadd.f32 %v5237, %v5382
    %v5395 = vadd.f32 %v5239, %v5378
    %v5396 = vadd.f32 %v5241, %v5382
    %v5397 = vadd.f32 %v5245, %v5378
    %v5398 = vadd.f32 %v5247, %v5382
    %v5399 = vadd.f32 %v5249, %v5378
    %v5400 = vadd.f32 %v5251, %v5382
    %v5401 = vadd.f32 %v5255, %v5378
    %v5402 = vadd.f32 %v5257, %v5382
    %v5403 = vadd.f32 %v5259, %v5378
    %v5404 = vadd.f32 %v5261, %v5382
    %v5405 = vadd.f32 %v5265, %v5378
    %v5406 = vadd.f32 %v5267, %v5382
    %v5407 = vadd.f32 %v5269, %v5378
    %v5408 = vadd.f32 %v5271, %v5382
    %v5409 = vadd.f32 %v5275, %v5378
    %v5410 = vadd.f32 %v5277, %v5382
    %v5411 = vadd.f32 %v5279, %v5378
    %v5412 = vadd.f32 %v5281, %v5382
    %v5413 = vadd.f32 %v5285, %v5378
    %v5414 = vadd.f32 %v5287, %v5382
    %v5415 = vadd.f32 %v5289, %v5378
    %v5416 = vadd.f32 %v5291, %v5382
    %v5417 = vadd.f32 %v5295, %v5378
    %v5418 = vadd.f32 %v5297, %v5382
    %v5419 = vadd.f32 %v5299, %v5378
    %v5420 = vadd.f32 %v5301, %v5382
    %v5421 = vadd.f32 %v5305, %v5378
    %v5422 = vadd.f32 %v5307, %v5382
    %v5423 = vadd.f32 %v5309, %v5378
    %v5424 = vadd.f32 %v5311, %v5382
    %v5425 = vadd.f32 %v5315, %v5378
    %v5426 = vadd.f32 %v5317, %v5382
    %v5427 = vadd.f32 %v5319, %v5378
    %v5428 = vadd.f32 %v5321, %v5382
    %v5429 = vadd.f32 %v5325, %v5378
    %v5430 = vadd.f32 %v5327, %v5382
    %v5431 = vadd.f32 %v5329, %v5378
    %v5432 = vadd.f32 %v5331, %v5382
    %v5433 = vadd.f32 %v5335, %v5378
    %v5434 = vadd.f32 %v5337, %v5382
    %v5435 = vadd.f32 %v5339, %v5378
    %v5436 = vadd.f32 %v5341, %v5382
    %v5437 = vadd.f32 %v5345, %v5378
    %v5438 = vadd.f32 %v5347, %v5382
    %v5439 = vadd.f32 %v5349, %v5378
    %v5440 = vadd.f32 %v5351, %v5382
    %v5441 = vadd.f32 %v5355, %v5378
    %v5442 = vadd.f32 %v5357, %v5382
    %v5443 = vadd.f32 %v5359, %v5378
    %v5444 = vadd.f32 %v5361, %v5382
    %v5445 = vadd.f32 %v5365, %v5378
    %v5446 = vadd.f32 %v5367, %v5382
    %v5447 = vadd.f32 %v5369, %v5378
    %v5448 = vadd.f32 %v5371, %v5382
    %v5449 = vmax.f32 %v5385, 0.0
    %v5450 = vmax.f32 %v5386, 0.0
    %v5451 = vmax.f32 %v5387, 0.0
    %v5452 = vmax.f32 %v5388, 0.0
    %v5453 = vmax.f32 %v5389, 0.0
    %v5454 = vmax.f32 %v5390, 0.0
    %v5455 = vmax.f32 %v5391, 0.0
    %v5456 = vmax.f32 %v5392, 0.0
    %v5457 = vmax.f32 %v5393, 0.0
    %v5458 = vmax.f32 %v5394, 0.0
    %v5459 = vmax.f32 %v5395, 0.0
    %v5460 = vmax.f32 %v5396, 0.0
    %v5461 = vmax.f32 %v5397, 0.0
    %v5462 = vmax.f32 %v5398, 0.0
    %v5463 = vmax.f32 %v5399, 0.0
    %v5464 = vmax.f32 %v5400, 0.0
    %v5465 = vmax.f32 %v5401, 0.0
    %v5466 = vmax.f32 %v5402, 0.0
    %v5467 = vmax.f32 %v5403, 0.0
    %v5468 = vmax.f32 %v5404, 0.0
    %v5469 = vmax.f32 %v5405, 0.0
    %v5470 = vmax.f32 %v5406, 0.0
    %v5471 = vmax.f32 %v5407, 0.0
    %v5472 = vmax.f32 %v5408, 0.0
    %v5473 = vmax.f32 %v5409, 0.0
    %v5474 = vmax.f32 %v5410, 0.0
    %v5475 = vmax.f32 %v5411, 0.0
    %v5476 = vmax.f32 %v5412, 0.0
    %v5477 = vmax.f32 %v5413, 0.0
    %v5478 = vmax.f32 %v5414, 0.0
    %v5479 = vmax.f32 %v5415, 0.0
    %v5480 = vmax.f32 %v5416, 0.0
    %v5481 = vmax.f32 %v5417, 0.0
    %v5482 = vmax.f32 %v5418, 0.0
    %v5483 = vmax.f32 %v5419, 0.0
    %v5484 = vmax.f32 %v5420, 0.0
    %v5485 = vmax.f32 %v5421, 0.0
    %v5486 = vmax.f32 %v5422, 0.0
    %v5487 = vmax.f32 %v5423, 0.0
    %v5488 = vmax.f32 %v5424, 0.0
    %v5489 = vmax.f32 %v5425, 0.0
    %v5490 = vmax.f32 %v5426, 0.0
    %v5491 = vmax.f32 %v5427, 0.0
    %v5492 = vmax.f32 %v5428, 0.0
    %v5493 = vmax.f32 %v5429, 0.0
    %v5494 = vmax.f32 %v5430, 0.0
    %v5495 = vmax.f32 %v5431, 0.0
    %v5496 = vmax.f32 %v5432, 0.0
    %v5497 = vmax.f32 %v5433, 0.0
    %v5498 = vmax.f32 %v5434, 0.0
    %v5499 = vmax.f32 %v5435, 0.0
    %v5500 = vmax.f32 %v5436, 0.0
    %v5501 = vmax.f32 %v5437, 0.0
    %v5502 = vmax.f32 %v5438, 0.0
    %v5503 = vmax.f32 %v5439, 0.0
    %v5504 = vmax.f32 %v5440, 0.0
    %v5505 = vmax.f32 %v5441, 0.0
    %v5506 = vmax.f32 %v5442, 0.0
    %v5507 = vmax.f32 %v5443, 0.0
    %v5508 = vmax.f32 %v5444, 0.0
    %v5509 = vmax.f32 %v5445, 0.0
    %v5510 = vmax.f32 %v5446, 0.0
    %v5511 = vmax.f32 %v5447, 0.0
    %v5512 = vmax.f32 %v5448, 0.0
    %5513 = vst [vmem:[#allocation8] sm:$0xff] %v5449
    %5514 = vst [vmem:[#allocation8 + $0x8] sm:$0xff] %v5450
    %5515 = vst [vmem:[#allocation8 + $0x10] sm:$0xff] %v5451
    %5516 = vst [vmem:[#allocation8 + $0x18] sm:$0xff] %v5452
    %5517 = vst [vmem:[#allocation8 + $0x20] sm:$0xff] %v5453
    %5518 = vst [vmem:[#allocation8 + $0x28] sm:$0xff] %v5454
    %5519 = vst [vmem:[#allocation8 + $0x30] sm:$0xff] %v5455
    %5520 = vst [vmem:[#allocation8 + $0x38] sm:$0xff] %v5456
    %5521 = vst [vmem:[#allocation8 + $0x40] sm:$0xff] %v5457
    %5522 = vst [vmem:[#allocation8 + $0x48] sm:$0xff] %v5458
    %5523 = vst [vmem:[#allocation8 + $0x50] sm:$0xff] %v5459
    %5524 = vst [vmem:[#allocation8 + $0x58] sm:$0xff] %v5460
    %5525 = vst [vmem:[#allocation8 + $0x60] sm:$0xff] %v5461
    %5526 = vst [vmem:[#allocation8 + $0x68] sm:$0xff] %v5462
    %5527 = vst [vmem:[#allocation8 + $0x70] sm:$0xff] %v5463
    %5528 = vst [vmem:[#allocation8 + $0x78] sm:$0xff] %v5464
    %5529 = vst [vmem:[#allocation8 + $0x80] sm:$0xff] %v5465
    %5530 = vst [vmem:[#allocation8 + $0x88] sm:$0xff] %v5466
    %5531 = vst [vmem:[#allocation8 + $0x90] sm:$0xff] %v5467
    %5532 = vst [vmem:[#allocation8 + $0x98] sm:$0xff] %v5468
    %5533 = vst [vmem:[#allocation8 + $0xa0] sm:$0xff] %v5469
    %5534 = vst [vmem:[#allocation8 + $0xa8] sm:$0xff] %v5470
    %5535 = vst [vmem:[#allocation8 + $0xb0] sm:$0xff] %v5471
    %5536 = vst [vmem:[#allocation8 + $0xb8] sm:$0xff] %v5472
    %5537 = vst [vmem:[#allocation8 + $0xc0] sm:$0xff] %v5473
    %5538 = vst [vmem:[#allocation8 + $0xc8] sm:$0xff] %v5474
    %5539 = vst [vmem:[#allocation8 + $0xd0] sm:$0xff] %v5475
    %5540 = vst [vmem:[#allocation8 + $0xd8] sm:$0xff] %v5476
    %5541 = vst [vmem:[#allocation8 + $0xe0] sm:$0xff] %v5477
    %5542 = vst [vmem:[#allocation8 + $0xe8] sm:$0xff] %v5478
    %5543 = vst [vmem:[#allocation8 + $0xf0] sm:$0xff] %v5479
    %5544 = vst [vmem:[#allocation8 + $0xf8] sm:$0xff] %v5480
    %5545 = vst [vmem:[#allocation8 + $0x100] sm:$0xff] %v5481
    %5546 = vst [vmem:[#allocation8 + $0x108] sm:$0xff] %v5482
    %5547 = vst [vmem:[#allocation8 + $0x110] sm:$0xff] %v5483
    %5548 = vst [vmem:[#allocation8 + $0x118] sm:$0xff] %v5484
    %5549 = vst [vmem:[#allocation8 + $0x120] sm:$0xff] %v5485
    %5550 = vst [vmem:[#allocation8 + $0x128] sm:$0xff] %v5486
    %5551 = vst [vmem:[#allocation8 + $0x130] sm:$0xff] %v5487
    %5552 = vst [vmem:[#allocation8 + $0x138] sm:$0xff] %v5488
    %5553 = vst [vmem:[#allocation8 + $0x140] sm:$0xff] %v5489
    %5554 = vst [vmem:[#allocation8 + $0x148] sm:$0xff] %v5490
    %5555 = vst [vmem:[#allocation8 + $0x150] sm:$0xff] %v5491
    %5556 = vst [vmem:[#allocation8 + $0x158] sm:$0xff] %v5492
    %5557 = vst [vmem:[#allocation8 + $0x160] sm:$0xff] %v5493
    %5558 = vst [vmem:[#allocation8 + $0x168] sm:$0xff] %v5494
    %5559 = vst [vmem:[#allocation8 + $0x170] sm:$0xff] %v5495
    %5560 = vst [vmem:[#allocation8 + $0x178] sm:$0xff] %v5496
    %5561 = vst [vmem:[#allocation8 + $0x180] sm:$0xff] %v5497
    %5562 = vst [vmem:[#allocation8 + $0x188] sm:$0xff] %v5498
    %5563 = vst [vmem:[#allocation8 + $0x190] sm:$0xff] %v5499
    %5564 = vst [vmem:[#allocation8 + $0x198] sm:$0xff] %v5500
    %5565 = vst [vmem:[#allocation8 + $0x1a0] sm:$0xff] %v5501
    %5566 = vst [vmem:[#allocation8 + $0x1a8] sm:$0xff] %v5502
    %5567 = vst [vmem:[#allocation8 + $0x1b0] sm:$0xff] %v5503
    %5568 = vst [vmem:[#allocation8 + $0x1b8] sm:$0xff] %v5504
    %5569 = vst [vmem:[#allocation8 + $0x1c0] sm:$0xff] %v5505
    %5570 = vst [vmem:[#allocation8 + $0x1c8] sm:$0xff] %v5506
    %5571 = vst [vmem:[#allocation8 + $0x1d0] sm:$0xff] %v5507
    %5572 = vst [vmem:[#allocation8 + $0x1d8] sm:$0xff] %v5508
    %5573 = vst [vmem:[#allocation8 + $0x1e0] sm:$0xff] %v5509
    %5574 = vst [vmem:[#allocation8 + $0x1e8] sm:$0xff] %v5510
    %5575 = vst [vmem:[#allocation8 + $0x1f0] sm:$0xff] %v5511
    %5576 = vst [vmem:[#allocation8 + $0x1f8] sm:$0xff] %v5512
    // Predicated region
    $region42: #{tpu_custom_call.1} parent=1 // pred_check
      _
    $region43: #{tpu_custom_call.1} parent=1 // pred_check_branch
      %5578 = sbr.rel (0) target = $region45
    $region44: #{tpu_custom_call.1} parent=1 // pred_region
      %s5580 = ssub.s32 8192, 8192
      %5581 = vsyncadd [#allocation5], %s5580
      %s5582 = sshll.u32 [#allocation8], 4
      %s5583 = int_to_ptr.vmem [resolvable:$true] %s5582
      %5588 = dma.vmem_to_hbm [thread:$0]  %s5583, 8192, %s8, [#allocation5], 256, 256, 16
    $region45: #{tpu_custom_call.1} parent=1 // pred_fallthru
      _
    // Predicated region
    $region46: #{tpu_custom_call.1} parent=1 // pred_check
      _
    $region47: #{tpu_custom_call.1} parent=1 // pred_check_branch
      %5590 = sbr.rel (0) target = $region49
    $region48: #{tpu_custom_call.1} parent=1 // pred_region
      %5591 = dma.done [#allocation5], 8192
    $region49: #{tpu_custom_call.1} parent=1 // pred_fallthru
      _
    %5592 = vsyncpa [#allocation4], 1
    %5593 = vsyncpa [#allocation7], 1
    %5594 = vsyncpa [#allocation5], 1

</llo_original>
